<compile_context>
chip_gen: v6e
topology: v6e:2x2x1
jax: 0.10.0
libtpu: 0.0.40
codegen_flags: <defaults>
</compile_context>

<pallas_src>
import jax
import jax.numpy as jnp
from jax.experimental import pallas as pl
from jax.experimental.pallas import tpu as pltpu


# ---------------------------------------------------------------------------
# Kernel A: QSTN localization net + max-pool + fc_loc  ->  quaternion (B,1,4)
# ---------------------------------------------------------------------------
def _make_qstn_kernel(mm_dtype):
    f32 = jnp.float32

    def kernel(x_ref, w1, b1, w2, b2, w3, b3,
               fw1, fb1, fw2, fb2, fw3, fb3, out_ref, pool_sc):
        k = pl.program_id(1)

        @pl.when(k == 0)
        def _init():
            pool_sc[...] = jnp.full(pool_sc.shape, -jnp.inf, dtype=pool_sc.dtype)

        xt = x_ref[0]                                     # (TN, 3) f32
        # layer 1 (K=3): three VPU broadcast-FMAs instead of a padded MXU pass.
        w1v = w1[...]                                     # (3, 64) f32
        h = (xt[:, 0:1] * w1v[0:1, :]
             + xt[:, 1:2] * w1v[1:2, :]
             + xt[:, 2:3] * w1v[2:3, :]) + b1[...]
        h = jnp.maximum(h, 0.0)                           # (TN, 64)
        h = jnp.maximum(
            jnp.dot(h.astype(mm_dtype), w2[...], preferred_element_type=f32)
            + b2[...], 0.0)                               # (TN, 128)
        h = jnp.maximum(
            jnp.dot(h.astype(mm_dtype), w3[...], preferred_element_type=f32)
            + b3[...], 0.0)                               # (TN, 1024)
        # running MaxPool1d over the point tiles
        pool_sc[...] = jnp.maximum(pool_sc[...],
                                   jnp.max(h, axis=0, keepdims=True))

        @pl.when(k == pl.num_programs(1) - 1)
        def _fc():
            g = pool_sc[...]                              # (1, 1024)
            g = jnp.maximum(
                jnp.dot(g.astype(mm_dtype), fw1[...], preferred_element_type=f32)
                + fb1[...], 0.0)
            g = jnp.maximum(
                jnp.dot(g.astype(mm_dtype), fw2[...], preferred_element_type=f32)
                + fb2[...], 0.0)
            # fb3 already contains the quaternion identity [1, 0, 0, 0]
            out_ref[0] = (jnp.dot(g.astype(mm_dtype), fw3[...],
                                  preferred_element_type=f32) + fb3[...])

    return kernel


# ---------------------------------------------------------------------------
# Kernel B: mlp1 (point-STN folded into conv1) + feature-STN localization net
#           + max-pool + fc_loc  ->  (feats (B,N,64), trans2_flat (B,1,4096))
# ---------------------------------------------------------------------------
def _make_mlp1_stn2_kernel(mm_dtype):
    f32 = jnp.float32

    def kernel(x_ref, tr_ref, m1w1, m1b1, m1w2, m1b2,
               lw1, lb1, lw2, lb2, lw3, lb3,
               fw1, fb1, fw2, fb2, fw3, fb3,
               feat_ref, t2_ref, pool_sc):
        k = pl.program_id(1)

        @pl.when(k == 0)
        def _init():
            pool_sc[...] = jnp.full(pool_sc.shape, -jnp.inf, dtype=pool_sc.dtype)

        xt = x_ref[0]                                     # (TN, 3)
        tr = tr_ref[0]                                    # (3, 3) point-STN rotation
        w1v = m1w1[...]                                   # (3, 64) f32
        # fold the per-batch rotation into mlp1.conv1: (x @ T) @ W == x @ (T @ W)
        weff = (tr[:, 0:1] * w1v[0:1, :]
                + tr[:, 1:2] * w1v[1:2, :]
                + tr[:, 2:3] * w1v[2:3, :])               # (3, 64), VPU only
        h = (xt[:, 0:1] * weff[0:1, :]
             + xt[:, 1:2] * weff[1:2, :]
             + xt[:, 2:3] * weff[2:3, :]) + m1b1[...]
        h = jnp.maximum(h, 0.0)                           # (TN, 64)
        h = jnp.maximum(
            jnp.dot(h.astype(mm_dtype), m1w2[...], preferred_element_type=f32)
            + m1b2[...], 0.0)                             # (TN, 64) = mlp1 output
        feat_ref[0] = h

        # feature-STN localization net, fused so the features are not re-read.
        g = jnp.maximum(
            jnp.dot(h.astype(mm_dtype), lw1[...], preferred_element_type=f32)
            + lb1[...], 0.0)                              # (TN, 64)
        g = jnp.maximum(
            jnp.dot(g.astype(mm_dtype), lw2[...], preferred_element_type=f32)
            + lb2[...], 0.0)                              # (TN, 128)
        g = jnp.maximum(
            jnp.dot(g.astype(mm_dtype), lw3[...], preferred_element_type=f32)
            + lb3[...], 0.0)                              # (TN, 1024)
        pool_sc[...] = jnp.maximum(pool_sc[...],
                                   jnp.max(g, axis=0, keepdims=True))

        @pl.when(k == pl.num_programs(1) - 1)
        def _fc():
            p = pool_sc[...]                              # (1, 1024)
            p = jnp.maximum(
                jnp.dot(p.astype(mm_dtype), fw1[...], preferred_element_type=f32)
                + fb1[...], 0.0)
            p = jnp.maximum(
                jnp.dot(p.astype(mm_dtype), fw2[...], preferred_element_type=f32)
                + fb2[...], 0.0)
            # fb3 already contains eye(64).reshape(1, 4096)
            t2_ref[0] = (jnp.dot(p.astype(mm_dtype), fw3[...],
                                 preferred_element_type=f32) + fb3[...])

    return kernel


# ---------------------------------------------------------------------------
# Kernel C: mlp2 (feature-STN folded into conv1) + max-pool -> (B, 1, 1024)
# ---------------------------------------------------------------------------
def _make_mlp2_kernel(mm_dtype):
    f32 = jnp.float32

    def kernel(f_ref, t2_ref, w1, b1, w2, b2, w3, b3, out_ref, pool_sc):
        k = pl.program_id(1)

        @pl.when(k == 0)
        def _init():
            pool_sc[...] = jnp.full(pool_sc.shape, -jnp.inf, dtype=pool_sc.dtype)

        feat = f_ref[0]                                   # (TN, 64)
        # fold the per-batch feature transform into mlp2.conv1
        weff = jnp.dot(t2_ref[0].astype(mm_dtype), w1[...],
                       preferred_element_type=f32)        # (64, 64)
        h = jnp.maximum(
            jnp.dot(feat.astype(mm_dtype), weff.astype(mm_dtype),
                    preferred_element_type=f32) + b1[...], 0.0)   # (TN, 64)
        h = jnp.maximum(
            jnp.dot(h.astype(mm_dtype), w2[...], preferred_element_type=f32)
            + b2[...], 0.0)                               # (TN, 128)
        h = (jnp.dot(h.astype(mm_dtype), w3[...], preferred_element_type=f32)
             + b3[...])                                   # (TN, 1024), BN only, no ReLU
        pool_sc[...] = jnp.maximum(pool_sc[...],
                                   jnp.max(h, axis=0, keepdims=True))

        @pl.when(k == pl.num_programs(1) - 1)
        def _out():
            out_ref[0] = pool_sc[...]

    return kernel


# ---------------------------------------------------------------------------
# utils.batch_quat_to_rotmat (PCPNet convention: w,x,y,z, normalized by |q|^2).
# Tiny per-batch op -> plain JAX, no Pallas value.
# ---------------------------------------------------------------------------
def batch_quat_to_rotmat(q):
    # TODO(synk): assumes the PCPNet utils.batch_quat_to_rotmat convention.
    s = 2.0 / jnp.sum(q * q, axis=1, keepdims=True)       # (B, 1)
    w, x, y, z = q[:, 0:1], q[:, 1:2], q[:, 2:3], q[:, 3:4]
    r = jnp.concatenate([
        1.0 - s * (y * y + z * z), s * (x * y - z * w), s * (x * z + y * w),
        s * (x * y + z * w), 1.0 - s * (x * x + z * z), s * (y * z - x * w),
        s * (x * z - y * w), s * (y * z + x * w), 1.0 - s * (x * x + y * y),
    ], axis=1)
    return r.reshape(-1, 3, 3)


# ---------------------------------------------------------------------------
# Forward wrapper
# ---------------------------------------------------------------------------
def pointnet_feat_forward(x, params, *, tile_n=256, matmul_dtype=jnp.bfloat16):
    """PointNetFeat forward.  x: (B, 3, N) float32 (PyTorch NCW).
    Returns (global_feat (B,1024), trans (B,3,3), trans2 (B,64,64), None)."""
    B, C, N = x.shape
    if C != 3:
        raise ValueError("only the point_tuple == 1 path (3 input channels) is implemented")
    TN = min(tile_n, N)
    if N % TN != 0:
        raise ValueError("num_points must be a multiple of the point tile (see TODO)")
    NT = N // TN
    p = params
    mm = matmul_dtype
    f32 = jnp.float32

    # Single small wrapper transpose of the raw (B, 3, N) input.  This is the
    # one review item intentionally kept in the wrapper: the 3-channel input is
    # by far the smallest tensor in the network (<1% of HBM traffic), the
    # transposed copy feeds two kernels (A and B), and an in-kernel (3, TN)
    # transpose is an unaligned relayout avoided for robustness.
    xt = jnp.transpose(x, (0, 2, 1))                      # (B, N, 3)

    def cw(w):  # heavy matmul operands in the MXU dtype (bf16 on v6e/v7x)
        return w.astype(mm)

    def wspec(shape):  # resident weight / bias (constant block index)
        return pl.BlockSpec(shape, lambda b, k: (0, 0))

    cp = pltpu.CompilerParams(
        dimension_semantics=("parallel", "arbitrary"),
        vmem_limit_bytes=48 * 1024 * 1024,
    )
    pool_scratch = [pltpu.VMEM((1, 1024), jnp.float32)]

    # ---- kernel A: QSTN (localization + pool + fc_loc fused) -> quaternion
    quat = pl.pallas_call(
        _make_qstn_kernel(mm),
        out_shape=jax.ShapeDtypeStruct((B, 1, 4), f32),
        grid=(B, NT),
        in_specs=[
            pl.BlockSpec((1, TN, 3), lambda b, k: (b, k, 0)),
            wspec((3, 64)), wspec((1, 64)),
            wspec((64, 128)), wspec((1, 128)),
            wspec((128, 1024)), wspec((1, 1024)),
            wspec((1024, 512)), wspec((1, 512)),
            wspec((512, 256)), wspec((1, 256)),
            wspec((256, 4)), wspec((1, 4)),
        ],
        out_specs=pl.BlockSpec((1, 1, 4), lambda b, k: (b, 0, 0)),
        scratch_shapes=pool_scratch,
        compiler_params=cp,
    )(xt, p["q_w1"], p["q_b1"], cw(p["q_w2"]), p["q_b2"], cw(p["q_w3"]), p["q_b3"],
      cw(p["q_fw1"]), p["q_fb1"], cw(p["q_fw2"]), p["q_fb2"], cw(p["q_fw3"]), p["q_fb3"])

    trans = batch_quat_to_rotmat(quat.reshape(B, 4))      # (B, 3, 3), tiny

    # ---- kernel B: mlp1 (+ point-STN fold) + feature-STN loc + pool + fc_loc
    feats, t2flat = pl.pallas_call(
        _make_mlp1_stn2_kernel(mm),
        out_shape=(jax.ShapeDtypeStruct((B, N, 64), f32),
                   jax.ShapeDtypeStruct((B, 1, 64 * 64), f32)),
        grid=(B, NT),
        in_specs=[
            pl.BlockSpec((1, TN, 3), lambda b, k: (b, k, 0)),
            pl.BlockSpec((1, 3, 3), lambda b, k: (b, 0, 0)),
            wspec((3, 64)), wspec((1, 64)),
            wspec((64, 64)), wspec((1, 64)),
            wspec((64, 64)), wspec((1, 64)),
            wspec((64, 128)), wspec((1, 128)),
            wspec((128, 1024)), wspec((1, 1024)),
            wspec((1024, 512)), wspec((1, 512)),
            wspec((512, 256)), wspec((1, 256)),
            wspec((256, 64 * 64)), wspec((1, 64 * 64)),
        ],
        out_specs=[
            pl.BlockSpec((1, TN, 64), lambda b, k: (b, k, 0)),
            pl.BlockSpec((1, 1, 64 * 64), lambda b, k: (b, 0, 0)),
        ],
        scratch_shapes=pool_scratch,
        compiler_params=cp,
    )(xt, trans, p["m1_w1"], p["m1_b1"], cw(p["m1_w2"]), p["m1_b2"],
      cw(p["s_w1"]), p["s_b1"], cw(p["s_w2"]), p["s_b2"], cw(p["s_w3"]), p["s_b3"],
      cw(p["s_fw1"]), p["s_fb1"], cw(p["s_fw2"]), p["s_fb2"], cw(p["s_fw3"]), p["s_fb3"])

    trans2 = t2flat.reshape(B, 64, 64)

    # ---- kernel C: mlp2 (+ feature-STN fold) + max-pool -> global feature
    gfeat = pl.pallas_call(
        _make_mlp2_kernel(mm),
        out_shape=jax.ShapeDtypeStruct((B, 1, 1024), f32),
        grid=(B, NT),
        in_specs=[
            pl.BlockSpec((1, TN, 64), lambda b, k: (b, k, 0)),
            pl.BlockSpec((1, 64, 64), lambda b, k: (b, 0, 0)),
            wspec((64, 64)), wspec((1, 64)),
            wspec((64, 128)), wspec((1, 128)),
            wspec((128, 1024)), wspec((1, 1024)),
        ],
        out_specs=pl.BlockSpec((1, 1, 1024), lambda b, k: (b, 0, 0)),
        scratch_shapes=pool_scratch,
        compiler_params=cp,
    )(feats, trans2, cw(p["m2_w1"]), p["m2_b1"], cw(p["m2_w2"]), p["m2_b2"],
      cw(p["m2_w3"]), p["m2_b3"])

    return gfeat.reshape(B, 1024), trans, trans2, None    # get_pointfvals=False


# ---------------------------------------------------------------------------
# Deterministic parameter init with inference-mode BatchNorm folding.
# Weights stored point-major (C_in, C_out); biases as (1, C_out).
# ---------------------------------------------------------------------------
def _conv_bn(key, cin, cout, with_bn=True):
    kw, kb, kg, kbt, km, kv = jax.random.split(key, 6)
    w = 0.1 * jax.random.normal(kw, (cout, cin), jnp.float32)   # torch (out, in)
    b = 0.1 * jax.random.normal(kb, (cout,), jnp.float32)
    if with_bn:
        gamma = 1.0 + 0.1 * jax.random.normal(kg, (cout,), jnp.float32)
        beta = 0.1 * jax.random.normal(kbt, (cout,), jnp.float32)
        mean = 0.1 * jax.random.normal(km, (cout,), jnp.float32)
        var = 1.0 + 0.1 * jnp.abs(jax.random.normal(kv, (cout,), jnp.float32))
        s = gamma / jnp.sqrt(var + 1e-5)
        w = w * s[:, None]
        b = s * (b - mean) + beta
    return jnp.transpose(w), b.reshape(1, cout)


def init_params(key):
    ks = jax.random.split(key, 17)
    p = {}
    # QSTN (dim=3): localization_net + fc_loc (output 4 = quaternion)
    p["q_w1"], p["q_b1"] = _conv_bn(ks[0], 3, 64)
    p["q_w2"], p["q_b2"] = _conv_bn(ks[1], 64, 128)
    p["q_w3"], p["q_b3"] = _conv_bn(ks[2], 128, 1024)
    p["q_fw1"], p["q_fb1"] = _conv_bn(ks[3], 1024, 512)
    p["q_fw2"], p["q_fb2"] = _conv_bn(ks[4], 512, 256)
    w, b = _conv_bn(ks[5], 256, 4, with_bn=False)
    p["q_fw3"] = w
    p["q_fb3"] = b + jnp.array([[1.0, 0.0, 0.0, 0.0]], jnp.float32)   # + iden (folded)
    # STN (dim=64): localization_net + fc_loc (output 64*64), eye folded in
    p["s_w1"], p["s_b1"] = _conv_bn(ks[6], 64, 64)
    p["s_w2"], p["s_b2"] = _conv_bn(ks[7], 64, 128)
    p["s_w3"], p["s_b3"] = _conv_bn(ks[8], 128, 1024)
    p["s_fw1"], p["s_fb1"] = _conv_bn(ks[9], 1024, 512)
    p["s_fw2"], p["s_fb2"] = _conv_bn(ks[10], 512, 256)
    w, b = _conv_bn(ks[11], 256, 64 * 64, with_bn=False)
    p["s_fw3"] = w
    p["s_fb3"] = b + jnp.eye(64, dtype=jnp.float32).reshape(1, 64 * 64)  # + eye (folded)
    # mlp1
    p["m1_w1"], p["m1_b1"] = _conv_bn(ks[12], 3, 64)
    p["m1_w2"], p["m1_b2"] = _conv_bn(ks[13], 64, 64)
    # mlp2 (last layer: conv + BN, no ReLU)
    p["m2_w1"], p["m2_b1"] = _conv_bn(ks[14], 64, 64)
    p["m2_w2"], p["m2_b2"] = _conv_bn(ks[15], 64, 128)
    p["m2_w3"], p["m2_b3"] = _conv_bn(ks[16], 128, 1024)
    return p


# ---------------------------------------------------------------------------
# Pure-JAX reference (same folded-BN semantics) for the correctness check.
# ---------------------------------------------------------------------------
def pointnet_feat_ref(x, p):
    hi = jax.lax.Precision.HIGHEST
    mm = lambda a, b: jnp.matmul(a, b, precision=hi)
    relu = jax.nn.relu
    B = x.shape[0]
    xt = jnp.transpose(x, (0, 2, 1))                      # (B, N, 3)
    # QSTN
    h = relu(mm(xt, p["q_w1"]) + p["q_b1"])
    h = relu(mm(h, p["q_w2"]) + p["q_b2"])
    h = relu(mm(h, p["q_w3"]) + p["q_b3"])
    g = jnp.max(h, axis=1)
    g = relu(mm(g, p["q_fw1"]) + p["q_fb1"])
    g = relu(mm(g, p["q_fw2"]) + p["q_fb2"])
    quat = mm(g, p["q_fw3"]) + p["q_fb3"]
    trans = batch_quat_to_rotmat(quat)
    y = mm(xt, trans)                                     # bmm(x^T, trans)
    # mlp1
    f = relu(mm(y, p["m1_w1"]) + p["m1_b1"])
    f = relu(mm(f, p["m1_w2"]) + p["m1_b2"])
    # feature STN
    h = relu(mm(f, p["s_w1"]) + p["s_b1"])
    h = relu(mm(h, p["s_w2"]) + p["s_b2"])
    h = relu(mm(h, p["s_w3"]) + p["s_b3"])
    g = jnp.max(h, axis=1)
    g = relu(mm(g, p["s_fw1"]) + p["s_fb1"])
    g = relu(mm(g, p["s_fw2"]) + p["s_fb2"])
    trans2 = (mm(g, p["s_fw3"]) + p["s_fb3"]).reshape(B, 64, 64)
    y2 = mm(f, trans2)                                    # bmm(x^T, trans2)
    # mlp2
    h = relu(mm(y2, p["m2_w1"]) + p["m2_b1"])
    h = relu(mm(h, p["m2_w2"]) + p["m2_b2"])
    h = mm(h, p["m2_w3"]) + p["m2_b3"]
    gf = jnp.max(h, axis=1)
    return gf, trans, trans2, None


if __name__ == "__main__":
    B, N = 2, 512            # small demo shapes (module default num_points=500 -> see TODO)
    key = jax.random.PRNGKey(0)
    kx, kp = jax.random.split(key)
    x = jax.random.normal(kx, (B, 3, N), jnp.float32)     # NCW, like PyTorch
    params = init_params(kp)

    # float32-matmul path: compared against the pure-JAX reference.
    gf, trans, trans2, pfv = pointnet_feat_forward(
        x, params, tile_n=256, matmul_dtype=jnp.float32)
    jax.block_until_ready(gf)
    rgf, rtrans, rtrans2, _ = pointnet_feat_ref(x, params)

    assert gf.shape == (B, 1024), gf.shape
    assert trans.shape == (B, 3, 3) and trans2.shape == (B, 64, 64)
    assert pfv is None
    assert jnp.allclose(trans, rtrans, rtol=1e-2, atol=1e-2), "point-STN mismatch"
    assert jnp.allclose(trans2, rtrans2, rtol=1e-2, atol=1e-2), "feature-STN mismatch"
    assert jnp.allclose(gf, rgf, rtol=1e-2, atol=1e-2), "global feature mismatch"

    # bfloat16-matmul path (recommended on v6e/v7x): smoke run.
    gf16, t16, t216, _ = pointnet_feat_forward(
        x, params, tile_n=256, matmul_dtype=jnp.bfloat16)
    jax.block_until_ready(gf16)
    assert gf16.shape == (B, 1024)
    assert bool(jnp.isfinite(gf16).all())

    print("KERNEL_OK")
</pallas_src>

<mosaic_0001>
module attributes {stable_mosaic.version = 11 : i64} {
  func.func @kernel(%arg0: i32, %arg1: i32, %arg2: memref<1x256x3xf32, #tpu.memory_space<vmem>>, %arg3: memref<3x64xf32, #tpu.memory_space<vmem>>, %arg4: memref<1x64xf32, #tpu.memory_space<vmem>>, %arg5: memref<64x128xf32, #tpu.memory_space<vmem>>, %arg6: memref<1x128xf32, #tpu.memory_space<vmem>>, %arg7: memref<128x1024xf32, #tpu.memory_space<vmem>>, %arg8: memref<1x1024xf32, #tpu.memory_space<vmem>>, %arg9: memref<1024x512xf32, #tpu.memory_space<vmem>>, %arg10: memref<1x512xf32, #tpu.memory_space<vmem>>, %arg11: memref<512x256xf32, #tpu.memory_space<vmem>>, %arg12: memref<1x256xf32, #tpu.memory_space<vmem>>, %arg13: memref<256x4xf32, #tpu.memory_space<vmem>>, %arg14: memref<1x4xf32, #tpu.memory_space<vmem>>, %arg15: memref<1x1x4xf32, #tpu.memory_space<vmem>>, %arg16: memref<1x1024xf32, #tpu.memory_space<vmem>>) attributes {dimension_semantics = [#tpu.dimension_semantics<parallel>, #tpu.dimension_semantics<arbitrary>], iteration_bounds = array<i64: 2, 2>, scalar_prefetch = 0 : i64, scratch_operands = 1 : i64, tpu.core_type = #tpu.core_type<tc>, window_params = [{transform_indices = @transform_0, window_bounds = array<i64: 1, 256, 3>}, {pipeline_mode = #tpu.pipeline_mode<synchronous>, transform_indices = @transform_1, window_bounds = array<i64: 3, 64>}, {pipeline_mode = #tpu.pipeline_mode<synchronous>, transform_indices = @transform_2, window_bounds = array<i64: 1, 64>}, {pipeline_mode = #tpu.pipeline_mode<synchronous>, transform_indices = @transform_3, window_bounds = array<i64: 64, 128>}, {pipeline_mode = #tpu.pipeline_mode<synchronous>, transform_indices = @transform_4, window_bounds = array<i64: 1, 128>}, {pipeline_mode = #tpu.pipeline_mode<synchronous>, transform_indices = @transform_5, window_bounds = array<i64: 128, 1024>}, {pipeline_mode = #tpu.pipeline_mode<synchronous>, transform_indices = @transform_6, window_bounds = array<i64: 1, 1024>}, {pipeline_mode = #tpu.pipeline_mode<synchronous>, transform_indices = @transform_7, window_bounds = array<i64: 1024, 512>}, {pipeline_mode = #tpu.pipeline_mode<synchronous>, transform_indices = @transform_8, window_bounds = array<i64: 1, 512>}, {pipeline_mode = #tpu.pipeline_mode<synchronous>, transform_indices = @transform_9, window_bounds = array<i64: 512, 256>}, {pipeline_mode = #tpu.pipeline_mode<synchronous>, transform_indices = @transform_10, window_bounds = array<i64: 1, 256>}, {pipeline_mode = #tpu.pipeline_mode<synchronous>, transform_indices = @transform_11, window_bounds = array<i64: 256, 4>}, {pipeline_mode = #tpu.pipeline_mode<synchronous>, transform_indices = @transform_12, window_bounds = array<i64: 1, 4>}, {transform_indices = @transform_13, window_bounds = array<i64: 1, 1, 4>}]} {
    %c0_i32 = arith.constant 0 : i32
    %0 = arith.cmpi eq, %arg1, %c0_i32 : i32
    %1 = arith.extui %0 : i1 to i32
    %c0_i32_0 = arith.constant 0 : i32
    %2 = arith.cmpi ne, %1, %c0_i32_0 : i32
    scf.if %2 {
      %cst_25 = arith.constant 0xFF800000 : f32
      %50 = vector.broadcast %cst_25 : f32 to vector<1x1024xf32>
      %c0_26 = arith.constant 0 : index
      %c0_27 = arith.constant 0 : index
      %51 = vector.load %arg16[%c0_26, %c0_27] : memref<1x1024xf32, #tpu.memory_space<vmem>>, vector<1x1024xf32>
      tpu.vector_store %arg16[%c0_26, %c0_27], %50 {strides = array<i32>} : memref<1x1024xf32, #tpu.memory_space<vmem>>, vector<1x1024xf32>,
    } else {
    }
    %c0 = arith.constant 0 : index
    %c0_1 = arith.constant 0 : index
    %c0_2 = arith.constant 0 : index
    %3 = vector.load %arg2[%c0, %c0_1, %c0_2] : memref<1x256x3xf32, #tpu.memory_space<vmem>>, vector<1x256x3xf32>
    %4 = vector.shape_cast %3 : vector<1x256x3xf32> to vector<256x3xf32>
    %c0_3 = arith.constant 0 : index
    %c0_4 = arith.constant 0 : index
    %5 = vector.load %arg3[%c0_3, %c0_4] : memref<3x64xf32, #tpu.memory_space<vmem>>, vector<3x64xf32>
    %6 = vector.extract_strided_slice %4 {offsets = [0, 0], sizes = [256, 1], strides = [1, 1]} : vector<256x3xf32> to vector<256x1xf32>
    %7 = vector.extract_strided_slice %5 {offsets = [0, 0], sizes = [1, 64], strides = [1, 1]} : vector<3x64xf32> to vector<1x64xf32>
    %8 = vector.broadcast %6 : vector<256x1xf32> to vector<256x64xf32>
    %9 = vector.broadcast %7 : vector<1x64xf32> to vector<256x64xf32>
    %10 = arith.mulf %8, %9 : vector<256x64xf32>
    %11 = vector.extract_strided_slice %4 {offsets = [0, 1], sizes = [256, 1], strides = [1, 1]} : vector<256x3xf32> to vector<256x1xf32>
    %12 = vector.extract_strided_slice %5 {offsets = [1, 0], sizes = [1, 64], strides = [1, 1]} : vector<3x64xf32> to vector<1x64xf32>
    %13 = vector.broadcast %11 : vector<256x1xf32> to vector<256x64xf32>
    %14 = vector.broadcast %12 : vector<1x64xf32> to vector<256x64xf32>
    %15 = arith.mulf %13, %14 : vector<256x64xf32>
    %16 = arith.addf %10, %15 : vector<256x64xf32>
    %17 = vector.extract_strided_slice %4 {offsets = [0, 2], sizes = [256, 1], strides = [1, 1]} : vector<256x3xf32> to vector<256x1xf32>
    %18 = vector.extract_strided_slice %5 {offsets = [2, 0], sizes = [1, 64], strides = [1, 1]} : vector<3x64xf32> to vector<1x64xf32>
    %19 = vector.broadcast %17 : vector<256x1xf32> to vector<256x64xf32>
    %20 = vector.broadcast %18 : vector<1x64xf32> to vector<256x64xf32>
    %21 = arith.mulf %19, %20 : vector<256x64xf32>
    %22 = arith.addf %16, %21 : vector<256x64xf32>
    %c0_5 = arith.constant 0 : index
    %c0_6 = arith.constant 0 : index
    %23 = vector.load %arg4[%c0_5, %c0_6] : memref<1x64xf32, #tpu.memory_space<vmem>>, vector<1x64xf32>
    %24 = vector.broadcast %23 : vector<1x64xf32> to vector<256x64xf32>
    %25 = arith.addf %22, %24 : vector<256x64xf32>
    %cst = arith.constant 0.000000e+00 : f32
    %26 = vector.broadcast %cst : f32 to vector<256x64xf32>
    %27 = arith.maximumf %25, %26 : vector<256x64xf32>
    %c0_7 = arith.constant 0 : index
    %c0_8 = arith.constant 0 : index
    %28 = vector.load %arg5[%c0_7, %c0_8] : memref<64x128xf32, #tpu.memory_space<vmem>>, vector<64x128xf32>
    %cst_9 = arith.constant dense<0.000000e+00> : vector<256x128xf32>
    %29 = tpu.matmul %27, %28, %cst_9 {dimension_numbers = #tpu.dot_dimension_numbers<[1], [0], [0], [1], [0, 0, 1, 1], [], []>} : vector<256x64xf32>, vector<64x128xf32>, vector<256x128xf32> -> vector<256x128xf32>
    %c0_10 = arith.constant 0 : index
    %c0_11 = arith.constant 0 : index
    %30 = vector.load %arg6[%c0_10, %c0_11] : memref<1x128xf32, #tpu.memory_space<vmem>>, vector<1x128xf32>
    %31 = vector.broadcast %30 : vector<1x128xf32> to vector<256x128xf32>
    %32 = arith.addf %29, %31 : vector<256x128xf32>
    %cst_12 = arith.constant 0.000000e+00 : f32
    %33 = vector.broadcast %cst_12 : f32 to vector<256x128xf32>
    %34 = arith.maximumf %32, %33 : vector<256x128xf32>
    %c0_13 = arith.constant 0 : index
    %c0_14 = arith.constant 0 : index
    %35 = vector.load %arg7[%c0_13, %c0_14] : memref<128x1024xf32, #tpu.memory_space<vmem>>, vector<128x1024xf32>
    %cst_15 = arith.constant dense<0.000000e+00> : vector<256x1024xf32>
    %36 = tpu.matmul %34, %35, %cst_15 {dimension_numbers = #tpu.dot_dimension_numbers<[1], [0], [0], [1], [0, 0, 1, 1], [], []>} : vector<256x128xf32>, vector<128x1024xf32>, vector<256x1024xf32> -> vector<256x1024xf32>
    %c0_16 = arith.constant 0 : index
    %c0_17 = arith.constant 0 : index
    %37 = vector.load %arg8[%c0_16, %c0_17] : memref<1x1024xf32, #tpu.memory_space<vmem>>, vector<1x1024xf32>
    %38 = vector.broadcast %37 : vector<1x1024xf32> to vector<256x1024xf32>
    %39 = arith.addf %36, %38 : vector<256x1024xf32>
    %cst_18 = arith.constant 0.000000e+00 : f32
    %40 = vector.broadcast %cst_18 : f32 to vector<256x1024xf32>
    %41 = arith.maximumf %39, %40 : vector<256x1024xf32>
    %c0_19 = arith.constant 0 : index
    %c0_20 = arith.constant 0 : index
    %42 = vector.load %arg16[%c0_19, %c0_20] : memref<1x1024xf32, #tpu.memory_space<vmem>>, vector<1x1024xf32>
    %cst_21 = arith.constant dense<0xFF800000> : vector<1024xf32>
    %43 = vector.multi_reduction <maximumf>, %41, %cst_21 [0] : vector<256x1024xf32> to vector<1024xf32>
    %44 = vector.shape_cast %43 : vector<1024xf32> to vector<1x1024xf32>
    %45 = arith.maximumf %42, %44 : vector<1x1024xf32>
    %c0_22 = arith.constant 0 : index
    %c0_23 = arith.constant 0 : index
    %46 = vector.load %arg16[%c0_22, %c0_23] : memref<1x1024xf32, #tpu.memory_space<vmem>>, vector<1x1024xf32>
    tpu.vector_store %arg16[%c0_22, %c0_23], %45 {strides = array<i32>} : memref<1x1024xf32, #tpu.memory_space<vmem>>, vector<1x1024xf32>,
    %c1_i32 = arith.constant 1 : i32
    %47 = arith.cmpi eq, %arg1, %c1_i32 : i32
    %48 = arith.extui %47 : i1 to i32
    %c0_i32_24 = arith.constant 0 : i32
    %49 = arith.cmpi ne, %48, %c0_i32_24 : i32
    scf.if %49 {
      %c0_25 = arith.constant 0 : index
      %c0_26 = arith.constant 0 : index
      %50 = vector.load %arg16[%c0_25, %c0_26] : memref<1x1024xf32, #tpu.memory_space<vmem>>, vector<1x1024xf32>
      %c0_27 = arith.constant 0 : index
      %c0_28 = arith.constant 0 : index
      %51 = vector.load %arg9[%c0_27, %c0_28] : memref<1024x512xf32, #tpu.memory_space<vmem>>, vector<1024x512xf32>
      %cst_29 = arith.constant dense<0.000000e+00> : vector<1x512xf32>
      %52 = tpu.matmul %50, %51, %cst_29 {dimension_numbers = #tpu.dot_dimension_numbers<[1], [0], [0], [1], [0, 0, 1, 1], [], []>} : vector<1x1024xf32>, vector<1024x512xf32>, vector<1x512xf32> -> vector<1x512xf32>
      %c0_30 = arith.constant 0 : index
      %c0_31 = arith.constant 0 : index
      %53 = vector.load %arg10[%c0_30, %c0_31] : memref<1x512xf32, #tpu.memory_space<vmem>>, vector<1x512xf32>
      %54 = arith.addf %52, %53 : vector<1x512xf32>
      %cst_32 = arith.constant 0.000000e+00 : f32
      %55 = vector.broadcast %cst_32 : f32 to vector<1x512xf32>
      %56 = arith.maximumf %54, %55 : vector<1x512xf32>
      %c0_33 = arith.constant 0 : index
      %c0_34 = arith.constant 0 : index
      %57 = vector.load %arg11[%c0_33, %c0_34] : memref<512x256xf32, #tpu.memory_space<vmem>>, vector<512x256xf32>
      %cst_35 = arith.constant dense<0.000000e+00> : vector<1x256xf32>
      %58 = tpu.matmul %56, %57, %cst_35 {dimension_numbers = #tpu.dot_dimension_numbers<[1], [0], [0], [1], [0, 0, 1, 1], [], []>} : vector<1x512xf32>, vector<512x256xf32>, vector<1x256xf32> -> vector<1x256xf32>
      %c0_36 = arith.constant 0 : index
      %c0_37 = arith.constant 0 : index
      %59 = vector.load %arg12[%c0_36, %c0_37] : memref<1x256xf32, #tpu.memory_space<vmem>>, vector<1x256xf32>
      %60 = arith.addf %58, %59 : vector<1x256xf32>
      %cst_38 = arith.constant 0.000000e+00 : f32
      %61 = vector.broadcast %cst_38 : f32 to vector<1x256xf32>
      %62 = arith.maximumf %60, %61 : vector<1x256xf32>
      %c0_39 = arith.constant 0 : index
      %c0_40 = arith.constant 0 : index
      %63 = vector.load %arg13[%c0_39, %c0_40] : memref<256x4xf32, #tpu.memory_space<vmem>>, vector<256x4xf32>
      %cst_41 = arith.constant dense<0.000000e+00> : vector<1x4xf32>
      %64 = tpu.matmul %62, %63, %cst_41 {dimension_numbers = #tpu.dot_dimension_numbers<[1], [0], [0], [1], [0, 0, 1, 1], [], []>} : vector<1x256xf32>, vector<256x4xf32>, vector<1x4xf32> -> vector<1x4xf32>
      %c0_42 = arith.constant 0 : index
      %c0_43 = arith.constant 0 : index
      %65 = vector.load %arg14[%c0_42, %c0_43] : memref<1x4xf32, #tpu.memory_space<vmem>>, vector<1x4xf32>
      %66 = arith.addf %64, %65 : vector<1x4xf32>
      %c0_44 = arith.constant 0 : index
      %c0_45 = arith.constant 0 : index
      %c0_46 = arith.constant 0 : index
      %67 = vector.load %arg15[%c0_44, %c0_45, %c0_46] : memref<1x1x4xf32, #tpu.memory_space<vmem>>, vector<1x1x4xf32>
      %68 = vector.shape_cast %67 : vector<1x1x4xf32> to vector<1x4xf32>
      %69 = vector.shape_cast %66 : vector<1x4xf32> to vector<1x1x4xf32>
      tpu.vector_store %arg15[%c0_44, %c0_45, %c0_46], %69 {strides = array<i32>} : memref<1x1x4xf32, #tpu.memory_space<vmem>>, vector<1x1x4xf32>,
    } else {
    }
    return
  }
  func.func @transform_0(%arg0: i32, %arg1: i32) -> (i32, i32, i32) {
    %c0_i32 = arith.constant 0 : i32
    %c0_i32_0 = arith.constant 0 : i32
    return %arg0, %arg1, %c0_i32 : i32, i32, i32
  }
  func.func @transform_1(%arg0: i32, %arg1: i32) -> (i32, i32) {
    %c0_i32 = arith.constant 0 : i32
    %c0_i32_0 = arith.constant 0 : i32
    %c0_i32_1 = arith.constant 0 : i32
    return %c0_i32, %c0_i32_0 : i32, i32
  }
  func.func @transform_2(%arg0: i32, %arg1: i32) -> (i32, i32) {
    %c0_i32 = arith.constant 0 : i32
    %c0_i32_0 = arith.constant 0 : i32
    %c0_i32_1 = arith.constant 0 : i32
    return %c0_i32, %c0_i32_0 : i32, i32
  }
  func.func @transform_3(%arg0: i32, %arg1: i32) -> (i32, i32) {
    %c0_i32 = arith.constant 0 : i32
    %c0_i32_0 = arith.constant 0 : i32
    %c0_i32_1 = arith.constant 0 : i32
    return %c0_i32, %c0_i32_0 : i32, i32
  }
  func.func @transform_4(%arg0: i32, %arg1: i32) -> (i32, i32) {
    %c0_i32 = arith.constant 0 : i32
    %c0_i32_0 = arith.constant 0 : i32
    %c0_i32_1 = arith.constant 0 : i32
    return %c0_i32, %c0_i32_0 : i32, i32
  }
  func.func @transform_5(%arg0: i32, %arg1: i32) -> (i32, i32) {
    %c0_i32 = arith.constant 0 : i32
    %c0_i32_0 = arith.constant 0 : i32
    %c0_i32_1 = arith.constant 0 : i32
    return %c0_i32, %c0_i32_0 : i32, i32
  }
  func.func @transform_6(%arg0: i32, %arg1: i32) -> (i32, i32) {
    %c0_i32 = arith.constant 0 : i32
    %c0_i32_0 = arith.constant 0 : i32
    %c0_i32_1 = arith.constant 0 : i32
    return %c0_i32, %c0_i32_0 : i32, i32
  }
  func.func @transform_7(%arg0: i32, %arg1: i32) -> (i32, i32) {
    %c0_i32 = arith.constant 0 : i32
    %c0_i32_0 = arith.constant 0 : i32
    %c0_i32_1 = arith.constant 0 : i32
    return %c0_i32, %c0_i32_0 : i32, i32
  }
  func.func @transform_8(%arg0: i32, %arg1: i32) -> (i32, i32) {
    %c0_i32 = arith.constant 0 : i32
    %c0_i32_0 = arith.constant 0 : i32
    %c0_i32_1 = arith.constant 0 : i32
    return %c0_i32, %c0_i32_0 : i32, i32
  }
  func.func @transform_9(%arg0: i32, %arg1: i32) -> (i32, i32) {
    %c0_i32 = arith.constant 0 : i32
    %c0_i32_0 = arith.constant 0 : i32
    %c0_i32_1 = arith.constant 0 : i32
    return %c0_i32, %c0_i32_0 : i32, i32
  }
  func.func @transform_10(%arg0: i32, %arg1: i32) -> (i32, i32) {
    %c0_i32 = arith.constant 0 : i32
    %c0_i32_0 = arith.constant 0 : i32
    %c0_i32_1 = arith.constant 0 : i32
    return %c0_i32, %c0_i32_0 : i32, i32
  }
  func.func @transform_11(%arg0: i32, %arg1: i32) -> (i32, i32) {
    %c0_i32 = arith.constant 0 : i32
    %c0_i32_0 = arith.constant 0 : i32
    %c0_i32_1 = arith.constant 0 : i32
    return %c0_i32, %c0_i32_0 : i32, i32
  }
  func.func @transform_12(%arg0: i32, %arg1: i32) -> (i32, i32) {
    %c0_i32 = arith.constant 0 : i32
    %c0_i32_0 = arith.constant 0 : i32
    %c0_i32_1 = arith.constant 0 : i32
    return %c0_i32, %c0_i32_0 : i32, i32
  }
  func.func @transform_13(%arg0: i32, %arg1: i32) -> (i32, i32, i32) {
    %c0_i32 = arith.constant 0 : i32
    %c0_i32_0 = arith.constant 0 : i32
    %c0_i32_1 = arith.constant 0 : i32
    return %arg0, %c0_i32, %c0_i32_0 : i32, i32, i32
  }
}

</mosaic_0001>

<llo_original>
// kernel: tpu_custom_call.1
$region0: #{tpu_custom_call.1}
  #allocation0 [shape = 'u32[]', space=smem, size = 0x4, offset = 0x4, fixed_abs, tag = 'smem constant byte address 0x4 - core index']
  #allocation1 [shape = 'u32[144,128]{1,0:T(1,128)}', space=vmem, size = 0x12000, scoped, tag = 'internal scratch']
  #allocation2 [shape = 'f32[1,1024]{1,0:T(1,128)}', space=vmem, size = 0x1000, scoped, tag = 'scratch operand']
  %s0 = inlined_call_operand.vmem [shape: f32[2,512,3], index: 0, kind: input, shape index: {}]
  %s1 = inlined_call_operand.hbm [shape: f32[3,64], index: 1, kind: input, shape index: {}]
  %s2 = inlined_call_operand.hbm [shape: f32[1,64], index: 2, kind: input, shape index: {}]
  %s3 = inlined_call_operand.hbm [shape: f32[64,128], index: 3, kind: input, shape index: {}]
  %s4 = inlined_call_operand.hbm [shape: f32[1,128], index: 4, kind: input, shape index: {}]
  %s5 = inlined_call_operand.hbm [shape: f32[128,1024], index: 5, kind: input, shape index: {}]
  %s6 = inlined_call_operand.hbm [shape: f32[1,1024], index: 6, kind: input, shape index: {}]
  %s7 = inlined_call_operand.hbm [shape: f32[1024,512], index: 7, kind: input, shape index: {}]
  %s8 = inlined_call_operand.hbm [shape: f32[1,512], index: 8, kind: input, shape index: {}]
  %s9 = inlined_call_operand.hbm [shape: f32[512,256], index: 9, kind: input, shape index: {}]
  %s10 = inlined_call_operand.hbm [shape: f32[1,256], index: 10, kind: input, shape index: {}]
  %s11 = inlined_call_operand.vmem [shape: f32[256,4], index: 11, kind: input, shape index: {}]
  %s12 = inlined_call_operand.hbm [shape: f32[1,4], index: 12, kind: input, shape index: {}]
  %s13 = inlined_call_operand.hbm [shape: f32[2,1,4], index: 13, kind: output, shape index: {}]
  %s14 = sld [smem:[#allocation0]]
  $region137: #{tpu_custom_call.1} parent=0
    _
  %s16 = ssub.s32 1, %s14
  %s17 = scalar_select 0, %s16, %s14
  $region1: #{tpu_custom_call.1} parent=0
    #allocation3 [shape = 'u8[2048]{0}', space=vmem, size = 0x800, scoped, tag = 'input window, operand 1, single buffered']
    #allocation4 [shape = 's32[2]{0}', space=sflag, size = 0x8, scoped, tag = 'scoped memory for tpu_custom_call.1']
    #allocation5 [shape = 's32[2]{0}', space=sflag, size = 0x8, scoped, tag = 'scoped memory for tpu_custom_call.1']
    #allocation6 [shape = 'u8[512]{0}', space=vmem, size = 0x400, scoped, tag = 'input window, operand 2, single buffered']
    #allocation7 [shape = 's32[1]{0}', space=sflag, size = 0x4, scoped, tag = 'scoped memory for tpu_custom_call.1']
    #allocation8 [shape = 'u8[32768]{0}', space=vmem, size = 0x8000, scoped, tag = 'input window, operand 3, single buffered']
    #allocation9 [shape = 'u8[512]{0}', space=vmem, size = 0x400, scoped, tag = 'input window, operand 4, single buffered']
    #allocation10 [shape = 's32[1]{0}', space=sflag, size = 0x4, scoped, tag = 'scoped memory for tpu_custom_call.1']
    #allocation11 [shape = 'u8[524288]{0}', space=vmem, size = 0x80000, scoped, tag = 'input window, operand 5, single buffered']
    #allocation12 [shape = 'u8[4096]{0}', space=vmem, size = 0x1000, scoped, tag = 'input window, operand 6, single buffered']
    #allocation13 [shape = 's32[1]{0}', space=sflag, size = 0x4, scoped, tag = 'scoped memory for tpu_custom_call.1']
    #allocation14 [shape = 'u8[2097152]{0}', space=vmem, size = 0x200000, scoped, tag = 'input window, operand 7, single buffered']
    #allocation15 [shape = 'u8[2048]{0}', space=vmem, size = 0x800, scoped, tag = 'input window, operand 8, single buffered']
    #allocation16 [shape = 's32[1]{0}', space=sflag, size = 0x4, scoped, tag = 'scoped memory for tpu_custom_call.1']
    #allocation17 [shape = 'u8[524288]{0}', space=vmem, size = 0x80000, scoped, tag = 'input window, operand 9, single buffered']
    #allocation18 [shape = 'u8[1024]{0}', space=vmem, size = 0x400, scoped, tag = 'input window, operand 10, single buffered']
    #allocation19 [shape = 's32[1]{0}', space=sflag, size = 0x4, scoped, tag = 'scoped memory for tpu_custom_call.1']
    #allocation20 [shape = 'u8[512]{0}', space=vmem, size = 0x400, scoped, tag = 'input window, operand 12, single buffered']
    #allocation21 [shape = 'u8[1024]{0}', space=vmem, size = 0x400, scoped, tag = 'output window, operand 0']
    %18 = vsyncpa [#allocation4], 0
    %19 = vsyncpa [#allocation7], 0
    %20 = vsyncpa [#allocation10], 0
    %21 = vsyncpa [#allocation13], 0
    %22 = vsyncpa [#allocation16], 0
    %23 = vsyncpa [#allocation19], 0
    %24 = vsyncpa [#allocation5], 0
    %s25 = scalar_lea.sflag [#allocation5], 1
    %26 = vsyncpa %s25, 0
    loop: start=0, step=1, limit=6
    $region2: #{tpu_custom_call.1} parent=1 // loop_pre_header
      _
    $region3: #{tpu_custom_call.1} parent=1 // loop_header
      %s28 = sphi 0, %s32
      %p29 = scmp.ge.s32.totalorder %s28, 6
      %s35 = sphi 0, %s47
      %s36 = sphi 0, %s43
      %s37 = sphi 0, %s35
      %s38 = sphi 0, %s36
      %s39 = sphi 0, %s37
      %s40 = sphi 0, %s38
      %s52 = sphi 0, %s54
      %s55 = sphi 0, %s52
      %s56 = sphi 0, %s55
      %s72 = sphi 0, %s56
      %s76 = sphi 0, %s76
      %s78 = sphi 0, %s76
      %s79 = sphi 0, %s78
      %s93 = sphi 0, %s79
      %s97 = sphi 0, %s97
      %s99 = sphi 0, %s97
      %s100 = sphi 0, %s99
      %s114 = sphi 0, %s100
      %s118 = sphi 0, %s118
      %s120 = sphi 0, %s118
      %s121 = sphi 0, %s120
      %s135 = sphi 0, %s121
      %s139 = sphi 0, %s139
      %s141 = sphi 0, %s139
      %s142 = sphi 0, %s141
      %s156 = sphi 0, %s142
      %s160 = sphi 0, %s160
      %s162 = sphi 0, %s160
      %s163 = sphi 0, %s162
      %s177 = sphi 0, %s163
      %s181 = sphi 0, %s181
      %s183 = sphi 0, %s181
      %s184 = sphi 0, %s183
      %s198 = sphi 0, %s184
      %s202 = sphi 0, %s202
      %s204 = sphi 0, %s202
      %s205 = sphi 0, %s204
      %s219 = sphi 0, %s205
      %s223 = sphi 0, %s223
      %s225 = sphi 0, %s223
      %s226 = sphi 0, %s225
      %s240 = sphi 0, %s226
      %s244 = sphi 0, %s244
      %s246 = sphi 0, %s244
      %s247 = sphi 0, %s246
      %s261 = sphi 0, %s247
      %s265 = sphi 0, %s265
      %s267 = sphi 0, %s265
      %s268 = sphi 0, %s267
      %s282 = sphi 0, %s268
      %s286 = sphi 0, %s286
      %s288 = sphi 0, %s286
      %s289 = sphi 0, %s288
      %s303 = sphi 0, %s289
      %s307 = sphi 0, %s307
      %s309 = sphi 0, %s307
      %s310 = sphi 0, %s309
      %s324 = sphi 0, %s310
      %s330 = sphi 0, %s332
      %s333 = sphi 0, %s330
      %s334 = sphi 0, %s333
      %s350 = sphi 0, %s334
    $region4: #{tpu_custom_call.1} parent=1 // loop_header_branch
      %31 = sbr.rel (%p29) target = $region8
    $region5: #{tpu_custom_call.1} parent=1 // loop_body
      %s33 = ssub.s32 %s28, 1
      %s34 = ssub.s32 %s28, 2
      %s41 = sadd.s32 1, %s36
      %p42 = scmp.ge.s32.totalorder %s41, 2
      %s43 = scalar_select %p42, 0, %s41
      %s44 = sadd.s32 1, %s35
      %s45 = scalar_select %p42, %s44, %s35
      %p46 = scmp.ge.s32.totalorder %s45, 2
      %s47 = scalar_select %p46, 0, %s45
      %s48 = ssub.s32 %s35, %s47
      %s49 = ssub.s32 %s36, %s43
      %s50 = sor.u32 %s48, %s49
      %p51 = scmp.eq.s32.totalorder %s50, 0
      %s53 = sadd.s32 %s52, 1
      %s54 = scalar_select %p51, %s52, %s53
      %p57 = pneg %p51
      %p58 = scmp.eq.s32.totalorder %s28, 3
      %p59 = por %p57, %p58
      %p60 = scmp.ne.s32.totalorder %s52, %s55
      %p61 = scmp.eq.s32.totalorder %s28, 0
      %p62 = por %p60, %p61
      %p63 = scmp.ne.s32.totalorder %s52, %s55
      %p64 = scmp.eq.s32.totalorder %s33, 3
      %p65 = por %p63, %p64
      %p66 = scmp.ne.s32.totalorder %s55, %s56
      %p67 = scmp.eq.s32.totalorder %s33, 0
      %p68 = por %p66, %p67
      %p69 = scmp.ne.s32.totalorder %s55, %s56
      %p70 = scmp.eq.s32.totalorder %s34, 3
      %p71 = por %p69, %p70
      %p73 = scmp.ne.s32.totalorder %s56, %s72
      %p74 = scmp.eq.s32.totalorder %s34, 0
      %p75 = por %p73, %p74
      %s77 = sadd.s32 %s76, 1
      %p80 = scmp.eq.s32.totalorder %s28, 3
      %p81 = scmp.ne.s32.totalorder %s76, %s78
      %p82 = scmp.eq.s32.totalorder %s28, 0
      %p83 = por %p81, %p82
      %p84 = scmp.ne.s32.totalorder %s76, %s78
      %p85 = scmp.eq.s32.totalorder %s33, 3
      %p86 = por %p84, %p85
      %p87 = scmp.ne.s32.totalorder %s78, %s79
      %p88 = scmp.eq.s32.totalorder %s33, 0
      %p89 = por %p87, %p88
      %p90 = scmp.ne.s32.totalorder %s78, %s79
      %p91 = scmp.eq.s32.totalorder %s34, 3
      %p92 = por %p90, %p91
      %p94 = scmp.ne.s32.totalorder %s79, %s93
      %p95 = scmp.eq.s32.totalorder %s34, 0
      %p96 = por %p94, %p95
      %s98 = sadd.s32 %s97, 1
      %p101 = scmp.eq.s32.totalorder %s28, 3
      %p102 = scmp.ne.s32.totalorder %s97, %s99
      %p103 = scmp.eq.s32.totalorder %s28, 0
      %p104 = por %p102, %p103
      %p105 = scmp.ne.s32.totalorder %s97, %s99
      %p106 = scmp.eq.s32.totalorder %s33, 3
      %p107 = por %p105, %p106
      %p108 = scmp.ne.s32.totalorder %s99, %s100
      %p109 = scmp.eq.s32.totalorder %s33, 0
      %p110 = por %p108, %p109
      %p111 = scmp.ne.s32.totalorder %s99, %s100
      %p112 = scmp.eq.s32.totalorder %s34, 3
      %p113 = por %p111, %p112
      %p115 = scmp.ne.s32.totalorder %s100, %s114
      %p116 = scmp.eq.s32.totalorder %s34, 0
      %p117 = por %p115, %p116
      %s119 = sadd.s32 %s118, 1
      %p122 = scmp.eq.s32.totalorder %s28, 3
      %p123 = scmp.ne.s32.totalorder %s118, %s120
      %p124 = scmp.eq.s32.totalorder %s28, 0
      %p125 = por %p123, %p124
      %p126 = scmp.ne.s32.totalorder %s118, %s120
      %p127 = scmp.eq.s32.totalorder %s33, 3
      %p128 = por %p126, %p127
      %p129 = scmp.ne.s32.totalorder %s120, %s121
      %p130 = scmp.eq.s32.totalorder %s33, 0
      %p131 = por %p129, %p130
      %p132 = scmp.ne.s32.totalorder %s120, %s121
      %p133 = scmp.eq.s32.totalorder %s34, 3
      %p134 = por %p132, %p133
      %p136 = scmp.ne.s32.totalorder %s121, %s135
      %p137 = scmp.eq.s32.totalorder %s34, 0
      %p138 = por %p136, %p137
      %s140 = sadd.s32 %s139, 1
      %p143 = scmp.eq.s32.totalorder %s28, 3
      %p144 = scmp.ne.s32.totalorder %s139, %s141
      %p145 = scmp.eq.s32.totalorder %s28, 0
      %p146 = por %p144, %p145
      %p147 = scmp.ne.s32.totalorder %s139, %s141
      %p148 = scmp.eq.s32.totalorder %s33, 3
      %p149 = por %p147, %p148
      %p150 = scmp.ne.s32.totalorder %s141, %s142
      %p151 = scmp.eq.s32.totalorder %s33, 0
      %p152 = por %p150, %p151
      %p153 = scmp.ne.s32.totalorder %s141, %s142
      %p154 = scmp.eq.s32.totalorder %s34, 3
      %p155 = por %p153, %p154
      %p157 = scmp.ne.s32.totalorder %s142, %s156
      %p158 = scmp.eq.s32.totalorder %s34, 0
      %p159 = por %p157, %p158
      %s161 = sadd.s32 %s160, 1
      %p164 = scmp.eq.s32.totalorder %s28, 3
      %p165 = scmp.ne.s32.totalorder %s160, %s162
      %p166 = scmp.eq.s32.totalorder %s28, 0
      %p167 = por %p165, %p166
      %p168 = scmp.ne.s32.totalorder %s160, %s162
      %p169 = scmp.eq.s32.totalorder %s33, 3
      %p170 = por %p168, %p169
      %p171 = scmp.ne.s32.totalorder %s162, %s163
      %p172 = scmp.eq.s32.totalorder %s33, 0
      %p173 = por %p171, %p172
      %p174 = scmp.ne.s32.totalorder %s162, %s163
      %p175 = scmp.eq.s32.totalorder %s34, 3
      %p176 = por %p174, %p175
      %p178 = scmp.ne.s32.totalorder %s163, %s177
      %p179 = scmp.eq.s32.totalorder %s34, 0
      %p180 = por %p178, %p179
      %s182 = sadd.s32 %s181, 1
      %p185 = scmp.eq.s32.totalorder %s28, 3
      %p186 = scmp.ne.s32.totalorder %s181, %s183
      %p187 = scmp.eq.s32.totalorder %s28, 0
      %p188 = por %p186, %p187
      %p189 = scmp.ne.s32.totalorder %s181, %s183
      %p190 = scmp.eq.s32.totalorder %s33, 3
      %p191 = por %p189, %p190
      %p192 = scmp.ne.s32.totalorder %s183, %s184
      %p193 = scmp.eq.s32.totalorder %s33, 0
      %p194 = por %p192, %p193
      %p195 = scmp.ne.s32.totalorder %s183, %s184
      %p196 = scmp.eq.s32.totalorder %s34, 3
      %p197 = por %p195, %p196
      %p199 = scmp.ne.s32.totalorder %s184, %s198
      %p200 = scmp.eq.s32.totalorder %s34, 0
      %p201 = por %p199, %p200
      %s203 = sadd.s32 %s202, 1
      %p206 = scmp.eq.s32.totalorder %s28, 3
      %p207 = scmp.ne.s32.totalorder %s202, %s204
      %p208 = scmp.eq.s32.totalorder %s28, 0
      %p209 = por %p207, %p208
      %p210 = scmp.ne.s32.totalorder %s202, %s204
      %p211 = scmp.eq.s32.totalorder %s33, 3
      %p212 = por %p210, %p211
      %p213 = scmp.ne.s32.totalorder %s204, %s205
      %p214 = scmp.eq.s32.totalorder %s33, 0
      %p215 = por %p213, %p214
      %p216 = scmp.ne.s32.totalorder %s204, %s205
      %p217 = scmp.eq.s32.totalorder %s34, 3
      %p218 = por %p216, %p217
      %p220 = scmp.ne.s32.totalorder %s205, %s219
      %p221 = scmp.eq.s32.totalorder %s34, 0
      %p222 = por %p220, %p221
      %s224 = sadd.s32 %s223, 1
      %p227 = scmp.eq.s32.totalorder %s28, 3
      %p228 = scmp.ne.s32.totalorder %s223, %s225
      %p229 = scmp.eq.s32.totalorder %s28, 0
      %p230 = por %p228, %p229
      %p231 = scmp.ne.s32.totalorder %s223, %s225
      %p232 = scmp.eq.s32.totalorder %s33, 3
      %p233 = por %p231, %p232
      %p234 = scmp.ne.s32.totalorder %s225, %s226
      %p235 = scmp.eq.s32.totalorder %s33, 0
      %p236 = por %p234, %p235
      %p237 = scmp.ne.s32.totalorder %s225, %s226
      %p238 = scmp.eq.s32.totalorder %s34, 3
      %p239 = por %p237, %p238
      %p241 = scmp.ne.s32.totalorder %s226, %s240
      %p242 = scmp.eq.s32.totalorder %s34, 0
      %p243 = por %p241, %p242
      %s245 = sadd.s32 %s244, 1
      %p248 = scmp.eq.s32.totalorder %s28, 3
      %p249 = scmp.ne.s32.totalorder %s244, %s246
      %p250 = scmp.eq.s32.totalorder %s28, 0
      %p251 = por %p249, %p250
      %p252 = scmp.ne.s32.totalorder %s244, %s246
      %p253 = scmp.eq.s32.totalorder %s33, 3
      %p254 = por %p252, %p253
      %p255 = scmp.ne.s32.totalorder %s246, %s247
      %p256 = scmp.eq.s32.totalorder %s33, 0
      %p257 = por %p255, %p256
      %p258 = scmp.ne.s32.totalorder %s246, %s247
      %p259 = scmp.eq.s32.totalorder %s34, 3
      %p260 = por %p258, %p259
      %p262 = scmp.ne.s32.totalorder %s247, %s261
      %p263 = scmp.eq.s32.totalorder %s34, 0
      %p264 = por %p262, %p263
      %s266 = sadd.s32 %s265, 1
      %p269 = scmp.eq.s32.totalorder %s28, 3
      %p270 = scmp.ne.s32.totalorder %s265, %s267
      %p271 = scmp.eq.s32.totalorder %s28, 0
      %p272 = por %p270, %p271
      %p273 = scmp.ne.s32.totalorder %s265, %s267
      %p274 = scmp.eq.s32.totalorder %s33, 3
      %p275 = por %p273, %p274
      %p276 = scmp.ne.s32.totalorder %s267, %s268
      %p277 = scmp.eq.s32.totalorder %s33, 0
      %p278 = por %p276, %p277
      %p279 = scmp.ne.s32.totalorder %s267, %s268
      %p280 = scmp.eq.s32.totalorder %s34, 3
      %p281 = por %p279, %p280
      %p283 = scmp.ne.s32.totalorder %s268, %s282
      %p284 = scmp.eq.s32.totalorder %s34, 0
      %p285 = por %p283, %p284
      %s287 = sadd.s32 %s286, 1
      %p290 = scmp.eq.s32.totalorder %s28, 3
      %p291 = scmp.ne.s32.totalorder %s286, %s288
      %p292 = scmp.eq.s32.totalorder %s28, 0
      %p293 = por %p291, %p292
      %p294 = scmp.ne.s32.totalorder %s286, %s288
      %p295 = scmp.eq.s32.totalorder %s33, 3
      %p296 = por %p294, %p295
      %p297 = scmp.ne.s32.totalorder %s288, %s289
      %p298 = scmp.eq.s32.totalorder %s33, 0
      %p299 = por %p297, %p298
      %p300 = scmp.ne.s32.totalorder %s288, %s289
      %p301 = scmp.eq.s32.totalorder %s34, 3
      %p302 = por %p300, %p301
      %p304 = scmp.ne.s32.totalorder %s289, %s303
      %p305 = scmp.eq.s32.totalorder %s34, 0
      %p306 = por %p304, %p305
      %s308 = sadd.s32 %s307, 1
      %p311 = scmp.eq.s32.totalorder %s28, 3
      %p312 = scmp.ne.s32.totalorder %s307, %s309
      %p313 = scmp.eq.s32.totalorder %s28, 0
      %p314 = por %p312, %p313
      %p315 = scmp.ne.s32.totalorder %s307, %s309
      %p316 = scmp.eq.s32.totalorder %s33, 3
      %p317 = por %p315, %p316
      %p318 = scmp.ne.s32.totalorder %s309, %s310
      %p319 = scmp.eq.s32.totalorder %s33, 0
      %p320 = por %p318, %p319
      %p321 = scmp.ne.s32.totalorder %s309, %s310
      %p322 = scmp.eq.s32.totalorder %s34, 3
      %p323 = por %p321, %p322
      %p325 = scmp.ne.s32.totalorder %s310, %s324
      %p326 = scmp.eq.s32.totalorder %s34, 0
      %p327 = por %p325, %p326
      %s328 = ssub.s32 %s35, %s47
      %p329 = scmp.eq.s32.totalorder %s328, 0
      %s331 = sadd.s32 %s330, 1
      %s332 = scalar_select %p329, %s330, %s331
      %p335 = pneg %p329
      %p336 = scmp.eq.s32.totalorder %s28, 3
      %p337 = por %p335, %p336
      %p338 = scmp.ne.s32.totalorder %s330, %s333
      %p339 = scmp.eq.s32.totalorder %s28, 0
      %p340 = por %p338, %p339
      %p341 = scmp.ne.s32.totalorder %s330, %s333
      %p342 = scmp.eq.s32.totalorder %s33, 3
      %p343 = por %p341, %p342
      %p344 = scmp.ne.s32.totalorder %s333, %s334
      %p345 = scmp.eq.s32.totalorder %s33, 0
      %p346 = por %p344, %p345
      %p347 = scmp.ne.s32.totalorder %s333, %s334
      %p348 = scmp.eq.s32.totalorder %s34, 3
      %p349 = por %p347, %p348
      %p351 = scmp.ne.s32.totalorder %s334, %s350
      %p352 = scmp.eq.s32.totalorder %s34, 0
      %p353 = por %p351, %p352
      %p354 = scmp.le.s32.totalorder 1, %s28
      %p355 = scmp.lt.s32.totalorder %s28, 5
      %p356 = pnand %p354, %p355
      %p357 = pneg %p356
      // Predicated region
      $region9: #{tpu_custom_call.1} parent=5 // pred_check
        _
      $region10: #{tpu_custom_call.1} parent=5 // pred_check_branch
        %359 = sbr.rel (%p356) target = $region12
      $region11: #{tpu_custom_call.1} parent=5 // pred_region
        %s360 = ssub.s32 %s28, 1
        // Predicated region
        $region13: #{tpu_custom_call.1} parent=11 // pred_check
          %p361 = pneg %p89
        $region14: #{tpu_custom_call.1} parent=11 // pred_check_branch
          %363 = sbr.rel (%p361) target = $region16
        $region15: #{tpu_custom_call.1} parent=11 // pred_region
          %s365 = ssub.s32 64, 64
          %366 = vsyncadd [#allocation4], %s365
          %s368 = sshll.u32 [#allocation3], 4
          %s369 = int_to_ptr.vmem [resolvable:$true] %s368
          %371 = dma.hbm_to_vmem [thread:$0]  %s1, 64, %s369, [#allocation4]
        $region16: #{tpu_custom_call.1} parent=11 // pred_fallthru
          _
        // Predicated region
        $region17: #{tpu_custom_call.1} parent=11 // pred_check
          %p372 = pneg %p110
        $region18: #{tpu_custom_call.1} parent=11 // pred_check_branch
          %374 = sbr.rel (%p372) target = $region20
        $region19: #{tpu_custom_call.1} parent=11 // pred_region
          %s376 = ssub.s32 16, 16
          %377 = vsyncadd [#allocation7], %s376
          %s379 = sshll.u32 [#allocation6], 4
          %s380 = int_to_ptr.vmem [resolvable:$true] %s379
          %382 = dma.hbm_to_vmem [thread:$0]  %s2, 16, %s380, [#allocation7]
        $region20: #{tpu_custom_call.1} parent=11 // pred_fallthru
          _
        // Predicated region
        $region21: #{tpu_custom_call.1} parent=11 // pred_check
          %p383 = pneg %p131
        $region22: #{tpu_custom_call.1} parent=11 // pred_check_branch
          %385 = sbr.rel (%p383) target = $region24
        $region23: #{tpu_custom_call.1} parent=11 // pred_region
          %s387 = ssub.s32 1024, 1024
          %388 = vsyncadd [#allocation7], %s387
          %s389 = sshll.u32 [#allocation8], 4
          %s390 = int_to_ptr.vmem [resolvable:$true] %s389
          %395 = dma.hbm_to_vmem [thread:$0]  %s3, 1024, %s390, [#allocation7], 128, 128, 8
        $region24: #{tpu_custom_call.1} parent=11 // pred_fallthru
          _
        // Predicated region
        $region25: #{tpu_custom_call.1} parent=11 // pred_check
          %p396 = pneg %p152
        $region26: #{tpu_custom_call.1} parent=11 // pred_check_branch
          %398 = sbr.rel (%p396) target = $region28
        $region27: #{tpu_custom_call.1} parent=11 // pred_region
          %s400 = ssub.s32 16, 16
          %401 = vsyncadd [#allocation10], %s400
          %s403 = sshll.u32 [#allocation9], 4
          %s404 = int_to_ptr.vmem [resolvable:$true] %s403
          %406 = dma.hbm_to_vmem [thread:$0]  %s4, 16, %s404, [#allocation10]
        $region28: #{tpu_custom_call.1} parent=11 // pred_fallthru
          _
        // Predicated region
        $region29: #{tpu_custom_call.1} parent=11 // pred_check
          %p407 = pneg %p173
        $region30: #{tpu_custom_call.1} parent=11 // pred_check_branch
          %409 = sbr.rel (%p407) target = $region32
        $region31: #{tpu_custom_call.1} parent=11 // pred_region
          %s411 = ssub.s32 16384, 16384
          %412 = vsyncadd [#allocation10], %s411
          %s413 = sshll.u32 [#allocation11], 4
          %s414 = int_to_ptr.vmem [resolvable:$true] %s413
          %419 = dma.hbm_to_vmem [thread:$0]  %s5, 16384, %s414, [#allocation10], 1024, 1024, 64
        $region32: #{tpu_custom_call.1} parent=11 // pred_fallthru
          _
        // Predicated region
        $region33: #{tpu_custom_call.1} parent=11 // pred_check
          %p420 = pneg %p194
        $region34: #{tpu_custom_call.1} parent=11 // pred_check_branch
          %422 = sbr.rel (%p420) target = $region36
        $region35: #{tpu_custom_call.1} parent=11 // pred_region
          %s424 = ssub.s32 128, 128
          %425 = vsyncadd [#allocation13], %s424
          %s427 = sshll.u32 [#allocation12], 4
          %s428 = int_to_ptr.vmem [resolvable:$true] %s427
          %430 = dma.hbm_to_vmem [thread:$0]  %s6, 128, %s428, [#allocation13]
        $region36: #{tpu_custom_call.1} parent=11 // pred_fallthru
          _
        // Predicated region
        $region37: #{tpu_custom_call.1} parent=11 // pred_check
          %p431 = pneg %p215
        $region38: #{tpu_custom_call.1} parent=11 // pred_check_branch
          %433 = sbr.rel (%p431) target = $region40
        $region39: #{tpu_custom_call.1} parent=11 // pred_region
          %s435 = ssub.s32 65536, 65536
          %436 = vsyncadd [#allocation13], %s435
          %s437 = sshll.u32 [#allocation14], 4
          %s438 = int_to_ptr.vmem [resolvable:$true] %s437
          %443 = dma.hbm_to_vmem [thread:$0]  %s7, 65536, %s438, [#allocation13], 512, 512, 32
        $region40: #{tpu_custom_call.1} parent=11 // pred_fallthru
          _
        // Predicated region
        $region41: #{tpu_custom_call.1} parent=11 // pred_check
          %p444 = pneg %p236
        $region42: #{tpu_custom_call.1} parent=11 // pred_check_branch
          %446 = sbr.rel (%p444) target = $region44
        $region43: #{tpu_custom_call.1} parent=11 // pred_region
          %s448 = ssub.s32 64, 64
          %449 = vsyncadd [#allocation16], %s448
          %s451 = sshll.u32 [#allocation15], 4
          %s452 = int_to_ptr.vmem [resolvable:$true] %s451
          %454 = dma.hbm_to_vmem [thread:$0]  %s8, 64, %s452, [#allocation16]
        $region44: #{tpu_custom_call.1} parent=11 // pred_fallthru
          _
        // Predicated region
        $region45: #{tpu_custom_call.1} parent=11 // pred_check
          %p455 = pneg %p257
        $region46: #{tpu_custom_call.1} parent=11 // pred_check_branch
          %457 = sbr.rel (%p455) target = $region48
        $region47: #{tpu_custom_call.1} parent=11 // pred_region
          %s459 = ssub.s32 16384, 16384
          %460 = vsyncadd [#allocation16], %s459
          %s461 = sshll.u32 [#allocation17], 4
          %s462 = int_to_ptr.vmem [resolvable:$true] %s461
          %467 = dma.hbm_to_vmem [thread:$0]  %s9, 16384, %s462, [#allocation16], 256, 256, 16
        $region48: #{tpu_custom_call.1} parent=11 // pred_fallthru
          _
        // Predicated region
        $region49: #{tpu_custom_call.1} parent=11 // pred_check
          %p468 = pneg %p278
        $region50: #{tpu_custom_call.1} parent=11 // pred_check_branch
          %470 = sbr.rel (%p468) target = $region52
        $region51: #{tpu_custom_call.1} parent=11 // pred_region
          %s472 = ssub.s32 32, 32
          %473 = vsyncadd [#allocation19], %s472
          %s475 = sshll.u32 [#allocation18], 4
          %s476 = int_to_ptr.vmem [resolvable:$true] %s475
          %478 = dma.hbm_to_vmem [thread:$0]  %s10, 32, %s476, [#allocation19]
        $region52: #{tpu_custom_call.1} parent=11 // pred_fallthru
          _
        // Predicated region
        $region53: #{tpu_custom_call.1} parent=11 // pred_check
          %p479 = pneg %p299
        $region54: #{tpu_custom_call.1} parent=11 // pred_check_branch
          %481 = sbr.rel (%p479) target = $region56
        $region55: #{tpu_custom_call.1} parent=11 // pred_region
          _
        $region56: #{tpu_custom_call.1} parent=11 // pred_fallthru
          _
        // Predicated region
        $region57: #{tpu_custom_call.1} parent=11 // pred_check
          %p482 = pneg %p320
        $region58: #{tpu_custom_call.1} parent=11 // pred_check_branch
          %484 = sbr.rel (%p482) target = $region60
        $region59: #{tpu_custom_call.1} parent=11 // pred_region
          %s486 = ssub.s32 16, 16
          %487 = vsyncadd [#allocation19], %s486
          %s489 = sshll.u32 [#allocation20], 4
          %s490 = int_to_ptr.vmem [resolvable:$true] %s489
          %492 = dma.hbm_to_vmem [thread:$0]  %s12, 16, %s490, [#allocation19]
        $region60: #{tpu_custom_call.1} parent=11 // pred_fallthru
          _
      $region12: #{tpu_custom_call.1} parent=5 // pred_fallthru
        _
      %p493 = scmp.lt.s32.totalorder %s28, 4
      // Predicated region
      $region61: #{tpu_custom_call.1} parent=5 // pred_check
        %p494 = pneg %p493
      $region62: #{tpu_custom_call.1} parent=5 // pred_check_branch
        %496 = sbr.rel (%p494) target = $region64
      $region63: #{tpu_custom_call.1} parent=5 // pred_region
        // Predicated region
        $region65: #{tpu_custom_call.1} parent=63 // pred_check
          %p497 = pneg %p62
        $region66: #{tpu_custom_call.1} parent=63 // pred_check_branch
          %499 = sbr.rel (%p497) target = $region68
        $region67: #{tpu_custom_call.1} parent=63 // pred_region
          %s500 = smul.u32 32, %s36
          %p501 = scmp.lt.s32.totalorder %s35, 1
          %s502 = scalar_select %p501, %s35, 1
          %p503 = scmp.lt.s32.totalorder %s500, 63
          %s504 = scalar_select %p503, %s500, 63
          %s505 = smul.addr %s502, 64
          %s506 = sadd.s32 %s504, %s505
          %s507 = smul.addr %s506, 8
          %s508 = scalar_lea.vmem %s0, %s507
          %s509 = smul.u32 32, %s36
        $region68: #{tpu_custom_call.1} parent=63 // pred_fallthru
          _
      $region64: #{tpu_custom_call.1} parent=5 // pred_fallthru
        _
      %p510 = scmp.le.s32.totalorder 1, %s28
      %p511 = scmp.lt.s32.totalorder %s28, 5
      %p512 = pnand %p510, %p511
      %p513 = pneg %p512
      // Predicated region
      $region69: #{tpu_custom_call.1} parent=5 // pred_check
        _
      $region70: #{tpu_custom_call.1} parent=5 // pred_check_branch
        %515 = sbr.rel (%p512) target = $region72
      $region71: #{tpu_custom_call.1} parent=5 // pred_region
        %s516 = ssub.s32 %s28, 1
        // Predicated region
        $region73: #{tpu_custom_call.1} parent=71 // pred_check
          %p517 = pneg %p89
        $region74: #{tpu_custom_call.1} parent=71 // pred_check_branch
          %519 = sbr.rel (%p517) target = $region76
        $region75: #{tpu_custom_call.1} parent=71 // pred_region
          %520 = dma.done [#allocation4], 64
        $region76: #{tpu_custom_call.1} parent=71 // pred_fallthru
          _
        // Predicated region
        $region77: #{tpu_custom_call.1} parent=71 // pred_check
          %p521 = pneg %p110
        $region78: #{tpu_custom_call.1} parent=71 // pred_check_branch
          %523 = sbr.rel (%p521) target = $region80
        $region79: #{tpu_custom_call.1} parent=71 // pred_region
          %524 = dma.done [#allocation7], 16
        $region80: #{tpu_custom_call.1} parent=71 // pred_fallthru
          _
        // Predicated region
        $region81: #{tpu_custom_call.1} parent=71 // pred_check
          %p525 = pneg %p131
        $region82: #{tpu_custom_call.1} parent=71 // pred_check_branch
          %527 = sbr.rel (%p525) target = $region84
        $region83: #{tpu_custom_call.1} parent=71 // pred_region
          %528 = dma.done [#allocation7], 1024
        $region84: #{tpu_custom_call.1} parent=71 // pred_fallthru
          _
        // Predicated region
        $region85: #{tpu_custom_call.1} parent=71 // pred_check
          %p529 = pneg %p152
        $region86: #{tpu_custom_call.1} parent=71 // pred_check_branch
          %531 = sbr.rel (%p529) target = $region88
        $region87: #{tpu_custom_call.1} parent=71 // pred_region
          %532 = dma.done [#allocation10], 16
        $region88: #{tpu_custom_call.1} parent=71 // pred_fallthru
          _
        // Predicated region
        $region89: #{tpu_custom_call.1} parent=71 // pred_check
          %p533 = pneg %p173
        $region90: #{tpu_custom_call.1} parent=71 // pred_check_branch
          %535 = sbr.rel (%p533) target = $region92
        $region91: #{tpu_custom_call.1} parent=71 // pred_region
          %536 = dma.done [#allocation10], 16384
        $region92: #{tpu_custom_call.1} parent=71 // pred_fallthru
          _
        // Predicated region
        $region93: #{tpu_custom_call.1} parent=71 // pred_check
          %p537 = pneg %p194
        $region94: #{tpu_custom_call.1} parent=71 // pred_check_branch
          %539 = sbr.rel (%p537) target = $region96
        $region95: #{tpu_custom_call.1} parent=71 // pred_region
          %540 = dma.done [#allocation13], 128
        $region96: #{tpu_custom_call.1} parent=71 // pred_fallthru
          _
        // Predicated region
        $region97: #{tpu_custom_call.1} parent=71 // pred_check
          %p541 = pneg %p215
        $region98: #{tpu_custom_call.1} parent=71 // pred_check_branch
          %543 = sbr.rel (%p541) target = $region100
        $region99: #{tpu_custom_call.1} parent=71 // pred_region
          %544 = dma.done [#allocation13], 65536
        $region100: #{tpu_custom_call.1} parent=71 // pred_fallthru
          _
        // Predicated region
        $region101: #{tpu_custom_call.1} parent=71 // pred_check
          %p545 = pneg %p236
        $region102: #{tpu_custom_call.1} parent=71 // pred_check_branch
          %547 = sbr.rel (%p545) target = $region104
        $region103: #{tpu_custom_call.1} parent=71 // pred_region
          %548 = dma.done [#allocation16], 64
        $region104: #{tpu_custom_call.1} parent=71 // pred_fallthru
          _
        // Predicated region
        $region105: #{tpu_custom_call.1} parent=71 // pred_check
          %p549 = pneg %p257
        $region106: #{tpu_custom_call.1} parent=71 // pred_check_branch
          %551 = sbr.rel (%p549) target = $region108
        $region107: #{tpu_custom_call.1} parent=71 // pred_region
          %552 = dma.done [#allocation16], 16384
        $region108: #{tpu_custom_call.1} parent=71 // pred_fallthru
          _
        // Predicated region
        $region109: #{tpu_custom_call.1} parent=71 // pred_check
          %p553 = pneg %p278
        $region110: #{tpu_custom_call.1} parent=71 // pred_check_branch
          %555 = sbr.rel (%p553) target = $region112
        $region111: #{tpu_custom_call.1} parent=71 // pred_region
          %556 = dma.done [#allocation19], 32
        $region112: #{tpu_custom_call.1} parent=71 // pred_fallthru
          _
        // Predicated region
        $region113: #{tpu_custom_call.1} parent=71 // pred_check
          %p557 = pneg %p320
        $region114: #{tpu_custom_call.1} parent=71 // pred_check_branch
          %559 = sbr.rel (%p557) target = $region116
        $region115: #{tpu_custom_call.1} parent=71 // pred_region
          %560 = dma.done [#allocation19], 16
        $region116: #{tpu_custom_call.1} parent=71 // pred_fallthru
          _
        %s561 = smul.u32 32, %s38
        %p562 = scmp.lt.s32.totalorder %s37, 1
        %s563 = scalar_select %p562, %s37, 1
        %p564 = scmp.lt.s32.totalorder %s561, 63
        %s565 = scalar_select %p564, %s561, 63
        %s566 = smul.addr %s563, 64
        %s567 = sadd.s32 %s565, %s566
        %s568 = smul.addr %s567, 8
        %s569 = scalar_lea.vmem %s0, %s568
        %p570 = pneg %p68
        %p571 = pneg %p65
        %p572 = pneg %p89
        %p573 = pneg %p86
        %p574 = pneg %p110
        %p575 = pneg %p107
        %p576 = pneg %p131
        %p577 = pneg %p128
        %p578 = pneg %p152
        %p579 = pneg %p149
        %p580 = pneg %p173
        %p581 = pneg %p170
        %p582 = pneg %p194
        %p583 = pneg %p191
        %p584 = pneg %p215
        %p585 = pneg %p212
        %p586 = pneg %p236
        %p587 = pneg %p233
        %p588 = pneg %p257
        %p589 = pneg %p254
        %p590 = pneg %p278
        %p591 = pneg %p275
        %p592 = pneg %p299
        %p593 = pneg %p296
        %p594 = pneg %p320
        %p595 = pneg %p317
        %p596 = pneg %p346
        %p597 = pneg %p343
        %s598 = sand.u32 %s333, 1
        %s599 = scalar_lea.sflag [#allocation5], %s598
        %s600 = sand.u32 %s333, 1
        %s601 = scalar_lea.vmem [#allocation21], %s600
        %s602 = smul.u32 32, %s38
        %p603 = scmp.lt.s32.totalorder %s37, 1
        %s604 = scalar_select %p603, %s37, 1
        %p605 = scmp.lt.s32.totalorder %s602, 63
        %s606 = scalar_select %p605, %s602, 63
        %s607 = smul.addr %s604, 64
        %s608 = sadd.s32 %s606, %s607
        %s609 = smul.addr %s608, 8
        %s610 = scalar_lea.vmem %s0, %s609
        %s611 = smul.u32 32, %s38
        %p612 = scmp.eq.s32.totalorder %s38, 0
        // Predicated region
        $region117: #{tpu_custom_call.1} parent=71 // pred_check
          %p613 = pneg %p612
        $region118: #{tpu_custom_call.1} parent=71 // pred_check_branch
          %615 = sbr.rel (%p613) target = $region120
        $region119: #{tpu_custom_call.1} parent=71 // pred_region
          %616 = vst [vmem:[#allocation2] sm:$0xff] -inf
        $region120: #{tpu_custom_call.1} parent=71 // pred_fallthru
          _
        %v617 = vld [vmem:[%s610] sm:$0xff]
        %v618 = vld [vmem:[%s610 + $0x8] sm:$0xff]
        %v619 = vld [vmem:[%s610 + $0x10] sm:$0xff]
        %v620 = vld [vmem:[%s610 + $0x18] sm:$0xff]
        %v621 = vld [vmem:[%s610 + $0x20] sm:$0xff]
        %v622 = vld [vmem:[%s610 + $0x28] sm:$0xff]
        %v623 = vld [vmem:[%s610 + $0x30] sm:$0xff]
        %v624 = vld [vmem:[%s610 + $0x38] sm:$0xff]
        %v625 = vld [vmem:[%s610 + $0x40] sm:$0xff]
        %v626 = vld [vmem:[%s610 + $0x48] sm:$0xff]
        %v627 = vld [vmem:[%s610 + $0x50] sm:$0xff]
        %v628 = vld [vmem:[%s610 + $0x58] sm:$0xff]
        %v629 = vld [vmem:[%s610 + $0x60] sm:$0xff]
        %v630 = vld [vmem:[%s610 + $0x68] sm:$0xff]
        %v631 = vld [vmem:[%s610 + $0x70] sm:$0xff]
        %v632 = vld [vmem:[%s610 + $0x78] sm:$0xff]
        %v633 = vld [vmem:[%s610 + $0x80] sm:$0xff]
        %v634 = vld [vmem:[%s610 + $0x88] sm:$0xff]
        %v635 = vld [vmem:[%s610 + $0x90] sm:$0xff]
        %v636 = vld [vmem:[%s610 + $0x98] sm:$0xff]
        %v637 = vld [vmem:[%s610 + $0xa0] sm:$0xff]
        %v638 = vld [vmem:[%s610 + $0xa8] sm:$0xff]
        %v639 = vld [vmem:[%s610 + $0xb0] sm:$0xff]
        %v640 = vld [vmem:[%s610 + $0xb8] sm:$0xff]
        %v641 = vld [vmem:[%s610 + $0xc0] sm:$0xff]
        %v642 = vld [vmem:[%s610 + $0xc8] sm:$0xff]
        %v643 = vld [vmem:[%s610 + $0xd0] sm:$0xff]
        %v644 = vld [vmem:[%s610 + $0xd8] sm:$0xff]
        %v645 = vld [vmem:[%s610 + $0xe0] sm:$0xff]
        %v646 = vld [vmem:[%s610 + $0xe8] sm:$0xff]
        %v647 = vld [vmem:[%s610 + $0xf0] sm:$0xff]
        %v648 = vld [vmem:[%s610 + $0xf8] sm:$0xff]
        %v649 = vld [vmem:[#allocation3] sm:$0x7]
        %651 = vset.pattern.permute.xlu0 0
        %652 = vperm.xlu0 %651, %v617
        %v653 = vpop.permute.xlu0 %652
        %656 = vset.pattern.permute.xlu0 0
        %657 = vperm.xlu0 %656, %v618
        %v658 = vpop.permute.xlu0 %657
        %661 = vset.pattern.permute.xlu0 0
        %662 = vperm.xlu0 %661, %v619
        %v663 = vpop.permute.xlu0 %662
        %666 = vset.pattern.permute.xlu0 0
        %667 = vperm.xlu0 %666, %v620
        %v668 = vpop.permute.xlu0 %667
        %671 = vset.pattern.permute.xlu0 0
        %672 = vperm.xlu0 %671, %v621
        %v673 = vpop.permute.xlu0 %672
        %676 = vset.pattern.permute.xlu0 0
        %677 = vperm.xlu0 %676, %v622
        %v678 = vpop.permute.xlu0 %677
        %681 = vset.pattern.permute.xlu0 0
        %682 = vperm.xlu0 %681, %v623
        %v683 = vpop.permute.xlu0 %682
        %686 = vset.pattern.permute.xlu0 0
        %687 = vperm.xlu0 %686, %v624
        %v688 = vpop.permute.xlu0 %687
        %691 = vset.pattern.permute.xlu0 0
        %692 = vperm.xlu0 %691, %v625
        %v693 = vpop.permute.xlu0 %692
        %696 = vset.pattern.permute.xlu0 0
        %697 = vperm.xlu0 %696, %v626
        %v698 = vpop.permute.xlu0 %697
        %701 = vset.pattern.permute.xlu0 0
        %702 = vperm.xlu0 %701, %v627
        %v703 = vpop.permute.xlu0 %702
        %706 = vset.pattern.permute.xlu0 0
        %707 = vperm.xlu0 %706, %v628
        %v708 = vpop.permute.xlu0 %707
        %711 = vset.pattern.permute.xlu0 0
        %712 = vperm.xlu0 %711, %v629
        %v713 = vpop.permute.xlu0 %712
        %716 = vset.pattern.permute.xlu0 0
        %717 = vperm.xlu0 %716, %v630
        %v718 = vpop.permute.xlu0 %717
        %721 = vset.pattern.permute.xlu0 0
        %722 = vperm.xlu0 %721, %v631
        %v723 = vpop.permute.xlu0 %722
        %726 = vset.pattern.permute.xlu0 0
        %727 = vperm.xlu0 %726, %v632
        %v728 = vpop.permute.xlu0 %727
        %731 = vset.pattern.permute.xlu0 0
        %732 = vperm.xlu0 %731, %v633
        %v733 = vpop.permute.xlu0 %732
        %736 = vset.pattern.permute.xlu0 0
        %737 = vperm.xlu0 %736, %v634
        %v738 = vpop.permute.xlu0 %737
        %741 = vset.pattern.permute.xlu0 0
        %742 = vperm.xlu0 %741, %v635
        %v743 = vpop.permute.xlu0 %742
        %746 = vset.pattern.permute.xlu0 0
        %747 = vperm.xlu0 %746, %v636
        %v748 = vpop.permute.xlu0 %747
        %751 = vset.pattern.permute.xlu0 0
        %752 = vperm.xlu0 %751, %v637
        %v753 = vpop.permute.xlu0 %752
        %756 = vset.pattern.permute.xlu0 0
        %757 = vperm.xlu0 %756, %v638
        %v758 = vpop.permute.xlu0 %757
        %761 = vset.pattern.permute.xlu0 0
        %762 = vperm.xlu0 %761, %v639
        %v763 = vpop.permute.xlu0 %762
        %766 = vset.pattern.permute.xlu0 0
        %767 = vperm.xlu0 %766, %v640
        %v768 = vpop.permute.xlu0 %767
        %771 = vset.pattern.permute.xlu0 0
        %772 = vperm.xlu0 %771, %v641
        %v773 = vpop.permute.xlu0 %772
        %776 = vset.pattern.permute.xlu0 0
        %777 = vperm.xlu0 %776, %v642
        %v778 = vpop.permute.xlu0 %777
        %781 = vset.pattern.permute.xlu0 0
        %782 = vperm.xlu0 %781, %v643
        %v783 = vpop.permute.xlu0 %782
        %786 = vset.pattern.permute.xlu0 0
        %787 = vperm.xlu0 %786, %v644
        %v788 = vpop.permute.xlu0 %787
        %791 = vset.pattern.permute.xlu0 0
        %792 = vperm.xlu0 %791, %v645
        %v793 = vpop.permute.xlu0 %792
        %796 = vset.pattern.permute.xlu0 0
        %797 = vperm.xlu0 %796, %v646
        %v798 = vpop.permute.xlu0 %797
        %801 = vset.pattern.permute.xlu0 0
        %802 = vperm.xlu0 %801, %v647
        %v803 = vpop.permute.xlu0 %802
        %806 = vset.pattern.permute.xlu0 0
        %807 = vperm.xlu0 %806, %v648
        %v808 = vpop.permute.xlu0 %807
        %v810 = vlaneseq
        %v811 = vshrl.u32 %v810, 7
        %v812 = vsub.s32 0, %v811
        %v813 = vrot.slane %v649, %v812
        %v814 = vmul.f32 %v653, %v813
        %v815 = vmul.f32 %v658, %v813
        %v816 = vmul.f32 %v663, %v813
        %v817 = vmul.f32 %v668, %v813
        %v818 = vmul.f32 %v673, %v813
        %v819 = vmul.f32 %v678, %v813
        %v820 = vmul.f32 %v683, %v813
        %v821 = vmul.f32 %v688, %v813
        %v822 = vmul.f32 %v693, %v813
        %v823 = vmul.f32 %v698, %v813
        %v824 = vmul.f32 %v703, %v813
        %v825 = vmul.f32 %v708, %v813
        %v826 = vmul.f32 %v713, %v813
        %v827 = vmul.f32 %v718, %v813
        %v828 = vmul.f32 %v723, %v813
        %v829 = vmul.f32 %v728, %v813
        %v830 = vmul.f32 %v733, %v813
        %v831 = vmul.f32 %v738, %v813
        %v832 = vmul.f32 %v743, %v813
        %v833 = vmul.f32 %v748, %v813
        %v834 = vmul.f32 %v753, %v813
        %v835 = vmul.f32 %v758, %v813
        %v836 = vmul.f32 %v763, %v813
        %v837 = vmul.f32 %v768, %v813
        %v838 = vmul.f32 %v773, %v813
        %v839 = vmul.f32 %v778, %v813
        %v840 = vmul.f32 %v783, %v813
        %v841 = vmul.f32 %v788, %v813
        %v842 = vmul.f32 %v793, %v813
        %v843 = vmul.f32 %v798, %v813
        %v844 = vmul.f32 %v803, %v813
        %v845 = vmul.f32 %v808, %v813
        %846 = vset.pattern.permute.xlu0 1
        %847 = vperm.xlu0 %846, %v617
        %v848 = vpop.permute.xlu0 %847
        %850 = vset.pattern.permute.xlu0 1
        %851 = vperm.xlu0 %850, %v618
        %v852 = vpop.permute.xlu0 %851
        %854 = vset.pattern.permute.xlu0 1
        %855 = vperm.xlu0 %854, %v619
        %v856 = vpop.permute.xlu0 %855
        %858 = vset.pattern.permute.xlu0 1
        %859 = vperm.xlu0 %858, %v620
        %v860 = vpop.permute.xlu0 %859
        %862 = vset.pattern.permute.xlu0 1
        %863 = vperm.xlu0 %862, %v621
        %v864 = vpop.permute.xlu0 %863
        %866 = vset.pattern.permute.xlu0 1
        %867 = vperm.xlu0 %866, %v622
        %v868 = vpop.permute.xlu0 %867
        %870 = vset.pattern.permute.xlu0 1
        %871 = vperm.xlu0 %870, %v623
        %v872 = vpop.permute.xlu0 %871
        %874 = vset.pattern.permute.xlu0 1
        %875 = vperm.xlu0 %874, %v624
        %v876 = vpop.permute.xlu0 %875
        %878 = vset.pattern.permute.xlu0 1
        %879 = vperm.xlu0 %878, %v625
        %v880 = vpop.permute.xlu0 %879
        %882 = vset.pattern.permute.xlu0 1
        %883 = vperm.xlu0 %882, %v626
        %v884 = vpop.permute.xlu0 %883
        %886 = vset.pattern.permute.xlu0 1
        %887 = vperm.xlu0 %886, %v627
        %v888 = vpop.permute.xlu0 %887
        %890 = vset.pattern.permute.xlu0 1
        %891 = vperm.xlu0 %890, %v628
        %v892 = vpop.permute.xlu0 %891
        %894 = vset.pattern.permute.xlu0 1
        %895 = vperm.xlu0 %894, %v629
        %v896 = vpop.permute.xlu0 %895
        %898 = vset.pattern.permute.xlu0 1
        %899 = vperm.xlu0 %898, %v630
        %v900 = vpop.permute.xlu0 %899
        %902 = vset.pattern.permute.xlu0 1
        %903 = vperm.xlu0 %902, %v631
        %v904 = vpop.permute.xlu0 %903
        %906 = vset.pattern.permute.xlu0 1
        %907 = vperm.xlu0 %906, %v632
        %v908 = vpop.permute.xlu0 %907
        %910 = vset.pattern.permute.xlu0 1
        %911 = vperm.xlu0 %910, %v633
        %v912 = vpop.permute.xlu0 %911
        %914 = vset.pattern.permute.xlu0 1
        %915 = vperm.xlu0 %914, %v634
        %v916 = vpop.permute.xlu0 %915
        %918 = vset.pattern.permute.xlu0 1
        %919 = vperm.xlu0 %918, %v635
        %v920 = vpop.permute.xlu0 %919
        %922 = vset.pattern.permute.xlu0 1
        %923 = vperm.xlu0 %922, %v636
        %v924 = vpop.permute.xlu0 %923
        %926 = vset.pattern.permute.xlu0 1
        %927 = vperm.xlu0 %926, %v637
        %v928 = vpop.permute.xlu0 %927
        %930 = vset.pattern.permute.xlu0 1
        %931 = vperm.xlu0 %930, %v638
        %v932 = vpop.permute.xlu0 %931
        %934 = vset.pattern.permute.xlu0 1
        %935 = vperm.xlu0 %934, %v639
        %v936 = vpop.permute.xlu0 %935
        %938 = vset.pattern.permute.xlu0 1
        %939 = vperm.xlu0 %938, %v640
        %v940 = vpop.permute.xlu0 %939
        %942 = vset.pattern.permute.xlu0 1
        %943 = vperm.xlu0 %942, %v641
        %v944 = vpop.permute.xlu0 %943
        %946 = vset.pattern.permute.xlu0 1
        %947 = vperm.xlu0 %946, %v642
        %v948 = vpop.permute.xlu0 %947
        %950 = vset.pattern.permute.xlu0 1
        %951 = vperm.xlu0 %950, %v643
        %v952 = vpop.permute.xlu0 %951
        %954 = vset.pattern.permute.xlu0 1
        %955 = vperm.xlu0 %954, %v644
        %v956 = vpop.permute.xlu0 %955
        %958 = vset.pattern.permute.xlu0 1
        %959 = vperm.xlu0 %958, %v645
        %v960 = vpop.permute.xlu0 %959
        %962 = vset.pattern.permute.xlu0 1
        %963 = vperm.xlu0 %962, %v646
        %v964 = vpop.permute.xlu0 %963
        %966 = vset.pattern.permute.xlu0 1
        %967 = vperm.xlu0 %966, %v647
        %v968 = vpop.permute.xlu0 %967
        %970 = vset.pattern.permute.xlu0 1
        %971 = vperm.xlu0 %970, %v648
        %v972 = vpop.permute.xlu0 %971
        %v974 = vlaneseq
        %v975 = vshrl.u32 %v974, 7
        %v976 = vsub.s32 1, %v975
        %v977 = vrot.slane %v649, %v976
        %v978 = vmul.f32 %v848, %v977
        %v979 = vmul.f32 %v852, %v977
        %v980 = vmul.f32 %v856, %v977
        %v981 = vmul.f32 %v860, %v977
        %v982 = vmul.f32 %v864, %v977
        %v983 = vmul.f32 %v868, %v977
        %v984 = vmul.f32 %v872, %v977
        %v985 = vmul.f32 %v876, %v977
        %v986 = vmul.f32 %v880, %v977
        %v987 = vmul.f32 %v884, %v977
        %v988 = vmul.f32 %v888, %v977
        %v989 = vmul.f32 %v892, %v977
        %v990 = vmul.f32 %v896, %v977
        %v991 = vmul.f32 %v900, %v977
        %v992 = vmul.f32 %v904, %v977
        %v993 = vmul.f32 %v908, %v977
        %v994 = vmul.f32 %v912, %v977
        %v995 = vmul.f32 %v916, %v977
        %v996 = vmul.f32 %v920, %v977
        %v997 = vmul.f32 %v924, %v977
        %v998 = vmul.f32 %v928, %v977
        %v999 = vmul.f32 %v932, %v977
        %v1000 = vmul.f32 %v936, %v977
        %v1001 = vmul.f32 %v940, %v977
        %v1002 = vmul.f32 %v944, %v977
        %v1003 = vmul.f32 %v948, %v977
        %v1004 = vmul.f32 %v952, %v977
        %v1005 = vmul.f32 %v956, %v977
        %v1006 = vmul.f32 %v960, %v977
        %v1007 = vmul.f32 %v964, %v977
        %v1008 = vmul.f32 %v968, %v977
        %v1009 = vmul.f32 %v972, %v977
        %v1010 = vadd.f32 %v814, %v978
        %v1011 = vadd.f32 %v815, %v979
        %v1012 = vadd.f32 %v816, %v980
        %v1013 = vadd.f32 %v817, %v981
        %v1014 = vadd.f32 %v818, %v982
        %v1015 = vadd.f32 %v819, %v983
        %v1016 = vadd.f32 %v820, %v984
        %v1017 = vadd.f32 %v821, %v985
        %v1018 = vadd.f32 %v822, %v986
        %v1019 = vadd.f32 %v823, %v987
        %v1020 = vadd.f32 %v824, %v988
        %v1021 = vadd.f32 %v825, %v989
        %v1022 = vadd.f32 %v826, %v990
        %v1023 = vadd.f32 %v827, %v991
        %v1024 = vadd.f32 %v828, %v992
        %v1025 = vadd.f32 %v829, %v993
        %v1026 = vadd.f32 %v830, %v994
        %v1027 = vadd.f32 %v831, %v995
        %v1028 = vadd.f32 %v832, %v996
        %v1029 = vadd.f32 %v833, %v997
        %v1030 = vadd.f32 %v834, %v998
        %v1031 = vadd.f32 %v835, %v999
        %v1032 = vadd.f32 %v836, %v1000
        %v1033 = vadd.f32 %v837, %v1001
        %v1034 = vadd.f32 %v838, %v1002
        %v1035 = vadd.f32 %v839, %v1003
        %v1036 = vadd.f32 %v840, %v1004
        %v1037 = vadd.f32 %v841, %v1005
        %v1038 = vadd.f32 %v842, %v1006
        %v1039 = vadd.f32 %v843, %v1007
        %v1040 = vadd.f32 %v844, %v1008
        %v1041 = vadd.f32 %v845, %v1009
        %1042 = vset.pattern.permute.xlu0 2
        %1043 = vperm.xlu0 %1042, %v617
        %v1044 = vpop.permute.xlu0 %1043
        %1046 = vset.pattern.permute.xlu0 2
        %1047 = vperm.xlu0 %1046, %v618
        %v1048 = vpop.permute.xlu0 %1047
        %1050 = vset.pattern.permute.xlu0 2
        %1051 = vperm.xlu0 %1050, %v619
        %v1052 = vpop.permute.xlu0 %1051
        %1054 = vset.pattern.permute.xlu0 2
        %1055 = vperm.xlu0 %1054, %v620
        %v1056 = vpop.permute.xlu0 %1055
        %1058 = vset.pattern.permute.xlu0 2
        %1059 = vperm.xlu0 %1058, %v621
        %v1060 = vpop.permute.xlu0 %1059
        %1062 = vset.pattern.permute.xlu0 2
        %1063 = vperm.xlu0 %1062, %v622
        %v1064 = vpop.permute.xlu0 %1063
        %1066 = vset.pattern.permute.xlu0 2
        %1067 = vperm.xlu0 %1066, %v623
        %v1068 = vpop.permute.xlu0 %1067
        %1070 = vset.pattern.permute.xlu0 2
        %1071 = vperm.xlu0 %1070, %v624
        %v1072 = vpop.permute.xlu0 %1071
        %1074 = vset.pattern.permute.xlu0 2
        %1075 = vperm.xlu0 %1074, %v625
        %v1076 = vpop.permute.xlu0 %1075
        %1078 = vset.pattern.permute.xlu0 2
        %1079 = vperm.xlu0 %1078, %v626
        %v1080 = vpop.permute.xlu0 %1079
        %1082 = vset.pattern.permute.xlu0 2
        %1083 = vperm.xlu0 %1082, %v627
        %v1084 = vpop.permute.xlu0 %1083
        %1086 = vset.pattern.permute.xlu0 2
        %1087 = vperm.xlu0 %1086, %v628
        %v1088 = vpop.permute.xlu0 %1087
        %1090 = vset.pattern.permute.xlu0 2
        %1091 = vperm.xlu0 %1090, %v629
        %v1092 = vpop.permute.xlu0 %1091
        %1094 = vset.pattern.permute.xlu0 2
        %1095 = vperm.xlu0 %1094, %v630
        %v1096 = vpop.permute.xlu0 %1095
        %1098 = vset.pattern.permute.xlu0 2
        %1099 = vperm.xlu0 %1098, %v631
        %v1100 = vpop.permute.xlu0 %1099
        %1102 = vset.pattern.permute.xlu0 2
        %1103 = vperm.xlu0 %1102, %v632
        %v1104 = vpop.permute.xlu0 %1103
        %1106 = vset.pattern.permute.xlu0 2
        %1107 = vperm.xlu0 %1106, %v633
        %v1108 = vpop.permute.xlu0 %1107
        %1110 = vset.pattern.permute.xlu0 2
        %1111 = vperm.xlu0 %1110, %v634
        %v1112 = vpop.permute.xlu0 %1111
        %1114 = vset.pattern.permute.xlu0 2
        %1115 = vperm.xlu0 %1114, %v635
        %v1116 = vpop.permute.xlu0 %1115
        %1118 = vset.pattern.permute.xlu0 2
        %1119 = vperm.xlu0 %1118, %v636
        %v1120 = vpop.permute.xlu0 %1119
        %1122 = vset.pattern.permute.xlu0 2
        %1123 = vperm.xlu0 %1122, %v637
        %v1124 = vpop.permute.xlu0 %1123
        %1126 = vset.pattern.permute.xlu0 2
        %1127 = vperm.xlu0 %1126, %v638
        %v1128 = vpop.permute.xlu0 %1127
        %1130 = vset.pattern.permute.xlu0 2
        %1131 = vperm.xlu0 %1130, %v639
        %v1132 = vpop.permute.xlu0 %1131
        %1134 = vset.pattern.permute.xlu0 2
        %1135 = vperm.xlu0 %1134, %v640
        %v1136 = vpop.permute.xlu0 %1135
        %1138 = vset.pattern.permute.xlu0 2
        %1139 = vperm.xlu0 %1138, %v641
        %v1140 = vpop.permute.xlu0 %1139
        %1142 = vset.pattern.permute.xlu0 2
        %1143 = vperm.xlu0 %1142, %v642
        %v1144 = vpop.permute.xlu0 %1143
        %1146 = vset.pattern.permute.xlu0 2
        %1147 = vperm.xlu0 %1146, %v643
        %v1148 = vpop.permute.xlu0 %1147
        %1150 = vset.pattern.permute.xlu0 2
        %1151 = vperm.xlu0 %1150, %v644
        %v1152 = vpop.permute.xlu0 %1151
        %1154 = vset.pattern.permute.xlu0 2
        %1155 = vperm.xlu0 %1154, %v645
        %v1156 = vpop.permute.xlu0 %1155
        %1158 = vset.pattern.permute.xlu0 2
        %1159 = vperm.xlu0 %1158, %v646
        %v1160 = vpop.permute.xlu0 %1159
        %1162 = vset.pattern.permute.xlu0 2
        %1163 = vperm.xlu0 %1162, %v647
        %v1164 = vpop.permute.xlu0 %1163
        %1166 = vset.pattern.permute.xlu0 2
        %1167 = vperm.xlu0 %1166, %v648
        %v1168 = vpop.permute.xlu0 %1167
        %v1170 = vlaneseq
        %v1171 = vshrl.u32 %v1170, 7
        %v1172 = vsub.s32 2, %v1171
        %v1173 = vrot.slane %v649, %v1172
        %v1174 = vmul.f32 %v1044, %v1173
        %v1175 = vmul.f32 %v1048, %v1173
        %v1176 = vmul.f32 %v1052, %v1173
        %v1177 = vmul.f32 %v1056, %v1173
        %v1178 = vmul.f32 %v1060, %v1173
        %v1179 = vmul.f32 %v1064, %v1173
        %v1180 = vmul.f32 %v1068, %v1173
        %v1181 = vmul.f32 %v1072, %v1173
        %v1182 = vmul.f32 %v1076, %v1173
        %v1183 = vmul.f32 %v1080, %v1173
        %v1184 = vmul.f32 %v1084, %v1173
        %v1185 = vmul.f32 %v1088, %v1173
        %v1186 = vmul.f32 %v1092, %v1173
        %v1187 = vmul.f32 %v1096, %v1173
        %v1188 = vmul.f32 %v1100, %v1173
        %v1189 = vmul.f32 %v1104, %v1173
        %v1190 = vmul.f32 %v1108, %v1173
        %v1191 = vmul.f32 %v1112, %v1173
        %v1192 = vmul.f32 %v1116, %v1173
        %v1193 = vmul.f32 %v1120, %v1173
        %v1194 = vmul.f32 %v1124, %v1173
        %v1195 = vmul.f32 %v1128, %v1173
        %v1196 = vmul.f32 %v1132, %v1173
        %v1197 = vmul.f32 %v1136, %v1173
        %v1198 = vmul.f32 %v1140, %v1173
        %v1199 = vmul.f32 %v1144, %v1173
        %v1200 = vmul.f32 %v1148, %v1173
        %v1201 = vmul.f32 %v1152, %v1173
        %v1202 = vmul.f32 %v1156, %v1173
        %v1203 = vmul.f32 %v1160, %v1173
        %v1204 = vmul.f32 %v1164, %v1173
        %v1205 = vmul.f32 %v1168, %v1173
        %v1206 = vadd.f32 %v1010, %v1174
        %v1207 = vadd.f32 %v1011, %v1175
        %v1208 = vadd.f32 %v1012, %v1176
        %v1209 = vadd.f32 %v1013, %v1177
        %v1210 = vadd.f32 %v1014, %v1178
        %v1211 = vadd.f32 %v1015, %v1179
        %v1212 = vadd.f32 %v1016, %v1180
        %v1213 = vadd.f32 %v1017, %v1181
        %v1214 = vadd.f32 %v1018, %v1182
        %v1215 = vadd.f32 %v1019, %v1183
        %v1216 = vadd.f32 %v1020, %v1184
        %v1217 = vadd.f32 %v1021, %v1185
        %v1218 = vadd.f32 %v1022, %v1186
        %v1219 = vadd.f32 %v1023, %v1187
        %v1220 = vadd.f32 %v1024, %v1188
        %v1221 = vadd.f32 %v1025, %v1189
        %v1222 = vadd.f32 %v1026, %v1190
        %v1223 = vadd.f32 %v1027, %v1191
        %v1224 = vadd.f32 %v1028, %v1192
        %v1225 = vadd.f32 %v1029, %v1193
        %v1226 = vadd.f32 %v1030, %v1194
        %v1227 = vadd.f32 %v1031, %v1195
        %v1228 = vadd.f32 %v1032, %v1196
        %v1229 = vadd.f32 %v1033, %v1197
        %v1230 = vadd.f32 %v1034, %v1198
        %v1231 = vadd.f32 %v1035, %v1199
        %v1232 = vadd.f32 %v1036, %v1200
        %v1233 = vadd.f32 %v1037, %v1201
        %v1234 = vadd.f32 %v1038, %v1202
        %v1235 = vadd.f32 %v1039, %v1203
        %v1236 = vadd.f32 %v1040, %v1204
        %v1237 = vadd.f32 %v1041, %v1205
        %v1238 = vld [vmem:[#allocation6] sm:$0x1]
        %v1240 = vlaneseq
        %v1241 = vshrl.u32 %v1240, 7
        %v1242 = vsub.s32 0, %v1241
        %v1243 = vrot.slane %v1238, %v1242
        %v1245 = vadd.f32 %v1206, %v1243
        %v1246 = vadd.f32 %v1207, %v1243
        %v1247 = vadd.f32 %v1208, %v1243
        %v1248 = vadd.f32 %v1209, %v1243
        %v1249 = vadd.f32 %v1210, %v1243
        %v1250 = vadd.f32 %v1211, %v1243
        %v1251 = vadd.f32 %v1212, %v1243
        %v1252 = vadd.f32 %v1213, %v1243
        %v1253 = vadd.f32 %v1214, %v1243
        %v1254 = vadd.f32 %v1215, %v1243
        %v1255 = vadd.f32 %v1216, %v1243
        %v1256 = vadd.f32 %v1217, %v1243
        %v1257 = vadd.f32 %v1218, %v1243
        %v1258 = vadd.f32 %v1219, %v1243
        %v1259 = vadd.f32 %v1220, %v1243
        %v1260 = vadd.f32 %v1221, %v1243
        %v1261 = vadd.f32 %v1222, %v1243
        %v1262 = vadd.f32 %v1223, %v1243
        %v1263 = vadd.f32 %v1224, %v1243
        %v1264 = vadd.f32 %v1225, %v1243
        %v1265 = vadd.f32 %v1226, %v1243
        %v1266 = vadd.f32 %v1227, %v1243
        %v1267 = vadd.f32 %v1228, %v1243
        %v1268 = vadd.f32 %v1229, %v1243
        %v1269 = vadd.f32 %v1230, %v1243
        %v1270 = vadd.f32 %v1231, %v1243
        %v1271 = vadd.f32 %v1232, %v1243
        %v1272 = vadd.f32 %v1233, %v1243
        %v1273 = vadd.f32 %v1234, %v1243
        %v1274 = vadd.f32 %v1235, %v1243
        %v1275 = vadd.f32 %v1236, %v1243
        %v1276 = vadd.f32 %v1237, %v1243
        %v1277 = vmax.f32 %v1245, 0.0
        %v1278 = vmax.f32 %v1246, 0.0
        %v1279 = vmax.f32 %v1247, 0.0
        %v1280 = vmax.f32 %v1248, 0.0
        %v1281 = vmax.f32 %v1249, 0.0
        %v1282 = vmax.f32 %v1250, 0.0
        %v1283 = vmax.f32 %v1251, 0.0
        %v1284 = vmax.f32 %v1252, 0.0
        %v1285 = vmax.f32 %v1253, 0.0
        %v1286 = vmax.f32 %v1254, 0.0
        %v1287 = vmax.f32 %v1255, 0.0
        %v1288 = vmax.f32 %v1256, 0.0
        %v1289 = vmax.f32 %v1257, 0.0
        %v1290 = vmax.f32 %v1258, 0.0
        %v1291 = vmax.f32 %v1259, 0.0
        %v1292 = vmax.f32 %v1260, 0.0
        %v1293 = vmax.f32 %v1261, 0.0
        %v1294 = vmax.f32 %v1262, 0.0
        %v1295 = vmax.f32 %v1263, 0.0
        %v1296 = vmax.f32 %v1264, 0.0
        %v1297 = vmax.f32 %v1265, 0.0
        %v1298 = vmax.f32 %v1266, 0.0
        %v1299 = vmax.f32 %v1267, 0.0
        %v1300 = vmax.f32 %v1268, 0.0
        %v1301 = vmax.f32 %v1269, 0.0
        %v1302 = vmax.f32 %v1270, 0.0
        %v1303 = vmax.f32 %v1271, 0.0
        %v1304 = vmax.f32 %v1272, 0.0
        %v1305 = vmax.f32 %v1273, 0.0
        %v1306 = vmax.f32 %v1274, 0.0
        %v1307 = vmax.f32 %v1275, 0.0
        %v1308 = vmax.f32 %v1276, 0.0
        %v1309 = vld [vmem:[#allocation8] sm:$0xff]
        %v1310 = vld [vmem:[#allocation8 + $0x8] sm:$0xff]
        %v1311 = vld [vmem:[#allocation8 + $0x10] sm:$0xff]
        %v1312 = vld [vmem:[#allocation8 + $0x18] sm:$0xff]
        %v1313 = vld [vmem:[#allocation8 + $0x20] sm:$0xff]
        %v1314 = vld [vmem:[#allocation8 + $0x28] sm:$0xff]
        %v1315 = vld [vmem:[#allocation8 + $0x30] sm:$0xff]
        %v1316 = vld [vmem:[#allocation8 + $0x38] sm:$0xff]
        %v1317 = vld [vmem:[#allocation9] sm:$0x1]
        %v1319 = vlaneseq
        %v1320 = vshrl.u32 %v1319, 7
        %v1321 = vsub.s32 0, %v1320
        %v1322 = vrot.slane %v1317, %v1321
        %vm1324 = vcmask 523264
        %v1326 = vsel %vm1324, %v1277, 0
        %v1329 = vsel %vm1324, %v1278, 0
        %v1332 = vsel %vm1324, %v1279, 0
        %v1335 = vsel %vm1324, %v1280, 0
        %v1338 = vsel %vm1324, %v1281, 0
        %v1341 = vsel %vm1324, %v1282, 0
        %v1344 = vsel %vm1324, %v1283, 0
        %v1347 = vsel %vm1324, %v1284, 0
        %v1350 = vsel %vm1324, %v1285, 0
        %v1353 = vsel %vm1324, %v1286, 0
        %v1356 = vsel %vm1324, %v1287, 0
        %v1359 = vsel %vm1324, %v1288, 0
        %v1362 = vsel %vm1324, %v1289, 0
        %v1365 = vsel %vm1324, %v1290, 0
        %v1368 = vsel %vm1324, %v1291, 0
        %v1371 = vsel %vm1324, %v1292, 0
        %v1374 = vsel %vm1324, %v1293, 0
        %v1377 = vsel %vm1324, %v1294, 0
        %v1380 = vsel %vm1324, %v1295, 0
        %v1383 = vsel %vm1324, %v1296, 0
        %v1386 = vsel %vm1324, %v1297, 0
        %v1389 = vsel %vm1324, %v1298, 0
        %v1392 = vsel %vm1324, %v1299, 0
        %v1395 = vsel %vm1324, %v1300, 0
        %v1398 = vsel %vm1324, %v1301, 0
        %v1401 = vsel %vm1324, %v1302, 0
        %v1404 = vsel %vm1324, %v1303, 0
        %v1407 = vsel %vm1324, %v1304, 0
        %v1410 = vsel %vm1324, %v1305, 0
        %v1413 = vsel %vm1324, %v1306, 0
        %v1416 = vsel %vm1324, %v1307, 0
        %v1419 = vsel %vm1324, %v1308, 0
        %1421 = vmatprep.subr.mxu0 0.0
        %1422 = vmatpush1.msra.mxu0 0.0
        %1423 = vmatprep.subr.mxu0 0.0
        %1424 = vmatpush1.msra.mxu0 0.0
        %1425 = vmatprep.subr.mxu0 0.0
        %1426 = vmatpush1.msra.mxu0 0.0
        %1427 = vmatprep.subr.mxu0 0.0
        %1428 = vmatpush1.msra.mxu0 0.0
        %1429 = vmatprep.subr.mxu0 0.0
        %1430 = vmatpush1.msra.mxu0 0.0
        %1431 = vmatprep.subr.mxu0 0.0
        %1432 = vmatpush1.msra.mxu0 0.0
        %1433 = vmatprep.subr.mxu0 0.0
        %1434 = vmatpush1.msra.mxu0 0.0
        %1435 = vmatprep.subr.mxu0 0.0
        %1436 = vmatpush1.msra.mxu0 0.0
        %1437 = vmatprep.subr.mxu0 0.0
        %1438 = vmatpush1.msra.mxu0 %v1316
        %1439 = vmatprep.subr.mxu0 0.0
        %1440 = vmatpush1.msra.mxu0 %v1315
        %1441 = vmatprep.subr.mxu0 0.0
        %1442 = vmatpush1.msra.mxu0 %v1314
        %1443 = vmatprep.subr.mxu0 0.0
        %1444 = vmatpush1.msra.mxu0 %v1313
        %1445 = vmatprep.subr.mxu0 0.0
        %1446 = vmatpush1.msra.mxu0 %v1312
        %1447 = vmatprep.subr.mxu0 0.0
        %1448 = vmatpush1.msra.mxu0 %v1311
        %1449 = vmatprep.subr.mxu0 0.0
        %1450 = vmatpush1.msra.mxu0 %v1310
        %1451 = vmatprep.subr.mxu0 0.0
        %1452 = vmatpush1.msra.mxu0 %v1309
        %1453 = vmatprep.subr.mxu0 0.0
        %1454 = vmatpush2.msra.mxu0 0.0
        %1455 = vmatprep.subr.mxu0 0.0
        %1456 = vmatpush2.msra.mxu0 0.0
        %1457 = vmatprep.subr.mxu0 0.0
        %1458 = vmatpush2.msra.mxu0 0.0
        %1459 = vmatprep.subr.mxu0 0.0
        %1460 = vmatpush2.msra.mxu0 0.0
        %1461 = vmatprep.subr.mxu0 0.0
        %1462 = vmatpush2.msra.mxu0 0.0
        %1463 = vmatprep.subr.mxu0 0.0
        %1464 = vmatpush2.msra.mxu0 0.0
        %1465 = vmatprep.subr.mxu0 0.0
        %1466 = vmatpush2.msra.mxu0 0.0
        %1467 = vmatprep.subr.mxu0 0.0
        %1468 = vmatpush2.msra.mxu0 0.0
        %1469 = vmatprep.subr.mxu0 0.0
        %1470 = vmatpush2.msra.mxu0 0.0
        %1471 = vmatprep.subr.mxu0 0.0
        %1472 = vmatpush2.msra.mxu0 0.0
        %1473 = vmatprep.subr.mxu0 0.0
        %1474 = vmatpush2.msra.mxu0 0.0
        %1475 = vmatprep.subr.mxu0 0.0
        %1476 = vmatpush2.msra.mxu0 0.0
        %1477 = vmatprep.subr.mxu0 0.0
        %1478 = vmatpush2.msra.mxu0 0.0
        %1479 = vmatprep.subr.mxu0 0.0
        %1480 = vmatpush2.msra.mxu0 0.0
        %1481 = vmatprep.subr.mxu0 0.0
        %1482 = vmatpush2.msra.mxu0 0.0
        %1483 = vmatprep.subr.mxu0 0.0
        %1484 = vmatpush2.msra.mxu0 0.0
        %1485 = vmatprep.mubr.f32.mxu0 0.0
        %1486 = vmatmul.mubr.f32.gmra.mxu0 %v1326
        %v1487 = vpop.f32.mrf.mxu0
        %v1488 = vadd.f32 %v1322, %v1487
        %v1489 = vpop.f32.mrf.mxu0
        %1490 = vmatprep.mubr.f32.mxu0 0.0
        %1491 = vmatmul.mubr.f32.gmra.mxu0 %v1329
        %v1492 = vpop.f32.mrf.mxu0
        %v1493 = vadd.f32 %v1322, %v1492
        %v1494 = vpop.f32.mrf.mxu0
        %1495 = vmatprep.mubr.f32.mxu0 0.0
        %1496 = vmatmul.mubr.f32.gmra.mxu0 %v1332
        %v1497 = vpop.f32.mrf.mxu0
        %v1498 = vadd.f32 %v1322, %v1497
        %v1499 = vpop.f32.mrf.mxu0
        %1500 = vmatprep.mubr.f32.mxu0 0.0
        %1501 = vmatmul.mubr.f32.gmra.mxu0 %v1335
        %v1502 = vpop.f32.mrf.mxu0
        %v1503 = vadd.f32 %v1322, %v1502
        %v1504 = vpop.f32.mrf.mxu0
        %1505 = vmatprep.mubr.f32.mxu0 0.0
        %1506 = vmatmul.mubr.f32.gmra.mxu0 %v1338
        %v1507 = vpop.f32.mrf.mxu0
        %v1508 = vadd.f32 %v1322, %v1507
        %v1509 = vpop.f32.mrf.mxu0
        %1510 = vmatprep.mubr.f32.mxu0 0.0
        %1511 = vmatmul.mubr.f32.gmra.mxu0 %v1341
        %v1512 = vpop.f32.mrf.mxu0
        %v1513 = vadd.f32 %v1322, %v1512
        %v1514 = vpop.f32.mrf.mxu0
        %1515 = vmatprep.mubr.f32.mxu0 0.0
        %1516 = vmatmul.mubr.f32.gmra.mxu0 %v1344
        %v1517 = vpop.f32.mrf.mxu0
        %v1518 = vadd.f32 %v1322, %v1517
        %v1519 = vpop.f32.mrf.mxu0
        %1520 = vmatprep.mubr.f32.mxu0 0.0
        %1521 = vmatmul.mubr.f32.gmra.mxu0 %v1347
        %v1522 = vpop.f32.mrf.mxu0
        %v1523 = vadd.f32 %v1322, %v1522
        %v1524 = vpop.f32.mrf.mxu0
        %1525 = vmatprep.mubr.f32.mxu0 0.0
        %1526 = vmatmul.mubr.f32.gmra.mxu0 %v1350
        %v1527 = vpop.f32.mrf.mxu0
        %v1528 = vadd.f32 %v1322, %v1527
        %v1529 = vpop.f32.mrf.mxu0
        %1530 = vmatprep.mubr.f32.mxu0 0.0
        %1531 = vmatmul.mubr.f32.gmra.mxu0 %v1353
        %v1532 = vpop.f32.mrf.mxu0
        %v1533 = vadd.f32 %v1322, %v1532
        %v1534 = vpop.f32.mrf.mxu0
        %1535 = vmatprep.mubr.f32.mxu0 0.0
        %1536 = vmatmul.mubr.f32.gmra.mxu0 %v1356
        %v1537 = vpop.f32.mrf.mxu0
        %v1538 = vadd.f32 %v1322, %v1537
        %v1539 = vpop.f32.mrf.mxu0
        %1540 = vmatprep.mubr.f32.mxu0 0.0
        %1541 = vmatmul.mubr.f32.gmra.mxu0 %v1359
        %v1542 = vpop.f32.mrf.mxu0
        %v1543 = vadd.f32 %v1322, %v1542
        %v1544 = vpop.f32.mrf.mxu0
        %1545 = vmatprep.mubr.f32.mxu0 0.0
        %1546 = vmatmul.mubr.f32.gmra.mxu0 %v1362
        %v1547 = vpop.f32.mrf.mxu0
        %v1548 = vadd.f32 %v1322, %v1547
        %v1549 = vpop.f32.mrf.mxu0
        %1550 = vmatprep.mubr.f32.mxu0 0.0
        %1551 = vmatmul.mubr.f32.gmra.mxu0 %v1365
        %v1552 = vpop.f32.mrf.mxu0
        %v1553 = vadd.f32 %v1322, %v1552
        %v1554 = vpop.f32.mrf.mxu0
        %1555 = vmatprep.mubr.f32.mxu0 0.0
        %1556 = vmatmul.mubr.f32.gmra.mxu0 %v1368
        %v1557 = vpop.f32.mrf.mxu0
        %v1558 = vadd.f32 %v1322, %v1557
        %v1559 = vpop.f32.mrf.mxu0
        %1560 = vmatprep.mubr.f32.mxu0 0.0
        %1561 = vmatmul.mubr.f32.gmra.mxu0 %v1371
        %v1562 = vpop.f32.mrf.mxu0
        %v1563 = vadd.f32 %v1322, %v1562
        %v1564 = vpop.f32.mrf.mxu0
        %1565 = vmatprep.mubr.f32.mxu0 0.0
        %1566 = vmatmul.mubr.f32.gmra.mxu0 %v1374
        %v1567 = vpop.f32.mrf.mxu0
        %v1568 = vadd.f32 %v1322, %v1567
        %v1569 = vpop.f32.mrf.mxu0
        %1570 = vmatprep.mubr.f32.mxu0 0.0
        %1571 = vmatmul.mubr.f32.gmra.mxu0 %v1377
        %v1572 = vpop.f32.mrf.mxu0
        %v1573 = vadd.f32 %v1322, %v1572
        %v1574 = vpop.f32.mrf.mxu0
        %1575 = vmatprep.mubr.f32.mxu0 0.0
        %1576 = vmatmul.mubr.f32.gmra.mxu0 %v1380
        %v1577 = vpop.f32.mrf.mxu0
        %v1578 = vadd.f32 %v1322, %v1577
        %v1579 = vpop.f32.mrf.mxu0
        %1580 = vmatprep.mubr.f32.mxu0 0.0
        %1581 = vmatmul.mubr.f32.gmra.mxu0 %v1383
        %v1582 = vpop.f32.mrf.mxu0
        %v1583 = vadd.f32 %v1322, %v1582
        %v1584 = vpop.f32.mrf.mxu0
        %1585 = vmatprep.mubr.f32.mxu0 0.0
        %1586 = vmatmul.mubr.f32.gmra.mxu0 %v1386
        %v1587 = vpop.f32.mrf.mxu0
        %v1588 = vadd.f32 %v1322, %v1587
        %v1589 = vpop.f32.mrf.mxu0
        %1590 = vmatprep.mubr.f32.mxu0 0.0
        %1591 = vmatmul.mubr.f32.gmra.mxu0 %v1389
        %v1592 = vpop.f32.mrf.mxu0
        %v1593 = vadd.f32 %v1322, %v1592
        %v1594 = vpop.f32.mrf.mxu0
        %1595 = vmatprep.mubr.f32.mxu0 0.0
        %1596 = vmatmul.mubr.f32.gmra.mxu0 %v1392
        %v1597 = vpop.f32.mrf.mxu0
        %v1598 = vadd.f32 %v1322, %v1597
        %v1599 = vpop.f32.mrf.mxu0
        %1600 = vmatprep.mubr.f32.mxu0 0.0
        %1601 = vmatmul.mubr.f32.gmra.mxu0 %v1395
        %v1602 = vpop.f32.mrf.mxu0
        %v1603 = vadd.f32 %v1322, %v1602
        %v1604 = vpop.f32.mrf.mxu0
        %1605 = vmatprep.mubr.f32.mxu0 0.0
        %1606 = vmatmul.mubr.f32.gmra.mxu0 %v1398
        %v1607 = vpop.f32.mrf.mxu0
        %v1608 = vadd.f32 %v1322, %v1607
        %v1609 = vpop.f32.mrf.mxu0
        %1610 = vmatprep.mubr.f32.mxu0 0.0
        %1611 = vmatmul.mubr.f32.gmra.mxu0 %v1401
        %v1612 = vpop.f32.mrf.mxu0
        %v1613 = vadd.f32 %v1322, %v1612
        %v1614 = vpop.f32.mrf.mxu0
        %1615 = vmatprep.mubr.f32.mxu0 0.0
        %1616 = vmatmul.mubr.f32.gmra.mxu0 %v1404
        %v1617 = vpop.f32.mrf.mxu0
        %v1618 = vadd.f32 %v1322, %v1617
        %v1619 = vpop.f32.mrf.mxu0
        %1620 = vmatprep.mubr.f32.mxu0 0.0
        %1621 = vmatmul.mubr.f32.gmra.mxu0 %v1407
        %v1622 = vpop.f32.mrf.mxu0
        %v1623 = vadd.f32 %v1322, %v1622
        %v1624 = vpop.f32.mrf.mxu0
        %1625 = vmatprep.mubr.f32.mxu0 0.0
        %1626 = vmatmul.mubr.f32.gmra.mxu0 %v1410
        %v1627 = vpop.f32.mrf.mxu0
        %v1628 = vadd.f32 %v1322, %v1627
        %v1629 = vpop.f32.mrf.mxu0
        %1630 = vmatprep.mubr.f32.mxu0 0.0
        %1631 = vmatmul.mubr.f32.gmra.mxu0 %v1413
        %v1632 = vpop.f32.mrf.mxu0
        %v1633 = vadd.f32 %v1322, %v1632
        %v1634 = vpop.f32.mrf.mxu0
        %1635 = vmatprep.mubr.f32.mxu0 0.0
        %1636 = vmatmul.mubr.f32.gmra.mxu0 %v1416
        %v1637 = vpop.f32.mrf.mxu0
        %v1638 = vadd.f32 %v1322, %v1637
        %v1639 = vpop.f32.mrf.mxu0
        %1640 = vmatprep.mubr.f32.mxu0 0.0
        %1641 = vmatmul.mubr.f32.gmra.mxu0 %v1419
        %v1642 = vpop.f32.mrf.mxu0
        %v1643 = vadd.f32 %v1322, %v1642
        %v1644 = vpop.f32.mrf.mxu0
        %1645 = vdwg.mxu0
        %v1646 = vmax.f32 %v1488, 0.0
        %v1647 = vmax.f32 %v1493, 0.0
        %v1648 = vmax.f32 %v1498, 0.0
        %v1649 = vmax.f32 %v1503, 0.0
        %v1650 = vmax.f32 %v1508, 0.0
        %v1651 = vmax.f32 %v1513, 0.0
        %v1652 = vmax.f32 %v1518, 0.0
        %v1653 = vmax.f32 %v1523, 0.0
        %v1654 = vmax.f32 %v1528, 0.0
        %v1655 = vmax.f32 %v1533, 0.0
        %v1656 = vmax.f32 %v1538, 0.0
        %v1657 = vmax.f32 %v1543, 0.0
        %v1658 = vmax.f32 %v1548, 0.0
        %v1659 = vmax.f32 %v1553, 0.0
        %v1660 = vmax.f32 %v1558, 0.0
        %v1661 = vmax.f32 %v1563, 0.0
        %v1662 = vmax.f32 %v1568, 0.0
        %v1663 = vmax.f32 %v1573, 0.0
        %v1664 = vmax.f32 %v1578, 0.0
        %v1665 = vmax.f32 %v1583, 0.0
        %v1666 = vmax.f32 %v1588, 0.0
        %v1667 = vmax.f32 %v1593, 0.0
        %v1668 = vmax.f32 %v1598, 0.0
        %v1669 = vmax.f32 %v1603, 0.0
        %v1670 = vmax.f32 %v1608, 0.0
        %v1671 = vmax.f32 %v1613, 0.0
        %v1672 = vmax.f32 %v1618, 0.0
        %v1673 = vmax.f32 %v1623, 0.0
        %v1674 = vmax.f32 %v1628, 0.0
        %v1675 = vmax.f32 %v1633, 0.0
        %v1676 = vmax.f32 %v1638, 0.0
        %v1677 = vmax.f32 %v1643, 0.0
        %v1678 = vld [vmem:[#allocation11] sm:$0xff]
        %v1679 = vld [vmem:[#allocation11 + $0x8] sm:$0xff]
        %v1680 = vld [vmem:[#allocation11 + $0x10] sm:$0xff]
        %v1681 = vld [vmem:[#allocation11 + $0x18] sm:$0xff]
        %v1682 = vld [vmem:[#allocation11 + $0x20] sm:$0xff]
        %v1683 = vld [vmem:[#allocation11 + $0x28] sm:$0xff]
        %v1684 = vld [vmem:[#allocation11 + $0x30] sm:$0xff]
        %v1685 = vld [vmem:[#allocation11 + $0x38] sm:$0xff]
        %v1686 = vld [vmem:[#allocation11 + $0x40] sm:$0xff]
        %v1687 = vld [vmem:[#allocation11 + $0x48] sm:$0xff]
        %v1688 = vld [vmem:[#allocation11 + $0x50] sm:$0xff]
        %v1689 = vld [vmem:[#allocation11 + $0x58] sm:$0xff]
        %v1690 = vld [vmem:[#allocation11 + $0x60] sm:$0xff]
        %v1691 = vld [vmem:[#allocation11 + $0x68] sm:$0xff]
        %v1692 = vld [vmem:[#allocation11 + $0x70] sm:$0xff]
        %v1693 = vld [vmem:[#allocation11 + $0x78] sm:$0xff]
        %v1694 = vld [vmem:[#allocation11 + $0x80] sm:$0xff]
        %v1695 = vld [vmem:[#allocation11 + $0x88] sm:$0xff]
        %v1696 = vld [vmem:[#allocation11 + $0x90] sm:$0xff]
        %v1697 = vld [vmem:[#allocation11 + $0x98] sm:$0xff]
        %v1698 = vld [vmem:[#allocation11 + $0xa0] sm:$0xff]
        %v1699 = vld [vmem:[#allocation11 + $0xa8] sm:$0xff]
        %v1700 = vld [vmem:[#allocation11 + $0xb0] sm:$0xff]
        %v1701 = vld [vmem:[#allocation11 + $0xb8] sm:$0xff]
        %v1702 = vld [vmem:[#allocation11 + $0xc0] sm:$0xff]
        %v1703 = vld [vmem:[#allocation11 + $0xc8] sm:$0xff]
        %v1704 = vld [vmem:[#allocation11 + $0xd0] sm:$0xff]
        %v1705 = vld [vmem:[#allocation11 + $0xd8] sm:$0xff]
        %v1706 = vld [vmem:[#allocation11 + $0xe0] sm:$0xff]
        %v1707 = vld [vmem:[#allocation11 + $0xe8] sm:$0xff]
        %v1708 = vld [vmem:[#allocation11 + $0xf0] sm:$0xff]
        %v1709 = vld [vmem:[#allocation11 + $0xf8] sm:$0xff]
        %v1710 = vld [vmem:[#allocation11 + $0x100] sm:$0xff]
        %v1711 = vld [vmem:[#allocation11 + $0x108] sm:$0xff]
        %v1712 = vld [vmem:[#allocation11 + $0x110] sm:$0xff]
        %v1713 = vld [vmem:[#allocation11 + $0x118] sm:$0xff]
        %v1714 = vld [vmem:[#allocation11 + $0x120] sm:$0xff]
        %v1715 = vld [vmem:[#allocation11 + $0x128] sm:$0xff]
        %v1716 = vld [vmem:[#allocation11 + $0x130] sm:$0xff]
        %v1717 = vld [vmem:[#allocation11 + $0x138] sm:$0xff]
        %v1718 = vld [vmem:[#allocation11 + $0x140] sm:$0xff]
        %v1719 = vld [vmem:[#allocation11 + $0x148] sm:$0xff]
        %v1720 = vld [vmem:[#allocation11 + $0x150] sm:$0xff]
        %v1721 = vld [vmem:[#allocation11 + $0x158] sm:$0xff]
        %v1722 = vld [vmem:[#allocation11 + $0x160] sm:$0xff]
        %v1723 = vld [vmem:[#allocation11 + $0x168] sm:$0xff]
        %v1724 = vld [vmem:[#allocation11 + $0x170] sm:$0xff]
        %v1725 = vld [vmem:[#allocation11 + $0x178] sm:$0xff]
        %v1726 = vld [vmem:[#allocation11 + $0x180] sm:$0xff]
        %v1727 = vld [vmem:[#allocation11 + $0x188] sm:$0xff]
        %v1728 = vld [vmem:[#allocation11 + $0x190] sm:$0xff]
        %v1729 = vld [vmem:[#allocation11 + $0x198] sm:$0xff]
        %v1730 = vld [vmem:[#allocation11 + $0x1a0] sm:$0xff]
        %v1731 = vld [vmem:[#allocation11 + $0x1a8] sm:$0xff]
        %v1732 = vld [vmem:[#allocation11 + $0x1b0] sm:$0xff]
        %v1733 = vld [vmem:[#allocation11 + $0x1b8] sm:$0xff]
        %v1734 = vld [vmem:[#allocation11 + $0x1c0] sm:$0xff]
        %v1735 = vld [vmem:[#allocation11 + $0x1c8] sm:$0xff]
        %v1736 = vld [vmem:[#allocation11 + $0x1d0] sm:$0xff]
        %v1737 = vld [vmem:[#allocation11 + $0x1d8] sm:$0xff]
        %v1738 = vld [vmem:[#allocation11 + $0x1e0] sm:$0xff]
        %v1739 = vld [vmem:[#allocation11 + $0x1e8] sm:$0xff]
        %v1740 = vld [vmem:[#allocation11 + $0x1f0] sm:$0xff]
        %v1741 = vld [vmem:[#allocation11 + $0x1f8] sm:$0xff]
        %v1742 = vld [vmem:[#allocation11 + $0x200] sm:$0xff]
        %v1743 = vld [vmem:[#allocation11 + $0x208] sm:$0xff]
        %v1744 = vld [vmem:[#allocation11 + $0x210] sm:$0xff]
        %v1745 = vld [vmem:[#allocation11 + $0x218] sm:$0xff]
        %v1746 = vld [vmem:[#allocation11 + $0x220] sm:$0xff]
        %v1747 = vld [vmem:[#allocation11 + $0x228] sm:$0xff]
        %v1748 = vld [vmem:[#allocation11 + $0x230] sm:$0xff]
        %v1749 = vld [vmem:[#allocation11 + $0x238] sm:$0xff]
        %v1750 = vld [vmem:[#allocation11 + $0x240] sm:$0xff]
        %v1751 = vld [vmem:[#allocation11 + $0x248] sm:$0xff]
        %v1752 = vld [vmem:[#allocation11 + $0x250] sm:$0xff]
        %v1753 = vld [vmem:[#allocation11 + $0x258] sm:$0xff]
        %v1754 = vld [vmem:[#allocation11 + $0x260] sm:$0xff]
        %v1755 = vld [vmem:[#allocation11 + $0x268] sm:$0xff]
        %v1756 = vld [vmem:[#allocation11 + $0x270] sm:$0xff]
        %v1757 = vld [vmem:[#allocation11 + $0x278] sm:$0xff]
        %v1758 = vld [vmem:[#allocation11 + $0x280] sm:$0xff]
        %v1759 = vld [vmem:[#allocation11 + $0x288] sm:$0xff]
        %v1760 = vld [vmem:[#allocation11 + $0x290] sm:$0xff]
        %v1761 = vld [vmem:[#allocation11 + $0x298] sm:$0xff]
        %v1762 = vld [vmem:[#allocation11 + $0x2a0] sm:$0xff]
        %v1763 = vld [vmem:[#allocation11 + $0x2a8] sm:$0xff]
        %v1764 = vld [vmem:[#allocation11 + $0x2b0] sm:$0xff]
        %v1765 = vld [vmem:[#allocation11 + $0x2b8] sm:$0xff]
        %v1766 = vld [vmem:[#allocation11 + $0x2c0] sm:$0xff]
        %v1767 = vld [vmem:[#allocation11 + $0x2c8] sm:$0xff]
        %v1768 = vld [vmem:[#allocation11 + $0x2d0] sm:$0xff]
        %v1769 = vld [vmem:[#allocation11 + $0x2d8] sm:$0xff]
        %v1770 = vld [vmem:[#allocation11 + $0x2e0] sm:$0xff]
        %v1771 = vld [vmem:[#allocation11 + $0x2e8] sm:$0xff]
        %v1772 = vld [vmem:[#allocation11 + $0x2f0] sm:$0xff]
        %v1773 = vld [vmem:[#allocation11 + $0x2f8] sm:$0xff]
        %v1774 = vld [vmem:[#allocation11 + $0x300] sm:$0xff]
        %v1775 = vld [vmem:[#allocation11 + $0x308] sm:$0xff]
        %v1776 = vld [vmem:[#allocation11 + $0x310] sm:$0xff]
        %v1777 = vld [vmem:[#allocation11 + $0x318] sm:$0xff]
        %v1778 = vld [vmem:[#allocation11 + $0x320] sm:$0xff]
        %v1779 = vld [vmem:[#allocation11 + $0x328] sm:$0xff]
        %v1780 = vld [vmem:[#allocation11 + $0x330] sm:$0xff]
        %v1781 = vld [vmem:[#allocation11 + $0x338] sm:$0xff]
        %v1782 = vld [vmem:[#allocation11 + $0x340] sm:$0xff]
        %v1783 = vld [vmem:[#allocation11 + $0x348] sm:$0xff]
        %v1784 = vld [vmem:[#allocation11 + $0x350] sm:$0xff]
        %v1785 = vld [vmem:[#allocation11 + $0x358] sm:$0xff]
        %v1786 = vld [vmem:[#allocation11 + $0x360] sm:$0xff]
        %v1787 = vld [vmem:[#allocation11 + $0x368] sm:$0xff]
        %v1788 = vld [vmem:[#allocation11 + $0x370] sm:$0xff]
        %v1789 = vld [vmem:[#allocation11 + $0x378] sm:$0xff]
        %v1790 = vld [vmem:[#allocation11 + $0x380] sm:$0xff]
        %v1791 = vld [vmem:[#allocation11 + $0x388] sm:$0xff]
        %v1792 = vld [vmem:[#allocation11 + $0x390] sm:$0xff]
        %v1793 = vld [vmem:[#allocation11 + $0x398] sm:$0xff]
        %v1794 = vld [vmem:[#allocation11 + $0x3a0] sm:$0xff]
        %v1795 = vld [vmem:[#allocation11 + $0x3a8] sm:$0xff]
        %v1796 = vld [vmem:[#allocation11 + $0x3b0] sm:$0xff]
        %v1797 = vld [vmem:[#allocation11 + $0x3b8] sm:$0xff]
        %v1798 = vld [vmem:[#allocation11 + $0x3c0] sm:$0xff]
        %v1799 = vld [vmem:[#allocation11 + $0x3c8] sm:$0xff]
        %v1800 = vld [vmem:[#allocation11 + $0x3d0] sm:$0xff]
        %v1801 = vld [vmem:[#allocation11 + $0x3d8] sm:$0xff]
        %v1802 = vld [vmem:[#allocation11 + $0x3e0] sm:$0xff]
        %v1803 = vld [vmem:[#allocation11 + $0x3e8] sm:$0xff]
        %v1804 = vld [vmem:[#allocation11 + $0x3f0] sm:$0xff]
        %v1805 = vld [vmem:[#allocation11 + $0x3f8] sm:$0xff]
        %v1806 = vld [vmem:[#allocation12] sm:$0xff]
        %v1808 = vlaneseq
        %v1809 = vshrl.u32 %v1808, 7
        %v1810 = vsub.s32 0, %v1809
        %v1811 = vrot.slane %v1806, %v1810
        %v1812 = vlaneseq
        %v1813 = vshrl.u32 %v1812, 7
        %v1814 = vsub.s32 1, %v1813
        %v1815 = vrot.slane %v1806, %v1814
        %v1816 = vlaneseq
        %v1817 = vshrl.u32 %v1816, 7
        %v1818 = vsub.s32 2, %v1817
        %v1819 = vrot.slane %v1806, %v1818
        %v1820 = vlaneseq
        %v1821 = vshrl.u32 %v1820, 7
        %v1822 = vsub.s32 3, %v1821
        %v1823 = vrot.slane %v1806, %v1822
        %v1824 = vlaneseq
        %v1825 = vshrl.u32 %v1824, 7
        %v1826 = vsub.s32 4, %v1825
        %v1827 = vrot.slane %v1806, %v1826
        %v1828 = vlaneseq
        %v1829 = vshrl.u32 %v1828, 7
        %v1830 = vsub.s32 5, %v1829
        %v1831 = vrot.slane %v1806, %v1830
        %v1832 = vlaneseq
        %v1833 = vshrl.u32 %v1832, 7
        %v1834 = vsub.s32 6, %v1833
        %v1835 = vrot.slane %v1806, %v1834
        %v1836 = vlaneseq
        %v1837 = vshrl.u32 %v1836, 7
        %v1838 = vsub.s32 7, %v1837
        %v1839 = vrot.slane %v1806, %v1838
        %1848 = vmatprep.subr.mxu0 %v1799
        %1849 = vmatpush1.msra.mxu0 %v1798
        %1850 = vmatprep.subr.mxu0 %v1791
        %1851 = vmatpush1.msra.mxu0 %v1790
        %1852 = vmatprep.subr.mxu0 %v1783
        %1853 = vmatpush1.msra.mxu0 %v1782
        %1854 = vmatprep.subr.mxu0 %v1775
        %1855 = vmatpush1.msra.mxu0 %v1774
        %1856 = vmatprep.subr.mxu0 %v1767
        %1857 = vmatpush1.msra.mxu0 %v1766
        %1858 = vmatprep.subr.mxu0 %v1759
        %1859 = vmatpush1.msra.mxu0 %v1758
        %1860 = vmatprep.subr.mxu0 %v1751
        %1861 = vmatpush1.msra.mxu0 %v1750
        %1862 = vmatprep.subr.mxu0 %v1743
        %1863 = vmatpush1.msra.mxu0 %v1742
        %1864 = vmatprep.subr.mxu0 %v1735
        %1865 = vmatpush1.msra.mxu0 %v1734
        %1866 = vmatprep.subr.mxu0 %v1727
        %1867 = vmatpush1.msra.mxu0 %v1726
        %1868 = vmatprep.subr.mxu0 %v1719
        %1869 = vmatpush1.msra.mxu0 %v1718
        %1870 = vmatprep.subr.mxu0 %v1711
        %1871 = vmatpush1.msra.mxu0 %v1710
        %1872 = vmatprep.subr.mxu0 %v1703
        %1873 = vmatpush1.msra.mxu0 %v1702
        %1874 = vmatprep.subr.mxu0 %v1695
        %1875 = vmatpush1.msra.mxu0 %v1694
        %1876 = vmatprep.subr.mxu0 %v1687
        %1877 = vmatpush1.msra.mxu0 %v1686
        %1878 = vmatprep.subr.mxu0 %v1679
        %1879 = vmatpush1.msra.mxu0 %v1678
        %1880 = vmatprep.subr.mxu0 0.0
        %1881 = vmatpush2.msra.mxu0 0.0
        %1882 = vmatprep.subr.mxu0 0.0
        %1883 = vmatpush2.msra.mxu0 0.0
        %1884 = vmatprep.subr.mxu0 0.0
        %1885 = vmatpush2.msra.mxu0 0.0
        %1886 = vmatprep.subr.mxu0 0.0
        %1887 = vmatpush2.msra.mxu0 0.0
        %1888 = vmatprep.subr.mxu0 0.0
        %1889 = vmatpush2.msra.mxu0 0.0
        %1890 = vmatprep.subr.mxu0 0.0
        %1891 = vmatpush2.msra.mxu0 0.0
        %1892 = vmatprep.subr.mxu0 0.0
        %1893 = vmatpush2.msra.mxu0 0.0
        %1894 = vmatprep.subr.mxu0 0.0
        %1895 = vmatpush2.msra.mxu0 0.0
        %1896 = vmatprep.subr.mxu0 0.0
        %1897 = vmatpush2.msra.mxu0 0.0
        %1898 = vmatprep.subr.mxu0 0.0
        %1899 = vmatpush2.msra.mxu0 0.0
        %1900 = vmatprep.subr.mxu0 0.0
        %1901 = vmatpush2.msra.mxu0 0.0
        %1902 = vmatprep.subr.mxu0 0.0
        %1903 = vmatpush2.msra.mxu0 0.0
        %1904 = vmatprep.subr.mxu0 0.0
        %1905 = vmatpush2.msra.mxu0 0.0
        %1906 = vmatprep.subr.mxu0 0.0
        %1907 = vmatpush2.msra.mxu0 0.0
        %1908 = vmatprep.subr.mxu0 0.0
        %1909 = vmatpush2.msra.mxu0 0.0
        %1910 = vmatprep.subr.mxu0 0.0
        %1911 = vmatpush2.msra.mxu0 0.0
        %1912 = vmatprep.mubr.f32.mxu0 0.0
        %1913 = vmatmul.mubr.f32.gmra.mxu0 %v1646
        %v1914 = vpop.f32.mrf.mxu0
        %v1915 = vadd.f32 %v1811, %v1914
        %v1916 = vpop.f32.mrf.mxu0
        %v1917 = vadd.f32 %v1815, %v1916
        %1918 = vmatprep.mubr.f32.mxu0 0.0
        %1919 = vmatmul.mubr.f32.gmra.mxu0 %v1647
        %v1920 = vpop.f32.mrf.mxu0
        %v1921 = vadd.f32 %v1811, %v1920
        %v1922 = vpop.f32.mrf.mxu0
        %v1923 = vadd.f32 %v1815, %v1922
        %1924 = vmatprep.mubr.f32.mxu0 0.0
        %1925 = vmatmul.mubr.f32.gmra.mxu0 %v1648
        %v1926 = vpop.f32.mrf.mxu0
        %v1927 = vadd.f32 %v1811, %v1926
        %v1928 = vpop.f32.mrf.mxu0
        %v1929 = vadd.f32 %v1815, %v1928
        %1930 = vmatprep.mubr.f32.mxu0 0.0
        %1931 = vmatmul.mubr.f32.gmra.mxu0 %v1649
        %v1932 = vpop.f32.mrf.mxu0
        %v1933 = vadd.f32 %v1811, %v1932
        %v1934 = vpop.f32.mrf.mxu0
        %v1935 = vadd.f32 %v1815, %v1934
        %1936 = vmatprep.mubr.f32.mxu0 0.0
        %1937 = vmatmul.mubr.f32.gmra.mxu0 %v1650
        %v1938 = vpop.f32.mrf.mxu0
        %v1939 = vadd.f32 %v1811, %v1938
        %v1940 = vpop.f32.mrf.mxu0
        %v1941 = vadd.f32 %v1815, %v1940
        %1942 = vmatprep.mubr.f32.mxu0 0.0
        %1943 = vmatmul.mubr.f32.gmra.mxu0 %v1651
        %v1944 = vpop.f32.mrf.mxu0
        %v1945 = vadd.f32 %v1811, %v1944
        %v1946 = vpop.f32.mrf.mxu0
        %v1947 = vadd.f32 %v1815, %v1946
        %1948 = vmatprep.mubr.f32.mxu0 0.0
        %1949 = vmatmul.mubr.f32.gmra.mxu0 %v1652
        %v1950 = vpop.f32.mrf.mxu0
        %v1951 = vadd.f32 %v1811, %v1950
        %v1952 = vpop.f32.mrf.mxu0
        %v1953 = vadd.f32 %v1815, %v1952
        %1954 = vmatprep.mubr.f32.mxu0 0.0
        %1955 = vmatmul.mubr.f32.gmra.mxu0 %v1653
        %v1956 = vpop.f32.mrf.mxu0
        %v1957 = vadd.f32 %v1811, %v1956
        %v1958 = vpop.f32.mrf.mxu0
        %v1959 = vadd.f32 %v1815, %v1958
        %1960 = vmatprep.mubr.f32.mxu0 0.0
        %1961 = vmatmul.mubr.f32.gmra.mxu0 %v1654
        %v1962 = vpop.f32.mrf.mxu0
        %v1963 = vadd.f32 %v1811, %v1962
        %v1964 = vpop.f32.mrf.mxu0
        %v1965 = vadd.f32 %v1815, %v1964
        %1966 = vmatprep.mubr.f32.mxu0 0.0
        %1967 = vmatmul.mubr.f32.gmra.mxu0 %v1655
        %v1968 = vpop.f32.mrf.mxu0
        %v1969 = vadd.f32 %v1811, %v1968
        %v1970 = vpop.f32.mrf.mxu0
        %v1971 = vadd.f32 %v1815, %v1970
        %1972 = vmatprep.mubr.f32.mxu0 0.0
        %1973 = vmatmul.mubr.f32.gmra.mxu0 %v1656
        %v1974 = vpop.f32.mrf.mxu0
        %v1975 = vadd.f32 %v1811, %v1974
        %v1976 = vpop.f32.mrf.mxu0
        %v1977 = vadd.f32 %v1815, %v1976
        %1978 = vmatprep.mubr.f32.mxu0 0.0
        %1979 = vmatmul.mubr.f32.gmra.mxu0 %v1657
        %v1980 = vpop.f32.mrf.mxu0
        %v1981 = vadd.f32 %v1811, %v1980
        %v1982 = vpop.f32.mrf.mxu0
        %v1983 = vadd.f32 %v1815, %v1982
        %1984 = vmatprep.mubr.f32.mxu0 0.0
        %1985 = vmatmul.mubr.f32.gmra.mxu0 %v1658
        %v1986 = vpop.f32.mrf.mxu0
        %v1987 = vadd.f32 %v1811, %v1986
        %v1988 = vpop.f32.mrf.mxu0
        %v1989 = vadd.f32 %v1815, %v1988
        %1990 = vmatprep.mubr.f32.mxu0 0.0
        %1991 = vmatmul.mubr.f32.gmra.mxu0 %v1659
        %v1992 = vpop.f32.mrf.mxu0
        %v1993 = vadd.f32 %v1811, %v1992
        %v1994 = vpop.f32.mrf.mxu0
        %v1995 = vadd.f32 %v1815, %v1994
        %1996 = vmatprep.mubr.f32.mxu0 0.0
        %1997 = vmatmul.mubr.f32.gmra.mxu0 %v1660
        %v1998 = vpop.f32.mrf.mxu0
        %v1999 = vadd.f32 %v1811, %v1998
        %v2000 = vpop.f32.mrf.mxu0
        %v2001 = vadd.f32 %v1815, %v2000
        %2002 = vmatprep.mubr.f32.mxu0 0.0
        %2003 = vmatmul.mubr.f32.gmra.mxu0 %v1661
        %v2004 = vpop.f32.mrf.mxu0
        %v2005 = vadd.f32 %v1811, %v2004
        %v2006 = vpop.f32.mrf.mxu0
        %v2007 = vadd.f32 %v1815, %v2006
        %2008 = vmatprep.mubr.f32.mxu0 0.0
        %2009 = vmatmul.mubr.f32.gmra.mxu0 %v1662
        %v2010 = vpop.f32.mrf.mxu0
        %v2011 = vadd.f32 %v1811, %v2010
        %v2012 = vpop.f32.mrf.mxu0
        %v2013 = vadd.f32 %v1815, %v2012
        %2014 = vmatprep.mubr.f32.mxu0 0.0
        %2015 = vmatmul.mubr.f32.gmra.mxu0 %v1663
        %v2016 = vpop.f32.mrf.mxu0
        %v2017 = vadd.f32 %v1811, %v2016
        %v2018 = vpop.f32.mrf.mxu0
        %v2019 = vadd.f32 %v1815, %v2018
        %2020 = vmatprep.mubr.f32.mxu0 0.0
        %2021 = vmatmul.mubr.f32.gmra.mxu0 %v1664
        %v2022 = vpop.f32.mrf.mxu0
        %v2023 = vadd.f32 %v1811, %v2022
        %v2024 = vpop.f32.mrf.mxu0
        %v2025 = vadd.f32 %v1815, %v2024
        %2026 = vmatprep.mubr.f32.mxu0 0.0
        %2027 = vmatmul.mubr.f32.gmra.mxu0 %v1665
        %v2028 = vpop.f32.mrf.mxu0
        %v2029 = vadd.f32 %v1811, %v2028
        %v2030 = vpop.f32.mrf.mxu0
        %v2031 = vadd.f32 %v1815, %v2030
        %2032 = vmatprep.mubr.f32.mxu0 0.0
        %2033 = vmatmul.mubr.f32.gmra.mxu0 %v1666
        %v2034 = vpop.f32.mrf.mxu0
        %v2035 = vadd.f32 %v1811, %v2034
        %v2036 = vpop.f32.mrf.mxu0
        %v2037 = vadd.f32 %v1815, %v2036
        %2038 = vmatprep.mubr.f32.mxu0 0.0
        %2039 = vmatmul.mubr.f32.gmra.mxu0 %v1667
        %v2040 = vpop.f32.mrf.mxu0
        %v2041 = vadd.f32 %v1811, %v2040
        %v2042 = vpop.f32.mrf.mxu0
        %v2043 = vadd.f32 %v1815, %v2042
        %2044 = vmatprep.mubr.f32.mxu0 0.0
        %2045 = vmatmul.mubr.f32.gmra.mxu0 %v1668
        %v2046 = vpop.f32.mrf.mxu0
        %v2047 = vadd.f32 %v1811, %v2046
        %v2048 = vpop.f32.mrf.mxu0
        %v2049 = vadd.f32 %v1815, %v2048
        %2050 = vmatprep.mubr.f32.mxu0 0.0
        %2051 = vmatmul.mubr.f32.gmra.mxu0 %v1669
        %v2052 = vpop.f32.mrf.mxu0
        %v2053 = vadd.f32 %v1811, %v2052
        %v2054 = vpop.f32.mrf.mxu0
        %v2055 = vadd.f32 %v1815, %v2054
        %2056 = vmatprep.mubr.f32.mxu0 0.0
        %2057 = vmatmul.mubr.f32.gmra.mxu0 %v1670
        %v2058 = vpop.f32.mrf.mxu0
        %v2059 = vadd.f32 %v1811, %v2058
        %v2060 = vpop.f32.mrf.mxu0
        %v2061 = vadd.f32 %v1815, %v2060
        %2062 = vmatprep.mubr.f32.mxu0 0.0
        %2063 = vmatmul.mubr.f32.gmra.mxu0 %v1671
        %v2064 = vpop.f32.mrf.mxu0
        %v2065 = vadd.f32 %v1811, %v2064
        %v2066 = vpop.f32.mrf.mxu0
        %v2067 = vadd.f32 %v1815, %v2066
        %2068 = vmatprep.mubr.f32.mxu0 0.0
        %2069 = vmatmul.mubr.f32.gmra.mxu0 %v1672
        %v2070 = vpop.f32.mrf.mxu0
        %v2071 = vadd.f32 %v1811, %v2070
        %v2072 = vpop.f32.mrf.mxu0
        %v2073 = vadd.f32 %v1815, %v2072
        %2074 = vmatprep.mubr.f32.mxu0 0.0
        %2075 = vmatmul.mubr.f32.gmra.mxu0 %v1673
        %v2076 = vpop.f32.mrf.mxu0
        %v2077 = vadd.f32 %v1811, %v2076
        %v2078 = vpop.f32.mrf.mxu0
        %v2079 = vadd.f32 %v1815, %v2078
        %2080 = vmatprep.mubr.f32.mxu0 0.0
        %2081 = vmatmul.mubr.f32.gmra.mxu0 %v1674
        %v2082 = vpop.f32.mrf.mxu0
        %v2083 = vadd.f32 %v1811, %v2082
        %v2084 = vpop.f32.mrf.mxu0
        %v2085 = vadd.f32 %v1815, %v2084
        %2086 = vmatprep.mubr.f32.mxu0 0.0
        %2087 = vmatmul.mubr.f32.gmra.mxu0 %v1675
        %v2088 = vpop.f32.mrf.mxu0
        %v2089 = vadd.f32 %v1811, %v2088
        %v2090 = vpop.f32.mrf.mxu0
        %v2091 = vadd.f32 %v1815, %v2090
        %2092 = vmatprep.mubr.f32.mxu0 0.0
        %2093 = vmatmul.mubr.f32.gmra.mxu0 %v1676
        %v2094 = vpop.f32.mrf.mxu0
        %v2095 = vadd.f32 %v1811, %v2094
        %v2096 = vpop.f32.mrf.mxu0
        %v2097 = vadd.f32 %v1815, %v2096
        %2098 = vmatprep.mubr.f32.mxu0 0.0
        %2099 = vmatmul.mubr.f32.gmra.mxu0 %v1677
        %v2100 = vpop.f32.mrf.mxu0
        %v2101 = vadd.f32 %v1811, %v2100
        %v2102 = vpop.f32.mrf.mxu0
        %v2103 = vadd.f32 %v1815, %v2102
        %2104 = vdwg.mxu0
        %2105 = vmatprep.subr.mxu0 %v1801
        %2106 = vmatpush1.msra.mxu0 %v1800
        %2107 = vmatprep.subr.mxu0 %v1793
        %2108 = vmatpush1.msra.mxu0 %v1792
        %2109 = vmatprep.subr.mxu0 %v1785
        %2110 = vmatpush1.msra.mxu0 %v1784
        %2111 = vmatprep.subr.mxu0 %v1777
        %2112 = vmatpush1.msra.mxu0 %v1776
        %2113 = vmatprep.subr.mxu0 %v1769
        %2114 = vmatpush1.msra.mxu0 %v1768
        %2115 = vmatprep.subr.mxu0 %v1761
        %2116 = vmatpush1.msra.mxu0 %v1760
        %2117 = vmatprep.subr.mxu0 %v1753
        %2118 = vmatpush1.msra.mxu0 %v1752
        %2119 = vmatprep.subr.mxu0 %v1745
        %2120 = vmatpush1.msra.mxu0 %v1744
        %2121 = vmatprep.subr.mxu0 %v1737
        %2122 = vmatpush1.msra.mxu0 %v1736
        %2123 = vmatprep.subr.mxu0 %v1729
        %2124 = vmatpush1.msra.mxu0 %v1728
        %2125 = vmatprep.subr.mxu0 %v1721
        %2126 = vmatpush1.msra.mxu0 %v1720
        %2127 = vmatprep.subr.mxu0 %v1713
        %2128 = vmatpush1.msra.mxu0 %v1712
        %2129 = vmatprep.subr.mxu0 %v1705
        %2130 = vmatpush1.msra.mxu0 %v1704
        %2131 = vmatprep.subr.mxu0 %v1697
        %2132 = vmatpush1.msra.mxu0 %v1696
        %2133 = vmatprep.subr.mxu0 %v1689
        %2134 = vmatpush1.msra.mxu0 %v1688
        %2135 = vmatprep.subr.mxu0 %v1681
        %2136 = vmatpush1.msra.mxu0 %v1680
        %2137 = vmatprep.subr.mxu0 0.0
        %2138 = vmatpush2.msra.mxu0 0.0
        %2139 = vmatprep.subr.mxu0 0.0
        %2140 = vmatpush2.msra.mxu0 0.0
        %2141 = vmatprep.subr.mxu0 0.0
        %2142 = vmatpush2.msra.mxu0 0.0
        %2143 = vmatprep.subr.mxu0 0.0
        %2144 = vmatpush2.msra.mxu0 0.0
        %2145 = vmatprep.subr.mxu0 0.0
        %2146 = vmatpush2.msra.mxu0 0.0
        %2147 = vmatprep.subr.mxu0 0.0
        %2148 = vmatpush2.msra.mxu0 0.0
        %2149 = vmatprep.subr.mxu0 0.0
        %2150 = vmatpush2.msra.mxu0 0.0
        %2151 = vmatprep.subr.mxu0 0.0
        %2152 = vmatpush2.msra.mxu0 0.0
        %2153 = vmatprep.subr.mxu0 0.0
        %2154 = vmatpush2.msra.mxu0 0.0
        %2155 = vmatprep.subr.mxu0 0.0
        %2156 = vmatpush2.msra.mxu0 0.0
        %2157 = vmatprep.subr.mxu0 0.0
        %2158 = vmatpush2.msra.mxu0 0.0
        %2159 = vmatprep.subr.mxu0 0.0
        %2160 = vmatpush2.msra.mxu0 0.0
        %2161 = vmatprep.subr.mxu0 0.0
        %2162 = vmatpush2.msra.mxu0 0.0
        %2163 = vmatprep.subr.mxu0 0.0
        %2164 = vmatpush2.msra.mxu0 0.0
        %2165 = vmatprep.subr.mxu0 0.0
        %2166 = vmatpush2.msra.mxu0 0.0
        %2167 = vmatprep.subr.mxu0 0.0
        %2168 = vmatpush2.msra.mxu0 0.0
        %2169 = vmatprep.mubr.f32.mxu0 0.0
        %2170 = vmatmul.mubr.f32.gmra.mxu0 %v1646
        %v2171 = vpop.f32.mrf.mxu0
        %v2172 = vadd.f32 %v1819, %v2171
        %v2173 = vpop.f32.mrf.mxu0
        %v2174 = vadd.f32 %v1823, %v2173
        %2175 = vmatprep.mubr.f32.mxu0 0.0
        %2176 = vmatmul.mubr.f32.gmra.mxu0 %v1647
        %v2177 = vpop.f32.mrf.mxu0
        %v2178 = vadd.f32 %v1819, %v2177
        %v2179 = vpop.f32.mrf.mxu0
        %v2180 = vadd.f32 %v1823, %v2179
        %2181 = vmatprep.mubr.f32.mxu0 0.0
        %2182 = vmatmul.mubr.f32.gmra.mxu0 %v1648
        %v2183 = vpop.f32.mrf.mxu0
        %v2184 = vadd.f32 %v1819, %v2183
        %v2185 = vpop.f32.mrf.mxu0
        %v2186 = vadd.f32 %v1823, %v2185
        %2187 = vmatprep.mubr.f32.mxu0 0.0
        %2188 = vmatmul.mubr.f32.gmra.mxu0 %v1649
        %v2189 = vpop.f32.mrf.mxu0
        %v2190 = vadd.f32 %v1819, %v2189
        %v2191 = vpop.f32.mrf.mxu0
        %v2192 = vadd.f32 %v1823, %v2191
        %2193 = vmatprep.mubr.f32.mxu0 0.0
        %2194 = vmatmul.mubr.f32.gmra.mxu0 %v1650
        %v2195 = vpop.f32.mrf.mxu0
        %v2196 = vadd.f32 %v1819, %v2195
        %v2197 = vpop.f32.mrf.mxu0
        %v2198 = vadd.f32 %v1823, %v2197
        %2199 = vmatprep.mubr.f32.mxu0 0.0
        %2200 = vmatmul.mubr.f32.gmra.mxu0 %v1651
        %v2201 = vpop.f32.mrf.mxu0
        %v2202 = vadd.f32 %v1819, %v2201
        %v2203 = vpop.f32.mrf.mxu0
        %v2204 = vadd.f32 %v1823, %v2203
        %2205 = vmatprep.mubr.f32.mxu0 0.0
        %2206 = vmatmul.mubr.f32.gmra.mxu0 %v1652
        %v2207 = vpop.f32.mrf.mxu0
        %v2208 = vadd.f32 %v1819, %v2207
        %v2209 = vpop.f32.mrf.mxu0
        %v2210 = vadd.f32 %v1823, %v2209
        %2211 = vmatprep.mubr.f32.mxu0 0.0
        %2212 = vmatmul.mubr.f32.gmra.mxu0 %v1653
        %v2213 = vpop.f32.mrf.mxu0
        %v2214 = vadd.f32 %v1819, %v2213
        %v2215 = vpop.f32.mrf.mxu0
        %v2216 = vadd.f32 %v1823, %v2215
        %2217 = vmatprep.mubr.f32.mxu0 0.0
        %2218 = vmatmul.mubr.f32.gmra.mxu0 %v1654
        %v2219 = vpop.f32.mrf.mxu0
        %v2220 = vadd.f32 %v1819, %v2219
        %v2221 = vpop.f32.mrf.mxu0
        %v2222 = vadd.f32 %v1823, %v2221
        %2223 = vmatprep.mubr.f32.mxu0 0.0
        %2224 = vmatmul.mubr.f32.gmra.mxu0 %v1655
        %v2225 = vpop.f32.mrf.mxu0
        %v2226 = vadd.f32 %v1819, %v2225
        %v2227 = vpop.f32.mrf.mxu0
        %v2228 = vadd.f32 %v1823, %v2227
        %2229 = vmatprep.mubr.f32.mxu0 0.0
        %2230 = vmatmul.mubr.f32.gmra.mxu0 %v1656
        %v2231 = vpop.f32.mrf.mxu0
        %v2232 = vadd.f32 %v1819, %v2231
        %v2233 = vpop.f32.mrf.mxu0
        %v2234 = vadd.f32 %v1823, %v2233
        %2235 = vmatprep.mubr.f32.mxu0 0.0
        %2236 = vmatmul.mubr.f32.gmra.mxu0 %v1657
        %v2237 = vpop.f32.mrf.mxu0
        %v2238 = vadd.f32 %v1819, %v2237
        %v2239 = vpop.f32.mrf.mxu0
        %v2240 = vadd.f32 %v1823, %v2239
        %2241 = vmatprep.mubr.f32.mxu0 0.0
        %2242 = vmatmul.mubr.f32.gmra.mxu0 %v1658
        %v2243 = vpop.f32.mrf.mxu0
        %v2244 = vadd.f32 %v1819, %v2243
        %v2245 = vpop.f32.mrf.mxu0
        %v2246 = vadd.f32 %v1823, %v2245
        %2247 = vmatprep.mubr.f32.mxu0 0.0
        %2248 = vmatmul.mubr.f32.gmra.mxu0 %v1659
        %v2249 = vpop.f32.mrf.mxu0
        %v2250 = vadd.f32 %v1819, %v2249
        %v2251 = vpop.f32.mrf.mxu0
        %v2252 = vadd.f32 %v1823, %v2251
        %2253 = vmatprep.mubr.f32.mxu0 0.0
        %2254 = vmatmul.mubr.f32.gmra.mxu0 %v1660
        %v2255 = vpop.f32.mrf.mxu0
        %v2256 = vadd.f32 %v1819, %v2255
        %v2257 = vpop.f32.mrf.mxu0
        %v2258 = vadd.f32 %v1823, %v2257
        %2259 = vmatprep.mubr.f32.mxu0 0.0
        %2260 = vmatmul.mubr.f32.gmra.mxu0 %v1661
        %v2261 = vpop.f32.mrf.mxu0
        %v2262 = vadd.f32 %v1819, %v2261
        %v2263 = vpop.f32.mrf.mxu0
        %v2264 = vadd.f32 %v1823, %v2263
        %2265 = vmatprep.mubr.f32.mxu0 0.0
        %2266 = vmatmul.mubr.f32.gmra.mxu0 %v1662
        %v2267 = vpop.f32.mrf.mxu0
        %v2268 = vadd.f32 %v1819, %v2267
        %v2269 = vpop.f32.mrf.mxu0
        %v2270 = vadd.f32 %v1823, %v2269
        %2271 = vmatprep.mubr.f32.mxu0 0.0
        %2272 = vmatmul.mubr.f32.gmra.mxu0 %v1663
        %v2273 = vpop.f32.mrf.mxu0
        %v2274 = vadd.f32 %v1819, %v2273
        %v2275 = vpop.f32.mrf.mxu0
        %v2276 = vadd.f32 %v1823, %v2275
        %2277 = vmatprep.mubr.f32.mxu0 0.0
        %2278 = vmatmul.mubr.f32.gmra.mxu0 %v1664
        %v2279 = vpop.f32.mrf.mxu0
        %v2280 = vadd.f32 %v1819, %v2279
        %v2281 = vpop.f32.mrf.mxu0
        %v2282 = vadd.f32 %v1823, %v2281
        %2283 = vmatprep.mubr.f32.mxu0 0.0
        %2284 = vmatmul.mubr.f32.gmra.mxu0 %v1665
        %v2285 = vpop.f32.mrf.mxu0
        %v2286 = vadd.f32 %v1819, %v2285
        %v2287 = vpop.f32.mrf.mxu0
        %v2288 = vadd.f32 %v1823, %v2287
        %2289 = vmatprep.mubr.f32.mxu0 0.0
        %2290 = vmatmul.mubr.f32.gmra.mxu0 %v1666
        %v2291 = vpop.f32.mrf.mxu0
        %v2292 = vadd.f32 %v1819, %v2291
        %v2293 = vpop.f32.mrf.mxu0
        %v2294 = vadd.f32 %v1823, %v2293
        %2295 = vmatprep.mubr.f32.mxu0 0.0
        %2296 = vmatmul.mubr.f32.gmra.mxu0 %v1667
        %v2297 = vpop.f32.mrf.mxu0
        %v2298 = vadd.f32 %v1819, %v2297
        %v2299 = vpop.f32.mrf.mxu0
        %v2300 = vadd.f32 %v1823, %v2299
        %2301 = vmatprep.mubr.f32.mxu0 0.0
        %2302 = vmatmul.mubr.f32.gmra.mxu0 %v1668
        %v2303 = vpop.f32.mrf.mxu0
        %v2304 = vadd.f32 %v1819, %v2303
        %v2305 = vpop.f32.mrf.mxu0
        %v2306 = vadd.f32 %v1823, %v2305
        %2307 = vmatprep.mubr.f32.mxu0 0.0
        %2308 = vmatmul.mubr.f32.gmra.mxu0 %v1669
        %v2309 = vpop.f32.mrf.mxu0
        %v2310 = vadd.f32 %v1819, %v2309
        %v2311 = vpop.f32.mrf.mxu0
        %v2312 = vadd.f32 %v1823, %v2311
        %2313 = vmatprep.mubr.f32.mxu0 0.0
        %2314 = vmatmul.mubr.f32.gmra.mxu0 %v1670
        %v2315 = vpop.f32.mrf.mxu0
        %v2316 = vadd.f32 %v1819, %v2315
        %v2317 = vpop.f32.mrf.mxu0
        %v2318 = vadd.f32 %v1823, %v2317
        %2319 = vmatprep.mubr.f32.mxu0 0.0
        %2320 = vmatmul.mubr.f32.gmra.mxu0 %v1671
        %v2321 = vpop.f32.mrf.mxu0
        %v2322 = vadd.f32 %v1819, %v2321
        %v2323 = vpop.f32.mrf.mxu0
        %v2324 = vadd.f32 %v1823, %v2323
        %2325 = vmatprep.mubr.f32.mxu0 0.0
        %2326 = vmatmul.mubr.f32.gmra.mxu0 %v1672
        %v2327 = vpop.f32.mrf.mxu0
        %v2328 = vadd.f32 %v1819, %v2327
        %v2329 = vpop.f32.mrf.mxu0
        %v2330 = vadd.f32 %v1823, %v2329
        %2331 = vmatprep.mubr.f32.mxu0 0.0
        %2332 = vmatmul.mubr.f32.gmra.mxu0 %v1673
        %v2333 = vpop.f32.mrf.mxu0
        %v2334 = vadd.f32 %v1819, %v2333
        %v2335 = vpop.f32.mrf.mxu0
        %v2336 = vadd.f32 %v1823, %v2335
        %2337 = vmatprep.mubr.f32.mxu0 0.0
        %2338 = vmatmul.mubr.f32.gmra.mxu0 %v1674
        %v2339 = vpop.f32.mrf.mxu0
        %v2340 = vadd.f32 %v1819, %v2339
        %v2341 = vpop.f32.mrf.mxu0
        %v2342 = vadd.f32 %v1823, %v2341
        %2343 = vmatprep.mubr.f32.mxu0 0.0
        %2344 = vmatmul.mubr.f32.gmra.mxu0 %v1675
        %v2345 = vpop.f32.mrf.mxu0
        %v2346 = vadd.f32 %v1819, %v2345
        %v2347 = vpop.f32.mrf.mxu0
        %v2348 = vadd.f32 %v1823, %v2347
        %2349 = vmatprep.mubr.f32.mxu0 0.0
        %2350 = vmatmul.mubr.f32.gmra.mxu0 %v1676
        %v2351 = vpop.f32.mrf.mxu0
        %v2352 = vadd.f32 %v1819, %v2351
        %v2353 = vpop.f32.mrf.mxu0
        %v2354 = vadd.f32 %v1823, %v2353
        %2355 = vmatprep.mubr.f32.mxu0 0.0
        %2356 = vmatmul.mubr.f32.gmra.mxu0 %v1677
        %v2357 = vpop.f32.mrf.mxu0
        %v2358 = vadd.f32 %v1819, %v2357
        %v2359 = vpop.f32.mrf.mxu0
        %v2360 = vadd.f32 %v1823, %v2359
        %2361 = vdwg.mxu0
        %2362 = vmatprep.subr.mxu0 %v1803
        %2363 = vmatpush1.msra.mxu0 %v1802
        %2364 = vmatprep.subr.mxu0 %v1795
        %2365 = vmatpush1.msra.mxu0 %v1794
        %2366 = vmatprep.subr.mxu0 %v1787
        %2367 = vmatpush1.msra.mxu0 %v1786
        %2368 = vmatprep.subr.mxu0 %v1779
        %2369 = vmatpush1.msra.mxu0 %v1778
        %2370 = vmatprep.subr.mxu0 %v1771
        %2371 = vmatpush1.msra.mxu0 %v1770
        %2372 = vmatprep.subr.mxu0 %v1763
        %2373 = vmatpush1.msra.mxu0 %v1762
        %2374 = vmatprep.subr.mxu0 %v1755
        %2375 = vmatpush1.msra.mxu0 %v1754
        %2376 = vmatprep.subr.mxu0 %v1747
        %2377 = vmatpush1.msra.mxu0 %v1746
        %2378 = vmatprep.subr.mxu0 %v1739
        %2379 = vmatpush1.msra.mxu0 %v1738
        %2380 = vmatprep.subr.mxu0 %v1731
        %2381 = vmatpush1.msra.mxu0 %v1730
        %2382 = vmatprep.subr.mxu0 %v1723
        %2383 = vmatpush1.msra.mxu0 %v1722
        %2384 = vmatprep.subr.mxu0 %v1715
        %2385 = vmatpush1.msra.mxu0 %v1714
        %2386 = vmatprep.subr.mxu0 %v1707
        %2387 = vmatpush1.msra.mxu0 %v1706
        %2388 = vmatprep.subr.mxu0 %v1699
        %2389 = vmatpush1.msra.mxu0 %v1698
        %2390 = vmatprep.subr.mxu0 %v1691
        %2391 = vmatpush1.msra.mxu0 %v1690
        %2392 = vmatprep.subr.mxu0 %v1683
        %2393 = vmatpush1.msra.mxu0 %v1682
        %2394 = vmatprep.subr.mxu0 0.0
        %2395 = vmatpush2.msra.mxu0 0.0
        %2396 = vmatprep.subr.mxu0 0.0
        %2397 = vmatpush2.msra.mxu0 0.0
        %2398 = vmatprep.subr.mxu0 0.0
        %2399 = vmatpush2.msra.mxu0 0.0
        %2400 = vmatprep.subr.mxu0 0.0
        %2401 = vmatpush2.msra.mxu0 0.0
        %2402 = vmatprep.subr.mxu0 0.0
        %2403 = vmatpush2.msra.mxu0 0.0
        %2404 = vmatprep.subr.mxu0 0.0
        %2405 = vmatpush2.msra.mxu0 0.0
        %2406 = vmatprep.subr.mxu0 0.0
        %2407 = vmatpush2.msra.mxu0 0.0
        %2408 = vmatprep.subr.mxu0 0.0
        %2409 = vmatpush2.msra.mxu0 0.0
        %2410 = vmatprep.subr.mxu0 0.0
        %2411 = vmatpush2.msra.mxu0 0.0
        %2412 = vmatprep.subr.mxu0 0.0
        %2413 = vmatpush2.msra.mxu0 0.0
        %2414 = vmatprep.subr.mxu0 0.0
        %2415 = vmatpush2.msra.mxu0 0.0
        %2416 = vmatprep.subr.mxu0 0.0
        %2417 = vmatpush2.msra.mxu0 0.0
        %2418 = vmatprep.subr.mxu0 0.0
        %2419 = vmatpush2.msra.mxu0 0.0
        %2420 = vmatprep.subr.mxu0 0.0
        %2421 = vmatpush2.msra.mxu0 0.0
        %2422 = vmatprep.subr.mxu0 0.0
        %2423 = vmatpush2.msra.mxu0 0.0
        %2424 = vmatprep.subr.mxu0 0.0
        %2425 = vmatpush2.msra.mxu0 0.0
        %2426 = vmatprep.mubr.f32.mxu0 0.0
        %2427 = vmatmul.mubr.f32.gmra.mxu0 %v1646
        %v2428 = vpop.f32.mrf.mxu0
        %v2429 = vadd.f32 %v1827, %v2428
        %v2430 = vpop.f32.mrf.mxu0
        %v2431 = vadd.f32 %v1831, %v2430
        %2432 = vmatprep.mubr.f32.mxu0 0.0
        %2433 = vmatmul.mubr.f32.gmra.mxu0 %v1647
        %v2434 = vpop.f32.mrf.mxu0
        %v2435 = vadd.f32 %v1827, %v2434
        %v2436 = vpop.f32.mrf.mxu0
        %v2437 = vadd.f32 %v1831, %v2436
        %2438 = vmatprep.mubr.f32.mxu0 0.0
        %2439 = vmatmul.mubr.f32.gmra.mxu0 %v1648
        %v2440 = vpop.f32.mrf.mxu0
        %v2441 = vadd.f32 %v1827, %v2440
        %v2442 = vpop.f32.mrf.mxu0
        %v2443 = vadd.f32 %v1831, %v2442
        %2444 = vmatprep.mubr.f32.mxu0 0.0
        %2445 = vmatmul.mubr.f32.gmra.mxu0 %v1649
        %v2446 = vpop.f32.mrf.mxu0
        %v2447 = vadd.f32 %v1827, %v2446
        %v2448 = vpop.f32.mrf.mxu0
        %v2449 = vadd.f32 %v1831, %v2448
        %2450 = vmatprep.mubr.f32.mxu0 0.0
        %2451 = vmatmul.mubr.f32.gmra.mxu0 %v1650
        %v2452 = vpop.f32.mrf.mxu0
        %v2453 = vadd.f32 %v1827, %v2452
        %v2454 = vpop.f32.mrf.mxu0
        %v2455 = vadd.f32 %v1831, %v2454
        %2456 = vmatprep.mubr.f32.mxu0 0.0
        %2457 = vmatmul.mubr.f32.gmra.mxu0 %v1651
        %v2458 = vpop.f32.mrf.mxu0
        %v2459 = vadd.f32 %v1827, %v2458
        %v2460 = vpop.f32.mrf.mxu0
        %v2461 = vadd.f32 %v1831, %v2460
        %2462 = vmatprep.mubr.f32.mxu0 0.0
        %2463 = vmatmul.mubr.f32.gmra.mxu0 %v1652
        %v2464 = vpop.f32.mrf.mxu0
        %v2465 = vadd.f32 %v1827, %v2464
        %v2466 = vpop.f32.mrf.mxu0
        %v2467 = vadd.f32 %v1831, %v2466
        %2468 = vmatprep.mubr.f32.mxu0 0.0
        %2469 = vmatmul.mubr.f32.gmra.mxu0 %v1653
        %v2470 = vpop.f32.mrf.mxu0
        %v2471 = vadd.f32 %v1827, %v2470
        %v2472 = vpop.f32.mrf.mxu0
        %v2473 = vadd.f32 %v1831, %v2472
        %2474 = vmatprep.mubr.f32.mxu0 0.0
        %2475 = vmatmul.mubr.f32.gmra.mxu0 %v1654
        %v2476 = vpop.f32.mrf.mxu0
        %v2477 = vadd.f32 %v1827, %v2476
        %v2478 = vpop.f32.mrf.mxu0
        %v2479 = vadd.f32 %v1831, %v2478
        %2480 = vmatprep.mubr.f32.mxu0 0.0
        %2481 = vmatmul.mubr.f32.gmra.mxu0 %v1655
        %v2482 = vpop.f32.mrf.mxu0
        %v2483 = vadd.f32 %v1827, %v2482
        %v2484 = vpop.f32.mrf.mxu0
        %v2485 = vadd.f32 %v1831, %v2484
        %2486 = vmatprep.mubr.f32.mxu0 0.0
        %2487 = vmatmul.mubr.f32.gmra.mxu0 %v1656
        %v2488 = vpop.f32.mrf.mxu0
        %v2489 = vadd.f32 %v1827, %v2488
        %v2490 = vpop.f32.mrf.mxu0
        %v2491 = vadd.f32 %v1831, %v2490
        %2492 = vmatprep.mubr.f32.mxu0 0.0
        %2493 = vmatmul.mubr.f32.gmra.mxu0 %v1657
        %v2494 = vpop.f32.mrf.mxu0
        %v2495 = vadd.f32 %v1827, %v2494
        %v2496 = vpop.f32.mrf.mxu0
        %v2497 = vadd.f32 %v1831, %v2496
        %2498 = vmatprep.mubr.f32.mxu0 0.0
        %2499 = vmatmul.mubr.f32.gmra.mxu0 %v1658
        %v2500 = vpop.f32.mrf.mxu0
        %v2501 = vadd.f32 %v1827, %v2500
        %v2502 = vpop.f32.mrf.mxu0
        %v2503 = vadd.f32 %v1831, %v2502
        %2504 = vmatprep.mubr.f32.mxu0 0.0
        %2505 = vmatmul.mubr.f32.gmra.mxu0 %v1659
        %v2506 = vpop.f32.mrf.mxu0
        %v2507 = vadd.f32 %v1827, %v2506
        %v2508 = vpop.f32.mrf.mxu0
        %v2509 = vadd.f32 %v1831, %v2508
        %2510 = vmatprep.mubr.f32.mxu0 0.0
        %2511 = vmatmul.mubr.f32.gmra.mxu0 %v1660
        %v2512 = vpop.f32.mrf.mxu0
        %v2513 = vadd.f32 %v1827, %v2512
        %v2514 = vpop.f32.mrf.mxu0
        %v2515 = vadd.f32 %v1831, %v2514
        %2516 = vmatprep.mubr.f32.mxu0 0.0
        %2517 = vmatmul.mubr.f32.gmra.mxu0 %v1661
        %v2518 = vpop.f32.mrf.mxu0
        %v2519 = vadd.f32 %v1827, %v2518
        %v2520 = vpop.f32.mrf.mxu0
        %v2521 = vadd.f32 %v1831, %v2520
        %2522 = vmatprep.mubr.f32.mxu0 0.0
        %2523 = vmatmul.mubr.f32.gmra.mxu0 %v1662
        %v2524 = vpop.f32.mrf.mxu0
        %v2525 = vadd.f32 %v1827, %v2524
        %v2526 = vpop.f32.mrf.mxu0
        %v2527 = vadd.f32 %v1831, %v2526
        %2528 = vmatprep.mubr.f32.mxu0 0.0
        %2529 = vmatmul.mubr.f32.gmra.mxu0 %v1663
        %v2530 = vpop.f32.mrf.mxu0
        %v2531 = vadd.f32 %v1827, %v2530
        %v2532 = vpop.f32.mrf.mxu0
        %v2533 = vadd.f32 %v1831, %v2532
        %2534 = vmatprep.mubr.f32.mxu0 0.0
        %2535 = vmatmul.mubr.f32.gmra.mxu0 %v1664
        %v2536 = vpop.f32.mrf.mxu0
        %v2537 = vadd.f32 %v1827, %v2536
        %v2538 = vpop.f32.mrf.mxu0
        %v2539 = vadd.f32 %v1831, %v2538
        %2540 = vmatprep.mubr.f32.mxu0 0.0
        %2541 = vmatmul.mubr.f32.gmra.mxu0 %v1665
        %v2542 = vpop.f32.mrf.mxu0
        %v2543 = vadd.f32 %v1827, %v2542
        %v2544 = vpop.f32.mrf.mxu0
        %v2545 = vadd.f32 %v1831, %v2544
        %2546 = vmatprep.mubr.f32.mxu0 0.0
        %2547 = vmatmul.mubr.f32.gmra.mxu0 %v1666
        %v2548 = vpop.f32.mrf.mxu0
        %v2549 = vadd.f32 %v1827, %v2548
        %v2550 = vpop.f32.mrf.mxu0
        %v2551 = vadd.f32 %v1831, %v2550
        %2552 = vmatprep.mubr.f32.mxu0 0.0
        %2553 = vmatmul.mubr.f32.gmra.mxu0 %v1667
        %v2554 = vpop.f32.mrf.mxu0
        %v2555 = vadd.f32 %v1827, %v2554
        %v2556 = vpop.f32.mrf.mxu0
        %v2557 = vadd.f32 %v1831, %v2556
        %2558 = vmatprep.mubr.f32.mxu0 0.0
        %2559 = vmatmul.mubr.f32.gmra.mxu0 %v1668
        %v2560 = vpop.f32.mrf.mxu0
        %v2561 = vadd.f32 %v1827, %v2560
        %v2562 = vpop.f32.mrf.mxu0
        %v2563 = vadd.f32 %v1831, %v2562
        %2564 = vmatprep.mubr.f32.mxu0 0.0
        %2565 = vmatmul.mubr.f32.gmra.mxu0 %v1669
        %v2566 = vpop.f32.mrf.mxu0
        %v2567 = vadd.f32 %v1827, %v2566
        %v2568 = vpop.f32.mrf.mxu0
        %v2569 = vadd.f32 %v1831, %v2568
        %2570 = vmatprep.mubr.f32.mxu0 0.0
        %2571 = vmatmul.mubr.f32.gmra.mxu0 %v1670
        %v2572 = vpop.f32.mrf.mxu0
        %v2573 = vadd.f32 %v1827, %v2572
        %v2574 = vpop.f32.mrf.mxu0
        %v2575 = vadd.f32 %v1831, %v2574
        %2576 = vmatprep.mubr.f32.mxu0 0.0
        %2577 = vmatmul.mubr.f32.gmra.mxu0 %v1671
        %v2578 = vpop.f32.mrf.mxu0
        %v2579 = vadd.f32 %v1827, %v2578
        %v2580 = vpop.f32.mrf.mxu0
        %v2581 = vadd.f32 %v1831, %v2580
        %2582 = vmatprep.mubr.f32.mxu0 0.0
        %2583 = vmatmul.mubr.f32.gmra.mxu0 %v1672
        %v2584 = vpop.f32.mrf.mxu0
        %v2585 = vadd.f32 %v1827, %v2584
        %v2586 = vpop.f32.mrf.mxu0
        %v2587 = vadd.f32 %v1831, %v2586
        %2588 = vmatprep.mubr.f32.mxu0 0.0
        %2589 = vmatmul.mubr.f32.gmra.mxu0 %v1673
        %v2590 = vpop.f32.mrf.mxu0
        %v2591 = vadd.f32 %v1827, %v2590
        %v2592 = vpop.f32.mrf.mxu0
        %v2593 = vadd.f32 %v1831, %v2592
        %2594 = vmatprep.mubr.f32.mxu0 0.0
        %2595 = vmatmul.mubr.f32.gmra.mxu0 %v1674
        %v2596 = vpop.f32.mrf.mxu0
        %v2597 = vadd.f32 %v1827, %v2596
        %v2598 = vpop.f32.mrf.mxu0
        %v2599 = vadd.f32 %v1831, %v2598
        %2600 = vmatprep.mubr.f32.mxu0 0.0
        %2601 = vmatmul.mubr.f32.gmra.mxu0 %v1675
        %v2602 = vpop.f32.mrf.mxu0
        %v2603 = vadd.f32 %v1827, %v2602
        %v2604 = vpop.f32.mrf.mxu0
        %v2605 = vadd.f32 %v1831, %v2604
        %2606 = vmatprep.mubr.f32.mxu0 0.0
        %2607 = vmatmul.mubr.f32.gmra.mxu0 %v1676
        %v2608 = vpop.f32.mrf.mxu0
        %v2609 = vadd.f32 %v1827, %v2608
        %v2610 = vpop.f32.mrf.mxu0
        %v2611 = vadd.f32 %v1831, %v2610
        %2612 = vmatprep.mubr.f32.mxu0 0.0
        %2613 = vmatmul.mubr.f32.gmra.mxu0 %v1677
        %v2614 = vpop.f32.mrf.mxu0
        %v2615 = vadd.f32 %v1827, %v2614
        %v2616 = vpop.f32.mrf.mxu0
        %v2617 = vadd.f32 %v1831, %v2616
        %2618 = vdwg.mxu0
        %2619 = vmatprep.subr.mxu0 %v1805
        %2620 = vmatpush1.msra.mxu0 %v1804
        %2621 = vmatprep.subr.mxu0 %v1797
        %2622 = vmatpush1.msra.mxu0 %v1796
        %2623 = vmatprep.subr.mxu0 %v1789
        %2624 = vmatpush1.msra.mxu0 %v1788
        %2625 = vmatprep.subr.mxu0 %v1781
        %2626 = vmatpush1.msra.mxu0 %v1780
        %2627 = vmatprep.subr.mxu0 %v1773
        %2628 = vmatpush1.msra.mxu0 %v1772
        %2629 = vmatprep.subr.mxu0 %v1765
        %2630 = vmatpush1.msra.mxu0 %v1764
        %2631 = vmatprep.subr.mxu0 %v1757
        %2632 = vmatpush1.msra.mxu0 %v1756
        %2633 = vmatprep.subr.mxu0 %v1749
        %2634 = vmatpush1.msra.mxu0 %v1748
        %2635 = vmatprep.subr.mxu0 %v1741
        %2636 = vmatpush1.msra.mxu0 %v1740
        %2637 = vmatprep.subr.mxu0 %v1733
        %2638 = vmatpush1.msra.mxu0 %v1732
        %2639 = vmatprep.subr.mxu0 %v1725
        %2640 = vmatpush1.msra.mxu0 %v1724
        %2641 = vmatprep.subr.mxu0 %v1717
        %2642 = vmatpush1.msra.mxu0 %v1716
        %2643 = vmatprep.subr.mxu0 %v1709
        %2644 = vmatpush1.msra.mxu0 %v1708
        %2645 = vmatprep.subr.mxu0 %v1701
        %2646 = vmatpush1.msra.mxu0 %v1700
        %2647 = vmatprep.subr.mxu0 %v1693
        %2648 = vmatpush1.msra.mxu0 %v1692
        %2649 = vmatprep.subr.mxu0 %v1685
        %2650 = vmatpush1.msra.mxu0 %v1684
        %2651 = vmatprep.subr.mxu0 0.0
        %2652 = vmatpush2.msra.mxu0 0.0
        %2653 = vmatprep.subr.mxu0 0.0
        %2654 = vmatpush2.msra.mxu0 0.0
        %2655 = vmatprep.subr.mxu0 0.0
        %2656 = vmatpush2.msra.mxu0 0.0
        %2657 = vmatprep.subr.mxu0 0.0
        %2658 = vmatpush2.msra.mxu0 0.0
        %2659 = vmatprep.subr.mxu0 0.0
        %2660 = vmatpush2.msra.mxu0 0.0
        %2661 = vmatprep.subr.mxu0 0.0
        %2662 = vmatpush2.msra.mxu0 0.0
        %2663 = vmatprep.subr.mxu0 0.0
        %2664 = vmatpush2.msra.mxu0 0.0
        %2665 = vmatprep.subr.mxu0 0.0
        %2666 = vmatpush2.msra.mxu0 0.0
        %2667 = vmatprep.subr.mxu0 0.0
        %2668 = vmatpush2.msra.mxu0 0.0
        %2669 = vmatprep.subr.mxu0 0.0
        %2670 = vmatpush2.msra.mxu0 0.0
        %2671 = vmatprep.subr.mxu0 0.0
        %2672 = vmatpush2.msra.mxu0 0.0
        %2673 = vmatprep.subr.mxu0 0.0
        %2674 = vmatpush2.msra.mxu0 0.0
        %2675 = vmatprep.subr.mxu0 0.0
        %2676 = vmatpush2.msra.mxu0 0.0
        %2677 = vmatprep.subr.mxu0 0.0
        %2678 = vmatpush2.msra.mxu0 0.0
        %2679 = vmatprep.subr.mxu0 0.0
        %2680 = vmatpush2.msra.mxu0 0.0
        %2681 = vmatprep.subr.mxu0 0.0
        %2682 = vmatpush2.msra.mxu0 0.0
        %2683 = vmatprep.mubr.f32.mxu0 0.0
        %2684 = vmatmul.mubr.f32.gmra.mxu0 %v1646
        %v2685 = vpop.f32.mrf.mxu0
        %v2686 = vadd.f32 %v1835, %v2685
        %v2687 = vpop.f32.mrf.mxu0
        %v2688 = vadd.f32 %v1839, %v2687
        %2689 = vmatprep.mubr.f32.mxu0 0.0
        %2690 = vmatmul.mubr.f32.gmra.mxu0 %v1647
        %v2691 = vpop.f32.mrf.mxu0
        %v2692 = vadd.f32 %v1835, %v2691
        %v2693 = vpop.f32.mrf.mxu0
        %v2694 = vadd.f32 %v1839, %v2693
        %2695 = vmatprep.mubr.f32.mxu0 0.0
        %2696 = vmatmul.mubr.f32.gmra.mxu0 %v1648
        %v2697 = vpop.f32.mrf.mxu0
        %v2698 = vadd.f32 %v1835, %v2697
        %v2699 = vpop.f32.mrf.mxu0
        %v2700 = vadd.f32 %v1839, %v2699
        %2701 = vmatprep.mubr.f32.mxu0 0.0
        %2702 = vmatmul.mubr.f32.gmra.mxu0 %v1649
        %v2703 = vpop.f32.mrf.mxu0
        %v2704 = vadd.f32 %v1835, %v2703
        %v2705 = vpop.f32.mrf.mxu0
        %v2706 = vadd.f32 %v1839, %v2705
        %2707 = vmatprep.mubr.f32.mxu0 0.0
        %2708 = vmatmul.mubr.f32.gmra.mxu0 %v1650
        %v2709 = vpop.f32.mrf.mxu0
        %v2710 = vadd.f32 %v1835, %v2709
        %v2711 = vpop.f32.mrf.mxu0
        %v2712 = vadd.f32 %v1839, %v2711
        %2713 = vmatprep.mubr.f32.mxu0 0.0
        %2714 = vmatmul.mubr.f32.gmra.mxu0 %v1651
        %v2715 = vpop.f32.mrf.mxu0
        %v2716 = vadd.f32 %v1835, %v2715
        %v2717 = vpop.f32.mrf.mxu0
        %v2718 = vadd.f32 %v1839, %v2717
        %2719 = vmatprep.mubr.f32.mxu0 0.0
        %2720 = vmatmul.mubr.f32.gmra.mxu0 %v1652
        %v2721 = vpop.f32.mrf.mxu0
        %v2722 = vadd.f32 %v1835, %v2721
        %v2723 = vpop.f32.mrf.mxu0
        %v2724 = vadd.f32 %v1839, %v2723
        %2725 = vmatprep.mubr.f32.mxu0 0.0
        %2726 = vmatmul.mubr.f32.gmra.mxu0 %v1653
        %v2727 = vpop.f32.mrf.mxu0
        %v2728 = vadd.f32 %v1835, %v2727
        %v2729 = vpop.f32.mrf.mxu0
        %v2730 = vadd.f32 %v1839, %v2729
        %2731 = vmatprep.mubr.f32.mxu0 0.0
        %2732 = vmatmul.mubr.f32.gmra.mxu0 %v1654
        %v2733 = vpop.f32.mrf.mxu0
        %v2734 = vadd.f32 %v1835, %v2733
        %v2735 = vpop.f32.mrf.mxu0
        %v2736 = vadd.f32 %v1839, %v2735
        %2737 = vmatprep.mubr.f32.mxu0 0.0
        %2738 = vmatmul.mubr.f32.gmra.mxu0 %v1655
        %v2739 = vpop.f32.mrf.mxu0
        %v2740 = vadd.f32 %v1835, %v2739
        %v2741 = vpop.f32.mrf.mxu0
        %v2742 = vadd.f32 %v1839, %v2741
        %2743 = vmatprep.mubr.f32.mxu0 0.0
        %2744 = vmatmul.mubr.f32.gmra.mxu0 %v1656
        %v2745 = vpop.f32.mrf.mxu0
        %v2746 = vadd.f32 %v1835, %v2745
        %v2747 = vpop.f32.mrf.mxu0
        %v2748 = vadd.f32 %v1839, %v2747
        %2749 = vmatprep.mubr.f32.mxu0 0.0
        %2750 = vmatmul.mubr.f32.gmra.mxu0 %v1657
        %v2751 = vpop.f32.mrf.mxu0
        %v2752 = vadd.f32 %v1835, %v2751
        %v2753 = vpop.f32.mrf.mxu0
        %v2754 = vadd.f32 %v1839, %v2753
        %2755 = vmatprep.mubr.f32.mxu0 0.0
        %2756 = vmatmul.mubr.f32.gmra.mxu0 %v1658
        %v2757 = vpop.f32.mrf.mxu0
        %v2758 = vadd.f32 %v1835, %v2757
        %v2759 = vpop.f32.mrf.mxu0
        %v2760 = vadd.f32 %v1839, %v2759
        %2761 = vmatprep.mubr.f32.mxu0 0.0
        %2762 = vmatmul.mubr.f32.gmra.mxu0 %v1659
        %v2763 = vpop.f32.mrf.mxu0
        %v2764 = vadd.f32 %v1835, %v2763
        %v2765 = vpop.f32.mrf.mxu0
        %v2766 = vadd.f32 %v1839, %v2765
        %2767 = vmatprep.mubr.f32.mxu0 0.0
        %2768 = vmatmul.mubr.f32.gmra.mxu0 %v1660
        %v2769 = vpop.f32.mrf.mxu0
        %v2770 = vadd.f32 %v1835, %v2769
        %v2771 = vpop.f32.mrf.mxu0
        %v2772 = vadd.f32 %v1839, %v2771
        %2773 = vmatprep.mubr.f32.mxu0 0.0
        %2774 = vmatmul.mubr.f32.gmra.mxu0 %v1661
        %v2775 = vpop.f32.mrf.mxu0
        %v2776 = vadd.f32 %v1835, %v2775
        %v2777 = vpop.f32.mrf.mxu0
        %v2778 = vadd.f32 %v1839, %v2777
        %2779 = vmatprep.mubr.f32.mxu0 0.0
        %2780 = vmatmul.mubr.f32.gmra.mxu0 %v1662
        %v2781 = vpop.f32.mrf.mxu0
        %v2782 = vadd.f32 %v1835, %v2781
        %v2783 = vpop.f32.mrf.mxu0
        %v2784 = vadd.f32 %v1839, %v2783
        %2785 = vmatprep.mubr.f32.mxu0 0.0
        %2786 = vmatmul.mubr.f32.gmra.mxu0 %v1663
        %v2787 = vpop.f32.mrf.mxu0
        %v2788 = vadd.f32 %v1835, %v2787
        %v2789 = vpop.f32.mrf.mxu0
        %v2790 = vadd.f32 %v1839, %v2789
        %2791 = vmatprep.mubr.f32.mxu0 0.0
        %2792 = vmatmul.mubr.f32.gmra.mxu0 %v1664
        %v2793 = vpop.f32.mrf.mxu0
        %v2794 = vadd.f32 %v1835, %v2793
        %v2795 = vpop.f32.mrf.mxu0
        %v2796 = vadd.f32 %v1839, %v2795
        %2797 = vmatprep.mubr.f32.mxu0 0.0
        %2798 = vmatmul.mubr.f32.gmra.mxu0 %v1665
        %v2799 = vpop.f32.mrf.mxu0
        %v2800 = vadd.f32 %v1835, %v2799
        %v2801 = vpop.f32.mrf.mxu0
        %v2802 = vadd.f32 %v1839, %v2801
        %2803 = vmatprep.mubr.f32.mxu0 0.0
        %2804 = vmatmul.mubr.f32.gmra.mxu0 %v1666
        %v2805 = vpop.f32.mrf.mxu0
        %v2806 = vadd.f32 %v1835, %v2805
        %v2807 = vpop.f32.mrf.mxu0
        %v2808 = vadd.f32 %v1839, %v2807
        %2809 = vmatprep.mubr.f32.mxu0 0.0
        %2810 = vmatmul.mubr.f32.gmra.mxu0 %v1667
        %v2811 = vpop.f32.mrf.mxu0
        %v2812 = vadd.f32 %v1835, %v2811
        %v2813 = vpop.f32.mrf.mxu0
        %v2814 = vadd.f32 %v1839, %v2813
        %2815 = vmatprep.mubr.f32.mxu0 0.0
        %2816 = vmatmul.mubr.f32.gmra.mxu0 %v1668
        %v2817 = vpop.f32.mrf.mxu0
        %v2818 = vadd.f32 %v1835, %v2817
        %v2819 = vpop.f32.mrf.mxu0
        %v2820 = vadd.f32 %v1839, %v2819
        %2821 = vmatprep.mubr.f32.mxu0 0.0
        %2822 = vmatmul.mubr.f32.gmra.mxu0 %v1669
        %v2823 = vpop.f32.mrf.mxu0
        %v2824 = vadd.f32 %v1835, %v2823
        %v2825 = vpop.f32.mrf.mxu0
        %v2826 = vadd.f32 %v1839, %v2825
        %2827 = vmatprep.mubr.f32.mxu0 0.0
        %2828 = vmatmul.mubr.f32.gmra.mxu0 %v1670
        %v2829 = vpop.f32.mrf.mxu0
        %v2830 = vadd.f32 %v1835, %v2829
        %v2831 = vpop.f32.mrf.mxu0
        %v2832 = vadd.f32 %v1839, %v2831
        %2833 = vmatprep.mubr.f32.mxu0 0.0
        %2834 = vmatmul.mubr.f32.gmra.mxu0 %v1671
        %v2835 = vpop.f32.mrf.mxu0
        %v2836 = vadd.f32 %v1835, %v2835
        %v2837 = vpop.f32.mrf.mxu0
        %v2838 = vadd.f32 %v1839, %v2837
        %2839 = vmatprep.mubr.f32.mxu0 0.0
        %2840 = vmatmul.mubr.f32.gmra.mxu0 %v1672
        %v2841 = vpop.f32.mrf.mxu0
        %v2842 = vadd.f32 %v1835, %v2841
        %v2843 = vpop.f32.mrf.mxu0
        %v2844 = vadd.f32 %v1839, %v2843
        %2845 = vmatprep.mubr.f32.mxu0 0.0
        %2846 = vmatmul.mubr.f32.gmra.mxu0 %v1673
        %v2847 = vpop.f32.mrf.mxu0
        %v2848 = vadd.f32 %v1835, %v2847
        %v2849 = vpop.f32.mrf.mxu0
        %v2850 = vadd.f32 %v1839, %v2849
        %2851 = vmatprep.mubr.f32.mxu0 0.0
        %2852 = vmatmul.mubr.f32.gmra.mxu0 %v1674
        %v2853 = vpop.f32.mrf.mxu0
        %v2854 = vadd.f32 %v1835, %v2853
        %v2855 = vpop.f32.mrf.mxu0
        %v2856 = vadd.f32 %v1839, %v2855
        %2857 = vmatprep.mubr.f32.mxu0 0.0
        %2858 = vmatmul.mubr.f32.gmra.mxu0 %v1675
        %v2859 = vpop.f32.mrf.mxu0
        %v2860 = vadd.f32 %v1835, %v2859
        %v2861 = vpop.f32.mrf.mxu0
        %v2862 = vadd.f32 %v1839, %v2861
        %2863 = vmatprep.mubr.f32.mxu0 0.0
        %2864 = vmatmul.mubr.f32.gmra.mxu0 %v1676
        %v2865 = vpop.f32.mrf.mxu0
        %v2866 = vadd.f32 %v1835, %v2865
        %v2867 = vpop.f32.mrf.mxu0
        %v2868 = vadd.f32 %v1839, %v2867
        %2869 = vmatprep.mubr.f32.mxu0 0.0
        %2870 = vmatmul.mubr.f32.gmra.mxu0 %v1677
        %v2871 = vpop.f32.mrf.mxu0
        %v2872 = vadd.f32 %v1835, %v2871
        %v2873 = vpop.f32.mrf.mxu0
        %v2874 = vadd.f32 %v1839, %v2873
        %2875 = vdwg.mxu0
        %v2876 = vmax.f32 %v1915, 0.0
        %v2877 = vmax.f32 %v1917, 0.0
        %v2878 = vmax.f32 %v2172, 0.0
        %v2879 = vmax.f32 %v2174, 0.0
        %v2880 = vmax.f32 %v2429, 0.0
        %v2881 = vmax.f32 %v2431, 0.0
        %v2882 = vmax.f32 %v2686, 0.0
        %v2883 = vmax.f32 %v2688, 0.0
        %v2884 = vmax.f32 %v1921, 0.0
        %v2885 = vmax.f32 %v1923, 0.0
        %v2886 = vmax.f32 %v2178, 0.0
        %v2887 = vmax.f32 %v2180, 0.0
        %v2888 = vmax.f32 %v2435, 0.0
        %v2889 = vmax.f32 %v2437, 0.0
        %v2890 = vmax.f32 %v2692, 0.0
        %v2891 = vmax.f32 %v2694, 0.0
        %v2892 = vmax.f32 %v1927, 0.0
        %v2893 = vmax.f32 %v1929, 0.0
        %v2894 = vmax.f32 %v2184, 0.0
        %v2895 = vmax.f32 %v2186, 0.0
        %v2896 = vmax.f32 %v2441, 0.0
        %v2897 = vmax.f32 %v2443, 0.0
        %v2898 = vmax.f32 %v2698, 0.0
        %v2899 = vmax.f32 %v2700, 0.0
        %v2900 = vmax.f32 %v1933, 0.0
        %v2901 = vmax.f32 %v1935, 0.0
        %v2902 = vmax.f32 %v2190, 0.0
        %v2903 = vmax.f32 %v2192, 0.0
        %v2904 = vmax.f32 %v2447, 0.0
        %v2905 = vmax.f32 %v2449, 0.0
        %v2906 = vmax.f32 %v2704, 0.0
        %v2907 = vmax.f32 %v2706, 0.0
        %v2908 = vmax.f32 %v1939, 0.0
        %v2909 = vmax.f32 %v1941, 0.0
        %v2910 = vmax.f32 %v2196, 0.0
        %v2911 = vmax.f32 %v2198, 0.0
        %v2912 = vmax.f32 %v2453, 0.0
        %v2913 = vmax.f32 %v2455, 0.0
        %v2914 = vmax.f32 %v2710, 0.0
        %v2915 = vmax.f32 %v2712, 0.0
        %v2916 = vmax.f32 %v1945, 0.0
        %v2917 = vmax.f32 %v1947, 0.0
        %v2918 = vmax.f32 %v2202, 0.0
        %v2919 = vmax.f32 %v2204, 0.0
        %v2920 = vmax.f32 %v2459, 0.0
        %v2921 = vmax.f32 %v2461, 0.0
        %v2922 = vmax.f32 %v2716, 0.0
        %v2923 = vmax.f32 %v2718, 0.0
        %v2924 = vmax.f32 %v1951, 0.0
        %v2925 = vmax.f32 %v1953, 0.0
        %v2926 = vmax.f32 %v2208, 0.0
        %v2927 = vmax.f32 %v2210, 0.0
        %v2928 = vmax.f32 %v2465, 0.0
        %v2929 = vmax.f32 %v2467, 0.0
        %v2930 = vmax.f32 %v2722, 0.0
        %v2931 = vmax.f32 %v2724, 0.0
        %v2932 = vmax.f32 %v1957, 0.0
        %v2933 = vmax.f32 %v1959, 0.0
        %v2934 = vmax.f32 %v2214, 0.0
        %v2935 = vmax.f32 %v2216, 0.0
        %v2936 = vmax.f32 %v2471, 0.0
        %v2937 = vmax.f32 %v2473, 0.0
        %v2938 = vmax.f32 %v2728, 0.0
        %v2939 = vmax.f32 %v2730, 0.0
        %v2940 = vmax.f32 %v1963, 0.0
        %v2941 = vmax.f32 %v1965, 0.0
        %v2942 = vmax.f32 %v2220, 0.0
        %v2943 = vmax.f32 %v2222, 0.0
        %v2944 = vmax.f32 %v2477, 0.0
        %v2945 = vmax.f32 %v2479, 0.0
        %v2946 = vmax.f32 %v2734, 0.0
        %v2947 = vmax.f32 %v2736, 0.0
        %v2948 = vmax.f32 %v1969, 0.0
        %v2949 = vmax.f32 %v1971, 0.0
        %v2950 = vmax.f32 %v2226, 0.0
        %v2951 = vmax.f32 %v2228, 0.0
        %v2952 = vmax.f32 %v2483, 0.0
        %v2953 = vmax.f32 %v2485, 0.0
        %v2954 = vmax.f32 %v2740, 0.0
        %v2955 = vmax.f32 %v2742, 0.0
        %v2956 = vmax.f32 %v1975, 0.0
        %v2957 = vmax.f32 %v1977, 0.0
        %v2958 = vmax.f32 %v2232, 0.0
        %v2959 = vmax.f32 %v2234, 0.0
        %v2960 = vmax.f32 %v2489, 0.0
        %v2961 = vmax.f32 %v2491, 0.0
        %v2962 = vmax.f32 %v2746, 0.0
        %v2963 = vmax.f32 %v2748, 0.0
        %v2964 = vmax.f32 %v1981, 0.0
        %v2965 = vmax.f32 %v1983, 0.0
        %v2966 = vmax.f32 %v2238, 0.0
        %v2967 = vmax.f32 %v2240, 0.0
        %v2968 = vmax.f32 %v2495, 0.0
        %v2969 = vmax.f32 %v2497, 0.0
        %v2970 = vmax.f32 %v2752, 0.0
        %v2971 = vmax.f32 %v2754, 0.0
        %v2972 = vmax.f32 %v1987, 0.0
        %v2973 = vmax.f32 %v1989, 0.0
        %v2974 = vmax.f32 %v2244, 0.0
        %v2975 = vmax.f32 %v2246, 0.0
        %v2976 = vmax.f32 %v2501, 0.0
        %v2977 = vmax.f32 %v2503, 0.0
        %v2978 = vmax.f32 %v2758, 0.0
        %v2979 = vmax.f32 %v2760, 0.0
        %v2980 = vmax.f32 %v1993, 0.0
        %v2981 = vmax.f32 %v1995, 0.0
        %v2982 = vmax.f32 %v2250, 0.0
        %v2983 = vmax.f32 %v2252, 0.0
        %v2984 = vmax.f32 %v2507, 0.0
        %v2985 = vmax.f32 %v2509, 0.0
        %v2986 = vmax.f32 %v2764, 0.0
        %v2987 = vmax.f32 %v2766, 0.0
        %v2988 = vmax.f32 %v1999, 0.0
        %v2989 = vmax.f32 %v2001, 0.0
        %v2990 = vmax.f32 %v2256, 0.0
        %v2991 = vmax.f32 %v2258, 0.0
        %v2992 = vmax.f32 %v2513, 0.0
        %v2993 = vmax.f32 %v2515, 0.0
        %v2994 = vmax.f32 %v2770, 0.0
        %v2995 = vmax.f32 %v2772, 0.0
        %v2996 = vmax.f32 %v2005, 0.0
        %v2997 = vmax.f32 %v2007, 0.0
        %v2998 = vmax.f32 %v2262, 0.0
        %v2999 = vmax.f32 %v2264, 0.0
        %v3000 = vmax.f32 %v2519, 0.0
        %v3001 = vmax.f32 %v2521, 0.0
        %v3002 = vmax.f32 %v2776, 0.0
        %v3003 = vmax.f32 %v2778, 0.0
        %v3004 = vmax.f32 %v2011, 0.0
        %v3005 = vmax.f32 %v2013, 0.0
        %v3006 = vmax.f32 %v2268, 0.0
        %v3007 = vmax.f32 %v2270, 0.0
        %v3008 = vmax.f32 %v2525, 0.0
        %v3009 = vmax.f32 %v2527, 0.0
        %v3010 = vmax.f32 %v2782, 0.0
        %v3011 = vmax.f32 %v2784, 0.0
        %v3012 = vmax.f32 %v2017, 0.0
        %v3013 = vmax.f32 %v2019, 0.0
        %v3014 = vmax.f32 %v2274, 0.0
        %v3015 = vmax.f32 %v2276, 0.0
        %v3016 = vmax.f32 %v2531, 0.0
        %v3017 = vmax.f32 %v2533, 0.0
        %v3018 = vmax.f32 %v2788, 0.0
        %v3019 = vmax.f32 %v2790, 0.0
        %v3020 = vmax.f32 %v2023, 0.0
        %v3021 = vmax.f32 %v2025, 0.0
        %v3022 = vmax.f32 %v2280, 0.0
        %v3023 = vmax.f32 %v2282, 0.0
        %v3024 = vmax.f32 %v2537, 0.0
        %v3025 = vmax.f32 %v2539, 0.0
        %v3026 = vmax.f32 %v2794, 0.0
        %v3027 = vmax.f32 %v2796, 0.0
        %v3028 = vmax.f32 %v2029, 0.0
        %v3029 = vmax.f32 %v2031, 0.0
        %v3030 = vmax.f32 %v2286, 0.0
        %v3031 = vmax.f32 %v2288, 0.0
        %v3032 = vmax.f32 %v2543, 0.0
        %v3033 = vmax.f32 %v2545, 0.0
        %v3034 = vmax.f32 %v2800, 0.0
        %v3035 = vmax.f32 %v2802, 0.0
        %v3036 = vmax.f32 %v2035, 0.0
        %v3037 = vmax.f32 %v2037, 0.0
        %v3038 = vmax.f32 %v2292, 0.0
        %v3039 = vmax.f32 %v2294, 0.0
        %v3040 = vmax.f32 %v2549, 0.0
        %v3041 = vmax.f32 %v2551, 0.0
        %v3042 = vmax.f32 %v2806, 0.0
        %v3043 = vmax.f32 %v2808, 0.0
        %v3044 = vmax.f32 %v2041, 0.0
        %v3045 = vmax.f32 %v2043, 0.0
        %v3046 = vmax.f32 %v2298, 0.0
        %v3047 = vmax.f32 %v2300, 0.0
        %v3048 = vmax.f32 %v2555, 0.0
        %v3049 = vmax.f32 %v2557, 0.0
        %v3050 = vmax.f32 %v2812, 0.0
        %v3051 = vmax.f32 %v2814, 0.0
        %v3052 = vmax.f32 %v2047, 0.0
        %v3053 = vmax.f32 %v2049, 0.0
        %v3054 = vmax.f32 %v2304, 0.0
        %v3055 = vmax.f32 %v2306, 0.0
        %v3056 = vmax.f32 %v2561, 0.0
        %v3057 = vmax.f32 %v2563, 0.0
        %v3058 = vmax.f32 %v2818, 0.0
        %v3059 = vmax.f32 %v2820, 0.0
        %v3060 = vmax.f32 %v2053, 0.0
        %v3061 = vmax.f32 %v2055, 0.0
        %v3062 = vmax.f32 %v2310, 0.0
        %v3063 = vmax.f32 %v2312, 0.0
        %v3064 = vmax.f32 %v2567, 0.0
        %v3065 = vmax.f32 %v2569, 0.0
        %v3066 = vmax.f32 %v2824, 0.0
        %v3067 = vmax.f32 %v2826, 0.0
        %v3068 = vmax.f32 %v2059, 0.0
        %v3069 = vmax.f32 %v2061, 0.0
        %v3070 = vmax.f32 %v2316, 0.0
        %v3071 = vmax.f32 %v2318, 0.0
        %v3072 = vmax.f32 %v2573, 0.0
        %v3073 = vmax.f32 %v2575, 0.0
        %v3074 = vmax.f32 %v2830, 0.0
        %v3075 = vmax.f32 %v2832, 0.0
        %v3076 = vmax.f32 %v2065, 0.0
        %v3077 = vmax.f32 %v2067, 0.0
        %v3078 = vmax.f32 %v2322, 0.0
        %v3079 = vmax.f32 %v2324, 0.0
        %v3080 = vmax.f32 %v2579, 0.0
        %v3081 = vmax.f32 %v2581, 0.0
        %v3082 = vmax.f32 %v2836, 0.0
        %v3083 = vmax.f32 %v2838, 0.0
        %v3084 = vmax.f32 %v2071, 0.0
        %v3085 = vmax.f32 %v2073, 0.0
        %v3086 = vmax.f32 %v2328, 0.0
        %v3087 = vmax.f32 %v2330, 0.0
        %v3088 = vmax.f32 %v2585, 0.0
        %v3089 = vmax.f32 %v2587, 0.0
        %v3090 = vmax.f32 %v2842, 0.0
        %v3091 = vmax.f32 %v2844, 0.0
        %v3092 = vmax.f32 %v2077, 0.0
        %v3093 = vmax.f32 %v2079, 0.0
        %v3094 = vmax.f32 %v2334, 0.0
        %v3095 = vmax.f32 %v2336, 0.0
        %v3096 = vmax.f32 %v2591, 0.0
        %v3097 = vmax.f32 %v2593, 0.0
        %v3098 = vmax.f32 %v2848, 0.0
        %v3099 = vmax.f32 %v2850, 0.0
        %v3100 = vmax.f32 %v2083, 0.0
        %v3101 = vmax.f32 %v2085, 0.0
        %v3102 = vmax.f32 %v2340, 0.0
        %v3103 = vmax.f32 %v2342, 0.0
        %v3104 = vmax.f32 %v2597, 0.0
        %v3105 = vmax.f32 %v2599, 0.0
        %v3106 = vmax.f32 %v2854, 0.0
        %v3107 = vmax.f32 %v2856, 0.0
        %v3108 = vmax.f32 %v2089, 0.0
        %v3109 = vmax.f32 %v2091, 0.0
        %v3110 = vmax.f32 %v2346, 0.0
        %v3111 = vmax.f32 %v2348, 0.0
        %v3112 = vmax.f32 %v2603, 0.0
        %v3113 = vmax.f32 %v2605, 0.0
        %v3114 = vmax.f32 %v2860, 0.0
        %v3115 = vmax.f32 %v2862, 0.0
        %v3116 = vmax.f32 %v2095, 0.0
        %v3117 = vmax.f32 %v2097, 0.0
        %v3118 = vmax.f32 %v2352, 0.0
        %v3119 = vmax.f32 %v2354, 0.0
        %v3120 = vmax.f32 %v2609, 0.0
        %v3121 = vmax.f32 %v2611, 0.0
        %v3122 = vmax.f32 %v2866, 0.0
        %v3123 = vmax.f32 %v2868, 0.0
        %v3124 = vmax.f32 %v2101, 0.0
        %v3125 = vmax.f32 %v2103, 0.0
        %v3126 = vmax.f32 %v2358, 0.0
        %v3127 = vmax.f32 %v2360, 0.0
        %v3128 = vmax.f32 %v2615, 0.0
        %v3129 = vmax.f32 %v2617, 0.0
        %v3130 = vmax.f32 %v2872, 0.0
        %v3131 = vmax.f32 %v2874, 0.0
        %v3132 = vld [vmem:[#allocation2] sm:$0xff]
        %v3133 = vmax.f32 %v2876, %v2884
        %v3134 = vmax.f32 %v3133, %v2892
        %v3135 = vmax.f32 %v3134, %v2900
        %v3136 = vmax.f32 %v3135, %v2908
        %v3137 = vmax.f32 %v3136, %v2916
        %v3138 = vmax.f32 %v3137, %v2924
        %v3139 = vmax.f32 %v3138, %v2932
        %v3140 = vmax.f32 %v3139, %v2940
        %v3141 = vmax.f32 %v3140, %v2948
        %v3142 = vmax.f32 %v3141, %v2956
        %v3143 = vmax.f32 %v3142, %v2964
        %v3144 = vmax.f32 %v3143, %v2972
        %v3145 = vmax.f32 %v3144, %v2980
        %v3146 = vmax.f32 %v3145, %v2988
        %v3147 = vmax.f32 %v3146, %v2996
        %v3148 = vmax.f32 %v3147, %v3004
        %v3149 = vmax.f32 %v3148, %v3012
        %v3150 = vmax.f32 %v3149, %v3020
        %v3151 = vmax.f32 %v3150, %v3028
        %v3152 = vmax.f32 %v3151, %v3036
        %v3153 = vmax.f32 %v3152, %v3044
        %v3154 = vmax.f32 %v3153, %v3052
        %v3155 = vmax.f32 %v3154, %v3060
        %v3156 = vmax.f32 %v3155, %v3068
        %v3157 = vmax.f32 %v3156, %v3076
        %v3158 = vmax.f32 %v3157, %v3084
        %v3159 = vmax.f32 %v3158, %v3092
        %v3160 = vmax.f32 %v3159, %v3100
        %v3161 = vmax.f32 %v3160, %v3108
        %v3162 = vmax.f32 %v3161, %v3116
        %v3163 = vmax.f32 %v3162, %v3124
        %v3164 = vrot.slane %v3163, 4
        %v3165 = vmax.f32 %v3163, %v3164
        %v3166 = vrot.slane %v3165, 2
        %v3167 = vmax.f32 %v3165, %v3166
        %v3168 = vrot.slane %v3167, 1
        %v3169 = vmax.f32 %v3167, %v3168
        %v3170 = vmax.f32 %v2877, %v2885
        %v3171 = vmax.f32 %v3170, %v2893
        %v3172 = vmax.f32 %v3171, %v2901
        %v3173 = vmax.f32 %v3172, %v2909
        %v3174 = vmax.f32 %v3173, %v2917
        %v3175 = vmax.f32 %v3174, %v2925
        %v3176 = vmax.f32 %v3175, %v2933
        %v3177 = vmax.f32 %v3176, %v2941
        %v3178 = vmax.f32 %v3177, %v2949
        %v3179 = vmax.f32 %v3178, %v2957
        %v3180 = vmax.f32 %v3179, %v2965
        %v3181 = vmax.f32 %v3180, %v2973
        %v3182 = vmax.f32 %v3181, %v2981
        %v3183 = vmax.f32 %v3182, %v2989
        %v3184 = vmax.f32 %v3183, %v2997
        %v3185 = vmax.f32 %v3184, %v3005
        %v3186 = vmax.f32 %v3185, %v3013
        %v3187 = vmax.f32 %v3186, %v3021
        %v3188 = vmax.f32 %v3187, %v3029
        %v3189 = vmax.f32 %v3188, %v3037
        %v3190 = vmax.f32 %v3189, %v3045
        %v3191 = vmax.f32 %v3190, %v3053
        %v3192 = vmax.f32 %v3191, %v3061
        %v3193 = vmax.f32 %v3192, %v3069
        %v3194 = vmax.f32 %v3193, %v3077
        %v3195 = vmax.f32 %v3194, %v3085
        %v3196 = vmax.f32 %v3195, %v3093
        %v3197 = vmax.f32 %v3196, %v3101
        %v3198 = vmax.f32 %v3197, %v3109
        %v3199 = vmax.f32 %v3198, %v3117
        %v3200 = vmax.f32 %v3199, %v3125
        %v3201 = vrot.slane %v3200, 4
        %v3202 = vmax.f32 %v3200, %v3201
        %v3203 = vrot.slane %v3202, 2
        %v3204 = vmax.f32 %v3202, %v3203
        %v3205 = vrot.slane %v3204, 1
        %v3206 = vmax.f32 %v3204, %v3205
        %v3207 = vmax.f32 %v2878, %v2886
        %v3208 = vmax.f32 %v3207, %v2894
        %v3209 = vmax.f32 %v3208, %v2902
        %v3210 = vmax.f32 %v3209, %v2910
        %v3211 = vmax.f32 %v3210, %v2918
        %v3212 = vmax.f32 %v3211, %v2926
        %v3213 = vmax.f32 %v3212, %v2934
        %v3214 = vmax.f32 %v3213, %v2942
        %v3215 = vmax.f32 %v3214, %v2950
        %v3216 = vmax.f32 %v3215, %v2958
        %v3217 = vmax.f32 %v3216, %v2966
        %v3218 = vmax.f32 %v3217, %v2974
        %v3219 = vmax.f32 %v3218, %v2982
        %v3220 = vmax.f32 %v3219, %v2990
        %v3221 = vmax.f32 %v3220, %v2998
        %v3222 = vmax.f32 %v3221, %v3006
        %v3223 = vmax.f32 %v3222, %v3014
        %v3224 = vmax.f32 %v3223, %v3022
        %v3225 = vmax.f32 %v3224, %v3030
        %v3226 = vmax.f32 %v3225, %v3038
        %v3227 = vmax.f32 %v3226, %v3046
        %v3228 = vmax.f32 %v3227, %v3054
        %v3229 = vmax.f32 %v3228, %v3062
        %v3230 = vmax.f32 %v3229, %v3070
        %v3231 = vmax.f32 %v3230, %v3078
        %v3232 = vmax.f32 %v3231, %v3086
        %v3233 = vmax.f32 %v3232, %v3094
        %v3234 = vmax.f32 %v3233, %v3102
        %v3235 = vmax.f32 %v3234, %v3110
        %v3236 = vmax.f32 %v3235, %v3118
        %v3237 = vmax.f32 %v3236, %v3126
        %v3238 = vrot.slane %v3237, 4
        %v3239 = vmax.f32 %v3237, %v3238
        %v3240 = vrot.slane %v3239, 2
        %v3241 = vmax.f32 %v3239, %v3240
        %v3242 = vrot.slane %v3241, 1
        %v3243 = vmax.f32 %v3241, %v3242
        %v3244 = vmax.f32 %v2879, %v2887
        %v3245 = vmax.f32 %v3244, %v2895
        %v3246 = vmax.f32 %v3245, %v2903
        %v3247 = vmax.f32 %v3246, %v2911
        %v3248 = vmax.f32 %v3247, %v2919
        %v3249 = vmax.f32 %v3248, %v2927
        %v3250 = vmax.f32 %v3249, %v2935
        %v3251 = vmax.f32 %v3250, %v2943
        %v3252 = vmax.f32 %v3251, %v2951
        %v3253 = vmax.f32 %v3252, %v2959
        %v3254 = vmax.f32 %v3253, %v2967
        %v3255 = vmax.f32 %v3254, %v2975
        %v3256 = vmax.f32 %v3255, %v2983
        %v3257 = vmax.f32 %v3256, %v2991
        %v3258 = vmax.f32 %v3257, %v2999
        %v3259 = vmax.f32 %v3258, %v3007
        %v3260 = vmax.f32 %v3259, %v3015
        %v3261 = vmax.f32 %v3260, %v3023
        %v3262 = vmax.f32 %v3261, %v3031
        %v3263 = vmax.f32 %v3262, %v3039
        %v3264 = vmax.f32 %v3263, %v3047
        %v3265 = vmax.f32 %v3264, %v3055
        %v3266 = vmax.f32 %v3265, %v3063
        %v3267 = vmax.f32 %v3266, %v3071
        %v3268 = vmax.f32 %v3267, %v3079
        %v3269 = vmax.f32 %v3268, %v3087
        %v3270 = vmax.f32 %v3269, %v3095
        %v3271 = vmax.f32 %v3270, %v3103
        %v3272 = vmax.f32 %v3271, %v3111
        %v3273 = vmax.f32 %v3272, %v3119
        %v3274 = vmax.f32 %v3273, %v3127
        %v3275 = vrot.slane %v3274, 4
        %v3276 = vmax.f32 %v3274, %v3275
        %v3277 = vrot.slane %v3276, 2
        %v3278 = vmax.f32 %v3276, %v3277
        %v3279 = vrot.slane %v3278, 1
        %v3280 = vmax.f32 %v3278, %v3279
        %v3281 = vmax.f32 %v2880, %v2888
        %v3282 = vmax.f32 %v3281, %v2896
        %v3283 = vmax.f32 %v3282, %v2904
        %v3284 = vmax.f32 %v3283, %v2912
        %v3285 = vmax.f32 %v3284, %v2920
        %v3286 = vmax.f32 %v3285, %v2928
        %v3287 = vmax.f32 %v3286, %v2936
        %v3288 = vmax.f32 %v3287, %v2944
        %v3289 = vmax.f32 %v3288, %v2952
        %v3290 = vmax.f32 %v3289, %v2960
        %v3291 = vmax.f32 %v3290, %v2968
        %v3292 = vmax.f32 %v3291, %v2976
        %v3293 = vmax.f32 %v3292, %v2984
        %v3294 = vmax.f32 %v3293, %v2992
        %v3295 = vmax.f32 %v3294, %v3000
        %v3296 = vmax.f32 %v3295, %v3008
        %v3297 = vmax.f32 %v3296, %v3016
        %v3298 = vmax.f32 %v3297, %v3024
        %v3299 = vmax.f32 %v3298, %v3032
        %v3300 = vmax.f32 %v3299, %v3040
        %v3301 = vmax.f32 %v3300, %v3048
        %v3302 = vmax.f32 %v3301, %v3056
        %v3303 = vmax.f32 %v3302, %v3064
        %v3304 = vmax.f32 %v3303, %v3072
        %v3305 = vmax.f32 %v3304, %v3080
        %v3306 = vmax.f32 %v3305, %v3088
        %v3307 = vmax.f32 %v3306, %v3096
        %v3308 = vmax.f32 %v3307, %v3104
        %v3309 = vmax.f32 %v3308, %v3112
        %v3310 = vmax.f32 %v3309, %v3120
        %v3311 = vmax.f32 %v3310, %v3128
        %v3312 = vrot.slane %v3311, 4
        %v3313 = vmax.f32 %v3311, %v3312
        %v3314 = vrot.slane %v3313, 2
        %v3315 = vmax.f32 %v3313, %v3314
        %v3316 = vrot.slane %v3315, 1
        %v3317 = vmax.f32 %v3315, %v3316
        %v3318 = vmax.f32 %v2881, %v2889
        %v3319 = vmax.f32 %v3318, %v2897
        %v3320 = vmax.f32 %v3319, %v2905
        %v3321 = vmax.f32 %v3320, %v2913
        %v3322 = vmax.f32 %v3321, %v2921
        %v3323 = vmax.f32 %v3322, %v2929
        %v3324 = vmax.f32 %v3323, %v2937
        %v3325 = vmax.f32 %v3324, %v2945
        %v3326 = vmax.f32 %v3325, %v2953
        %v3327 = vmax.f32 %v3326, %v2961
        %v3328 = vmax.f32 %v3327, %v2969
        %v3329 = vmax.f32 %v3328, %v2977
        %v3330 = vmax.f32 %v3329, %v2985
        %v3331 = vmax.f32 %v3330, %v2993
        %v3332 = vmax.f32 %v3331, %v3001
        %v3333 = vmax.f32 %v3332, %v3009
        %v3334 = vmax.f32 %v3333, %v3017
        %v3335 = vmax.f32 %v3334, %v3025
        %v3336 = vmax.f32 %v3335, %v3033
        %v3337 = vmax.f32 %v3336, %v3041
        %v3338 = vmax.f32 %v3337, %v3049
        %v3339 = vmax.f32 %v3338, %v3057
        %v3340 = vmax.f32 %v3339, %v3065
        %v3341 = vmax.f32 %v3340, %v3073
        %v3342 = vmax.f32 %v3341, %v3081
        %v3343 = vmax.f32 %v3342, %v3089
        %v3344 = vmax.f32 %v3343, %v3097
        %v3345 = vmax.f32 %v3344, %v3105
        %v3346 = vmax.f32 %v3345, %v3113
        %v3347 = vmax.f32 %v3346, %v3121
        %v3348 = vmax.f32 %v3347, %v3129
        %v3349 = vrot.slane %v3348, 4
        %v3350 = vmax.f32 %v3348, %v3349
        %v3351 = vrot.slane %v3350, 2
        %v3352 = vmax.f32 %v3350, %v3351
        %v3353 = vrot.slane %v3352, 1
        %v3354 = vmax.f32 %v3352, %v3353
        %v3355 = vmax.f32 %v2882, %v2890
        %v3356 = vmax.f32 %v3355, %v2898
        %v3357 = vmax.f32 %v3356, %v2906
        %v3358 = vmax.f32 %v3357, %v2914
        %v3359 = vmax.f32 %v3358, %v2922
        %v3360 = vmax.f32 %v3359, %v2930
        %v3361 = vmax.f32 %v3360, %v2938
        %v3362 = vmax.f32 %v3361, %v2946
        %v3363 = vmax.f32 %v3362, %v2954
        %v3364 = vmax.f32 %v3363, %v2962
        %v3365 = vmax.f32 %v3364, %v2970
        %v3366 = vmax.f32 %v3365, %v2978
        %v3367 = vmax.f32 %v3366, %v2986
        %v3368 = vmax.f32 %v3367, %v2994
        %v3369 = vmax.f32 %v3368, %v3002
        %v3370 = vmax.f32 %v3369, %v3010
        %v3371 = vmax.f32 %v3370, %v3018
        %v3372 = vmax.f32 %v3371, %v3026
        %v3373 = vmax.f32 %v3372, %v3034
        %v3374 = vmax.f32 %v3373, %v3042
        %v3375 = vmax.f32 %v3374, %v3050
        %v3376 = vmax.f32 %v3375, %v3058
        %v3377 = vmax.f32 %v3376, %v3066
        %v3378 = vmax.f32 %v3377, %v3074
        %v3379 = vmax.f32 %v3378, %v3082
        %v3380 = vmax.f32 %v3379, %v3090
        %v3381 = vmax.f32 %v3380, %v3098
        %v3382 = vmax.f32 %v3381, %v3106
        %v3383 = vmax.f32 %v3382, %v3114
        %v3384 = vmax.f32 %v3383, %v3122
        %v3385 = vmax.f32 %v3384, %v3130
        %v3386 = vrot.slane %v3385, 4
        %v3387 = vmax.f32 %v3385, %v3386
        %v3388 = vrot.slane %v3387, 2
        %v3389 = vmax.f32 %v3387, %v3388
        %v3390 = vrot.slane %v3389, 1
        %v3391 = vmax.f32 %v3389, %v3390
        %v3392 = vmax.f32 %v2883, %v2891
        %v3393 = vmax.f32 %v3392, %v2899
        %v3394 = vmax.f32 %v3393, %v2907
        %v3395 = vmax.f32 %v3394, %v2915
        %v3396 = vmax.f32 %v3395, %v2923
        %v3397 = vmax.f32 %v3396, %v2931
        %v3398 = vmax.f32 %v3397, %v2939
        %v3399 = vmax.f32 %v3398, %v2947
        %v3400 = vmax.f32 %v3399, %v2955
        %v3401 = vmax.f32 %v3400, %v2963
        %v3402 = vmax.f32 %v3401, %v2971
        %v3403 = vmax.f32 %v3402, %v2979
        %v3404 = vmax.f32 %v3403, %v2987
        %v3405 = vmax.f32 %v3404, %v2995
        %v3406 = vmax.f32 %v3405, %v3003
        %v3407 = vmax.f32 %v3406, %v3011
        %v3408 = vmax.f32 %v3407, %v3019
        %v3409 = vmax.f32 %v3408, %v3027
        %v3410 = vmax.f32 %v3409, %v3035
        %v3411 = vmax.f32 %v3410, %v3043
        %v3412 = vmax.f32 %v3411, %v3051
        %v3413 = vmax.f32 %v3412, %v3059
        %v3414 = vmax.f32 %v3413, %v3067
        %v3415 = vmax.f32 %v3414, %v3075
        %v3416 = vmax.f32 %v3415, %v3083
        %v3417 = vmax.f32 %v3416, %v3091
        %v3418 = vmax.f32 %v3417, %v3099
        %v3419 = vmax.f32 %v3418, %v3107
        %v3420 = vmax.f32 %v3419, %v3115
        %v3421 = vmax.f32 %v3420, %v3123
        %v3422 = vmax.f32 %v3421, %v3131
        %v3423 = vrot.slane %v3422, 4
        %v3424 = vmax.f32 %v3422, %v3423
        %v3425 = vrot.slane %v3424, 2
        %v3426 = vmax.f32 %v3424, %v3425
        %v3427 = vrot.slane %v3426, 1
        %v3428 = vmax.f32 %v3426, %v3427
        %v3437 = vcombine.low %v3169, %v3206
        %v3438 = vcombine.low %v3243, %v3280
        %v3439 = vcombine.low %v3317, %v3354
        %v3440 = vcombine.low %v3391, %v3428
        %v3442 = vunpack.c.l.s4 1966171168
        %v3443 = vunpack.c.0.s8 %v3442
        %v3444 = vlaneseq
        %v3445 = vshrl.u32 %v3444, 7
        %v3446 = vsub.s32 %v3443, %v3445
        %v3447 = vrot.slane %v3437, %v3446
        %v3449 = vunpack.c.l.s4 1966171168
        %v3450 = vunpack.c.0.s8 %v3449
        %v3451 = vlaneseq
        %v3452 = vshrl.u32 %v3451, 7
        %v3453 = vsub.s32 %v3450, %v3452
        %v3454 = vrot.slane %v3438, %v3453
        %v3456 = vunpack.c.l.s4 1966171168
        %v3457 = vunpack.c.0.s8 %v3456
        %v3458 = vlaneseq
        %v3459 = vshrl.u32 %v3458, 7
        %v3460 = vsub.s32 %v3457, %v3459
        %v3461 = vrot.slane %v3439, %v3460
        %v3463 = vunpack.c.l.s4 1966171168
        %v3464 = vunpack.c.0.s8 %v3463
        %v3465 = vlaneseq
        %v3466 = vshrl.u32 %v3465, 7
        %v3467 = vsub.s32 %v3464, %v3466
        %v3468 = vrot.slane %v3440, %v3467
        %v3469 = vcombine.low %v3447, %v3454
        %v3470 = vcombine.low %v3461, %v3468
        %v3472 = vunpack.c.l.s4 1966171168
        %v3473 = vunpack.c.0.s8 %v3472
        %v3474 = vlaneseq
        %v3475 = vshrl.u32 %v3474, 7
        %v3476 = vsub.s32 %v3473, %v3475
        %v3477 = vrot.slane %v3469, %v3476
        %v3479 = vunpack.c.l.s4 1966171168
        %v3480 = vunpack.c.0.s8 %v3479
        %v3481 = vlaneseq
        %v3482 = vshrl.u32 %v3481, 7
        %v3483 = vsub.s32 %v3480, %v3482
        %v3484 = vrot.slane %v3470, %v3483
        %v3485 = vcombine.low %v3477, %v3484
        %v3487 = vmax.f32 %v3132, %v3485
        %3488 = vst [vmem:[#allocation2] sm:$0xff] %v3487
        %p3489 = scmp.eq.s32.totalorder %s38, 1
        // Predicated region
        $region121: #{tpu_custom_call.1} parent=71 // pred_check
          %p3490 = pneg %p3489
        $region122: #{tpu_custom_call.1} parent=71 // pred_check_branch
          %3492 = sbr.rel (%p3490) target = $region124
        $region123: #{tpu_custom_call.1} parent=71 // pred_region
          %v3493 = vld [vmem:[#allocation2] sm:$0xff]
          %v3494 = vld [vmem:[#allocation14] sm:$0xff]
          %v3495 = vld [vmem:[#allocation14 + $0x8] sm:$0xff]
          %v3496 = vld [vmem:[#allocation14 + $0x10] sm:$0xff]
          %v3497 = vld [vmem:[#allocation14 + $0x18] sm:$0xff]
          %v3498 = vld [vmem:[#allocation14 + $0x20] sm:$0xff]
          %v3499 = vld [vmem:[#allocation14 + $0x28] sm:$0xff]
          %v3500 = vld [vmem:[#allocation14 + $0x30] sm:$0xff]
          %v3501 = vld [vmem:[#allocation14 + $0x38] sm:$0xff]
          %v3502 = vld [vmem:[#allocation14 + $0x40] sm:$0xff]
          %v3503 = vld [vmem:[#allocation14 + $0x48] sm:$0xff]
          %v3504 = vld [vmem:[#allocation14 + $0x50] sm:$0xff]
          %v3505 = vld [vmem:[#allocation14 + $0x58] sm:$0xff]
          %v3506 = vld [vmem:[#allocation14 + $0x60] sm:$0xff]
          %v3507 = vld [vmem:[#allocation14 + $0x68] sm:$0xff]
          %v3508 = vld [vmem:[#allocation14 + $0x70] sm:$0xff]
          %v3509 = vld [vmem:[#allocation14 + $0x78] sm:$0xff]
          %v3510 = vld [vmem:[#allocation14 + $0x80] sm:$0xff]
          %v3511 = vld [vmem:[#allocation14 + $0x88] sm:$0xff]
          %v3512 = vld [vmem:[#allocation14 + $0x90] sm:$0xff]
          %v3513 = vld [vmem:[#allocation14 + $0x98] sm:$0xff]
          %v3514 = vld [vmem:[#allocation14 + $0xa0] sm:$0xff]
          %v3515 = vld [vmem:[#allocation14 + $0xa8] sm:$0xff]
          %v3516 = vld [vmem:[#allocation14 + $0xb0] sm:$0xff]
          %v3517 = vld [vmem:[#allocation14 + $0xb8] sm:$0xff]
          %v3518 = vld [vmem:[#allocation14 + $0xc0] sm:$0xff]
          %v3519 = vld [vmem:[#allocation14 + $0xc8] sm:$0xff]
          %v3520 = vld [vmem:[#allocation14 + $0xd0] sm:$0xff]
          %v3521 = vld [vmem:[#allocation14 + $0xd8] sm:$0xff]
          %v3522 = vld [vmem:[#allocation14 + $0xe0] sm:$0xff]
          %v3523 = vld [vmem:[#allocation14 + $0xe8] sm:$0xff]
          %v3524 = vld [vmem:[#allocation14 + $0xf0] sm:$0xff]
          %v3525 = vld [vmem:[#allocation14 + $0xf8] sm:$0xff]
          %v3526 = vld [vmem:[#allocation14 + $0x100] sm:$0xff]
          %v3527 = vld [vmem:[#allocation14 + $0x108] sm:$0xff]
          %v3528 = vld [vmem:[#allocation14 + $0x110] sm:$0xff]
          %v3529 = vld [vmem:[#allocation14 + $0x118] sm:$0xff]
          %v3530 = vld [vmem:[#allocation14 + $0x120] sm:$0xff]
          %v3531 = vld [vmem:[#allocation14 + $0x128] sm:$0xff]
          %v3532 = vld [vmem:[#allocation14 + $0x130] sm:$0xff]
          %v3533 = vld [vmem:[#allocation14 + $0x138] sm:$0xff]
          %v3534 = vld [vmem:[#allocation14 + $0x140] sm:$0xff]
          %v3535 = vld [vmem:[#allocation14 + $0x148] sm:$0xff]
          %v3536 = vld [vmem:[#allocation14 + $0x150] sm:$0xff]
          %v3537 = vld [vmem:[#allocation14 + $0x158] sm:$0xff]
          %v3538 = vld [vmem:[#allocation14 + $0x160] sm:$0xff]
          %v3539 = vld [vmem:[#allocation14 + $0x168] sm:$0xff]
          %v3540 = vld [vmem:[#allocation14 + $0x170] sm:$0xff]
          %v3541 = vld [vmem:[#allocation14 + $0x178] sm:$0xff]
          %v3542 = vld [vmem:[#allocation14 + $0x180] sm:$0xff]
          %v3543 = vld [vmem:[#allocation14 + $0x188] sm:$0xff]
          %v3544 = vld [vmem:[#allocation14 + $0x190] sm:$0xff]
          %v3545 = vld [vmem:[#allocation14 + $0x198] sm:$0xff]
          %v3546 = vld [vmem:[#allocation14 + $0x1a0] sm:$0xff]
          %v3547 = vld [vmem:[#allocation14 + $0x1a8] sm:$0xff]
          %v3548 = vld [vmem:[#allocation14 + $0x1b0] sm:$0xff]
          %v3549 = vld [vmem:[#allocation14 + $0x1b8] sm:$0xff]
          %v3550 = vld [vmem:[#allocation14 + $0x1c0] sm:$0xff]
          %v3551 = vld [vmem:[#allocation14 + $0x1c8] sm:$0xff]
          %v3552 = vld [vmem:[#allocation14 + $0x1d0] sm:$0xff]
          %v3553 = vld [vmem:[#allocation14 + $0x1d8] sm:$0xff]
          %v3554 = vld [vmem:[#allocation14 + $0x1e0] sm:$0xff]
          %v3555 = vld [vmem:[#allocation14 + $0x1e8] sm:$0xff]
          %v3556 = vld [vmem:[#allocation14 + $0x1f0] sm:$0xff]
          %v3557 = vld [vmem:[#allocation14 + $0x1f8] sm:$0xff]
          %v3558 = vld [vmem:[#allocation14 + $0x200] sm:$0xff]
          %v3559 = vld [vmem:[#allocation14 + $0x208] sm:$0xff]
          %v3560 = vld [vmem:[#allocation14 + $0x210] sm:$0xff]
          %v3561 = vld [vmem:[#allocation14 + $0x218] sm:$0xff]
          %v3562 = vld [vmem:[#allocation14 + $0x220] sm:$0xff]
          %v3563 = vld [vmem:[#allocation14 + $0x228] sm:$0xff]
          %v3564 = vld [vmem:[#allocation14 + $0x230] sm:$0xff]
          %v3565 = vld [vmem:[#allocation14 + $0x238] sm:$0xff]
          %v3566 = vld [vmem:[#allocation14 + $0x240] sm:$0xff]
          %v3567 = vld [vmem:[#allocation14 + $0x248] sm:$0xff]
          %v3568 = vld [vmem:[#allocation14 + $0x250] sm:$0xff]
          %v3569 = vld [vmem:[#allocation14 + $0x258] sm:$0xff]
          %v3570 = vld [vmem:[#allocation14 + $0x260] sm:$0xff]
          %v3571 = vld [vmem:[#allocation14 + $0x268] sm:$0xff]
          %v3572 = vld [vmem:[#allocation14 + $0x270] sm:$0xff]
          %v3573 = vld [vmem:[#allocation14 + $0x278] sm:$0xff]
          %v3574 = vld [vmem:[#allocation14 + $0x280] sm:$0xff]
          %v3575 = vld [vmem:[#allocation14 + $0x288] sm:$0xff]
          %v3576 = vld [vmem:[#allocation14 + $0x290] sm:$0xff]
          %v3577 = vld [vmem:[#allocation14 + $0x298] sm:$0xff]
          %v3578 = vld [vmem:[#allocation14 + $0x2a0] sm:$0xff]
          %v3579 = vld [vmem:[#allocation14 + $0x2a8] sm:$0xff]
          %v3580 = vld [vmem:[#allocation14 + $0x2b0] sm:$0xff]
          %v3581 = vld [vmem:[#allocation14 + $0x2b8] sm:$0xff]
          %v3582 = vld [vmem:[#allocation14 + $0x2c0] sm:$0xff]
          %v3583 = vld [vmem:[#allocation14 + $0x2c8] sm:$0xff]
          %v3584 = vld [vmem:[#allocation14 + $0x2d0] sm:$0xff]
          %v3585 = vld [vmem:[#allocation14 + $0x2d8] sm:$0xff]
          %v3586 = vld [vmem:[#allocation14 + $0x2e0] sm:$0xff]
          %v3587 = vld [vmem:[#allocation14 + $0x2e8] sm:$0xff]
          %v3588 = vld [vmem:[#allocation14 + $0x2f0] sm:$0xff]
          %v3589 = vld [vmem:[#allocation14 + $0x2f8] sm:$0xff]
          %v3590 = vld [vmem:[#allocation14 + $0x300] sm:$0xff]
          %v3591 = vld [vmem:[#allocation14 + $0x308] sm:$0xff]
          %v3592 = vld [vmem:[#allocation14 + $0x310] sm:$0xff]
          %v3593 = vld [vmem:[#allocation14 + $0x318] sm:$0xff]
          %v3594 = vld [vmem:[#allocation14 + $0x320] sm:$0xff]
          %v3595 = vld [vmem:[#allocation14 + $0x328] sm:$0xff]
          %v3596 = vld [vmem:[#allocation14 + $0x330] sm:$0xff]
          %v3597 = vld [vmem:[#allocation14 + $0x338] sm:$0xff]
          %v3598 = vld [vmem:[#allocation14 + $0x340] sm:$0xff]
          %v3599 = vld [vmem:[#allocation14 + $0x348] sm:$0xff]
          %v3600 = vld [vmem:[#allocation14 + $0x350] sm:$0xff]
          %v3601 = vld [vmem:[#allocation14 + $0x358] sm:$0xff]
          %v3602 = vld [vmem:[#allocation14 + $0x360] sm:$0xff]
          %v3603 = vld [vmem:[#allocation14 + $0x368] sm:$0xff]
          %v3604 = vld [vmem:[#allocation14 + $0x370] sm:$0xff]
          %v3605 = vld [vmem:[#allocation14 + $0x378] sm:$0xff]
          %v3606 = vld [vmem:[#allocation14 + $0x380] sm:$0xff]
          %v3607 = vld [vmem:[#allocation14 + $0x388] sm:$0xff]
          %v3608 = vld [vmem:[#allocation14 + $0x390] sm:$0xff]
          %v3609 = vld [vmem:[#allocation14 + $0x398] sm:$0xff]
          %v3610 = vld [vmem:[#allocation14 + $0x3a0] sm:$0xff]
          %v3611 = vld [vmem:[#allocation14 + $0x3a8] sm:$0xff]
          %v3612 = vld [vmem:[#allocation14 + $0x3b0] sm:$0xff]
          %v3613 = vld [vmem:[#allocation14 + $0x3b8] sm:$0xff]
          %v3614 = vld [vmem:[#allocation14 + $0x3c0] sm:$0xff]
          %v3615 = vld [vmem:[#allocation14 + $0x3c8] sm:$0xff]
          %v3616 = vld [vmem:[#allocation14 + $0x3d0] sm:$0xff]
          %v3617 = vld [vmem:[#allocation14 + $0x3d8] sm:$0xff]
          %v3618 = vld [vmem:[#allocation14 + $0x3e0] sm:$0xff]
          %v3619 = vld [vmem:[#allocation14 + $0x3e8] sm:$0xff]
          %v3620 = vld [vmem:[#allocation14 + $0x3f0] sm:$0xff]
          %v3621 = vld [vmem:[#allocation14 + $0x3f8] sm:$0xff]
          %v3622 = vld [vmem:[#allocation14 + $0x400] sm:$0xff]
          %v3623 = vld [vmem:[#allocation14 + $0x408] sm:$0xff]
          %v3624 = vld [vmem:[#allocation14 + $0x410] sm:$0xff]
          %v3625 = vld [vmem:[#allocation14 + $0x418] sm:$0xff]
          %v3626 = vld [vmem:[#allocation14 + $0x420] sm:$0xff]
          %v3627 = vld [vmem:[#allocation14 + $0x428] sm:$0xff]
          %v3628 = vld [vmem:[#allocation14 + $0x430] sm:$0xff]
          %v3629 = vld [vmem:[#allocation14 + $0x438] sm:$0xff]
          %v3630 = vld [vmem:[#allocation14 + $0x440] sm:$0xff]
          %v3631 = vld [vmem:[#allocation14 + $0x448] sm:$0xff]
          %v3632 = vld [vmem:[#allocation14 + $0x450] sm:$0xff]
          %v3633 = vld [vmem:[#allocation14 + $0x458] sm:$0xff]
          %v3634 = vld [vmem:[#allocation14 + $0x460] sm:$0xff]
          %v3635 = vld [vmem:[#allocation14 + $0x468] sm:$0xff]
          %v3636 = vld [vmem:[#allocation14 + $0x470] sm:$0xff]
          %v3637 = vld [vmem:[#allocation14 + $0x478] sm:$0xff]
          %v3638 = vld [vmem:[#allocation14 + $0x480] sm:$0xff]
          %v3639 = vld [vmem:[#allocation14 + $0x488] sm:$0xff]
          %v3640 = vld [vmem:[#allocation14 + $0x490] sm:$0xff]
          %v3641 = vld [vmem:[#allocation14 + $0x498] sm:$0xff]
          %v3642 = vld [vmem:[#allocation14 + $0x4a0] sm:$0xff]
          %v3643 = vld [vmem:[#allocation14 + $0x4a8] sm:$0xff]
          %v3644 = vld [vmem:[#allocation14 + $0x4b0] sm:$0xff]
          %v3645 = vld [vmem:[#allocation14 + $0x4b8] sm:$0xff]
          %v3646 = vld [vmem:[#allocation14 + $0x4c0] sm:$0xff]
          %v3647 = vld [vmem:[#allocation14 + $0x4c8] sm:$0xff]
          %v3648 = vld [vmem:[#allocation14 + $0x4d0] sm:$0xff]
          %v3649 = vld [vmem:[#allocation14 + $0x4d8] sm:$0xff]
          %v3650 = vld [vmem:[#allocation14 + $0x4e0] sm:$0xff]
          %v3651 = vld [vmem:[#allocation14 + $0x4e8] sm:$0xff]
          %v3652 = vld [vmem:[#allocation14 + $0x4f0] sm:$0xff]
          %v3653 = vld [vmem:[#allocation14 + $0x4f8] sm:$0xff]
          %v3654 = vld [vmem:[#allocation14 + $0x500] sm:$0xff]
          %v3655 = vld [vmem:[#allocation14 + $0x508] sm:$0xff]
          %v3656 = vld [vmem:[#allocation14 + $0x510] sm:$0xff]
          %v3657 = vld [vmem:[#allocation14 + $0x518] sm:$0xff]
          %v3658 = vld [vmem:[#allocation14 + $0x520] sm:$0xff]
          %v3659 = vld [vmem:[#allocation14 + $0x528] sm:$0xff]
          %v3660 = vld [vmem:[#allocation14 + $0x530] sm:$0xff]
          %v3661 = vld [vmem:[#allocation14 + $0x538] sm:$0xff]
          %v3662 = vld [vmem:[#allocation14 + $0x540] sm:$0xff]
          %v3663 = vld [vmem:[#allocation14 + $0x548] sm:$0xff]
          %v3664 = vld [vmem:[#allocation14 + $0x550] sm:$0xff]
          %v3665 = vld [vmem:[#allocation14 + $0x558] sm:$0xff]
          %v3666 = vld [vmem:[#allocation14 + $0x560] sm:$0xff]
          %v3667 = vld [vmem:[#allocation14 + $0x568] sm:$0xff]
          %v3668 = vld [vmem:[#allocation14 + $0x570] sm:$0xff]
          %v3669 = vld [vmem:[#allocation14 + $0x578] sm:$0xff]
          %v3670 = vld [vmem:[#allocation14 + $0x580] sm:$0xff]
          %v3671 = vld [vmem:[#allocation14 + $0x588] sm:$0xff]
          %v3672 = vld [vmem:[#allocation14 + $0x590] sm:$0xff]
          %v3673 = vld [vmem:[#allocation14 + $0x598] sm:$0xff]
          %v3674 = vld [vmem:[#allocation14 + $0x5a0] sm:$0xff]
          %v3675 = vld [vmem:[#allocation14 + $0x5a8] sm:$0xff]
          %v3676 = vld [vmem:[#allocation14 + $0x5b0] sm:$0xff]
          %v3677 = vld [vmem:[#allocation14 + $0x5b8] sm:$0xff]
          %v3678 = vld [vmem:[#allocation14 + $0x5c0] sm:$0xff]
          %v3679 = vld [vmem:[#allocation14 + $0x5c8] sm:$0xff]
          %v3680 = vld [vmem:[#allocation14 + $0x5d0] sm:$0xff]
          %v3681 = vld [vmem:[#allocation14 + $0x5d8] sm:$0xff]
          %v3682 = vld [vmem:[#allocation14 + $0x5e0] sm:$0xff]
          %v3683 = vld [vmem:[#allocation14 + $0x5e8] sm:$0xff]
          %v3684 = vld [vmem:[#allocation14 + $0x5f0] sm:$0xff]
          %v3685 = vld [vmem:[#allocation14 + $0x5f8] sm:$0xff]
          %v3686 = vld [vmem:[#allocation14 + $0x600] sm:$0xff]
          %v3687 = vld [vmem:[#allocation14 + $0x608] sm:$0xff]
          %v3688 = vld [vmem:[#allocation14 + $0x610] sm:$0xff]
          %v3689 = vld [vmem:[#allocation14 + $0x618] sm:$0xff]
          %v3690 = vld [vmem:[#allocation14 + $0x620] sm:$0xff]
          %v3691 = vld [vmem:[#allocation14 + $0x628] sm:$0xff]
          %v3692 = vld [vmem:[#allocation14 + $0x630] sm:$0xff]
          %v3693 = vld [vmem:[#allocation14 + $0x638] sm:$0xff]
          %v3694 = vld [vmem:[#allocation14 + $0x640] sm:$0xff]
          %v3695 = vld [vmem:[#allocation14 + $0x648] sm:$0xff]
          %v3696 = vld [vmem:[#allocation14 + $0x650] sm:$0xff]
          %v3697 = vld [vmem:[#allocation14 + $0x658] sm:$0xff]
          %v3698 = vld [vmem:[#allocation14 + $0x660] sm:$0xff]
          %v3699 = vld [vmem:[#allocation14 + $0x668] sm:$0xff]
          %v3700 = vld [vmem:[#allocation14 + $0x670] sm:$0xff]
          %v3701 = vld [vmem:[#allocation14 + $0x678] sm:$0xff]
          %v3702 = vld [vmem:[#allocation14 + $0x680] sm:$0xff]
          %v3703 = vld [vmem:[#allocation14 + $0x688] sm:$0xff]
          %v3704 = vld [vmem:[#allocation14 + $0x690] sm:$0xff]
          %v3705 = vld [vmem:[#allocation14 + $0x698] sm:$0xff]
          %v3706 = vld [vmem:[#allocation14 + $0x6a0] sm:$0xff]
          %v3707 = vld [vmem:[#allocation14 + $0x6a8] sm:$0xff]
          %v3708 = vld [vmem:[#allocation14 + $0x6b0] sm:$0xff]
          %v3709 = vld [vmem:[#allocation14 + $0x6b8] sm:$0xff]
          %v3710 = vld [vmem:[#allocation14 + $0x6c0] sm:$0xff]
          %v3711 = vld [vmem:[#allocation14 + $0x6c8] sm:$0xff]
          %v3712 = vld [vmem:[#allocation14 + $0x6d0] sm:$0xff]
          %v3713 = vld [vmem:[#allocation14 + $0x6d8] sm:$0xff]
          %v3714 = vld [vmem:[#allocation14 + $0x6e0] sm:$0xff]
          %v3715 = vld [vmem:[#allocation14 + $0x6e8] sm:$0xff]
          %v3716 = vld [vmem:[#allocation14 + $0x6f0] sm:$0xff]
          %v3717 = vld [vmem:[#allocation14 + $0x6f8] sm:$0xff]
          %v3718 = vld [vmem:[#allocation14 + $0x700] sm:$0xff]
          %v3719 = vld [vmem:[#allocation14 + $0x708] sm:$0xff]
          %v3720 = vld [vmem:[#allocation14 + $0x710] sm:$0xff]
          %v3721 = vld [vmem:[#allocation14 + $0x718] sm:$0xff]
          %v3722 = vld [vmem:[#allocation14 + $0x720] sm:$0xff]
          %v3723 = vld [vmem:[#allocation14 + $0x728] sm:$0xff]
          %v3724 = vld [vmem:[#allocation14 + $0x730] sm:$0xff]
          %v3725 = vld [vmem:[#allocation14 + $0x738] sm:$0xff]
          %v3726 = vld [vmem:[#allocation14 + $0x740] sm:$0xff]
          %v3727 = vld [vmem:[#allocation14 + $0x748] sm:$0xff]
          %v3728 = vld [vmem:[#allocation14 + $0x750] sm:$0xff]
          %v3729 = vld [vmem:[#allocation14 + $0x758] sm:$0xff]
          %v3730 = vld [vmem:[#allocation14 + $0x760] sm:$0xff]
          %v3731 = vld [vmem:[#allocation14 + $0x768] sm:$0xff]
          %v3732 = vld [vmem:[#allocation14 + $0x770] sm:$0xff]
          %v3733 = vld [vmem:[#allocation14 + $0x778] sm:$0xff]
          %v3734 = vld [vmem:[#allocation14 + $0x780] sm:$0xff]
          %v3735 = vld [vmem:[#allocation14 + $0x788] sm:$0xff]
          %v3736 = vld [vmem:[#allocation14 + $0x790] sm:$0xff]
          %v3737 = vld [vmem:[#allocation14 + $0x798] sm:$0xff]
          %v3738 = vld [vmem:[#allocation14 + $0x7a0] sm:$0xff]
          %v3739 = vld [vmem:[#allocation14 + $0x7a8] sm:$0xff]
          %v3740 = vld [vmem:[#allocation14 + $0x7b0] sm:$0xff]
          %v3741 = vld [vmem:[#allocation14 + $0x7b8] sm:$0xff]
          %v3742 = vld [vmem:[#allocation14 + $0x7c0] sm:$0xff]
          %v3743 = vld [vmem:[#allocation14 + $0x7c8] sm:$0xff]
          %v3744 = vld [vmem:[#allocation14 + $0x7d0] sm:$0xff]
          %v3745 = vld [vmem:[#allocation14 + $0x7d8] sm:$0xff]
          %v3746 = vld [vmem:[#allocation14 + $0x7e0] sm:$0xff]
          %v3747 = vld [vmem:[#allocation14 + $0x7e8] sm:$0xff]
          %v3748 = vld [vmem:[#allocation14 + $0x7f0] sm:$0xff]
          %v3749 = vld [vmem:[#allocation14 + $0x7f8] sm:$0xff]
          %v3750 = vld [vmem:[#allocation14 + $0x800] sm:$0xff]
          %v3751 = vld [vmem:[#allocation14 + $0x808] sm:$0xff]
          %v3752 = vld [vmem:[#allocation14 + $0x810] sm:$0xff]
          %v3753 = vld [vmem:[#allocation14 + $0x818] sm:$0xff]
          %v3754 = vld [vmem:[#allocation14 + $0x820] sm:$0xff]
          %v3755 = vld [vmem:[#allocation14 + $0x828] sm:$0xff]
          %v3756 = vld [vmem:[#allocation14 + $0x830] sm:$0xff]
          %v3757 = vld [vmem:[#allocation14 + $0x838] sm:$0xff]
          %v3758 = vld [vmem:[#allocation14 + $0x840] sm:$0xff]
          %v3759 = vld [vmem:[#allocation14 + $0x848] sm:$0xff]
          %v3760 = vld [vmem:[#allocation14 + $0x850] sm:$0xff]
          %v3761 = vld [vmem:[#allocation14 + $0x858] sm:$0xff]
          %v3762 = vld [vmem:[#allocation14 + $0x860] sm:$0xff]
          %v3763 = vld [vmem:[#allocation14 + $0x868] sm:$0xff]
          %v3764 = vld [vmem:[#allocation14 + $0x870] sm:$0xff]
          %v3765 = vld [vmem:[#allocation14 + $0x878] sm:$0xff]
          %v3766 = vld [vmem:[#allocation14 + $0x880] sm:$0xff]
          %v3767 = vld [vmem:[#allocation14 + $0x888] sm:$0xff]
          %v3768 = vld [vmem:[#allocation14 + $0x890] sm:$0xff]
          %v3769 = vld [vmem:[#allocation14 + $0x898] sm:$0xff]
          %v3770 = vld [vmem:[#allocation14 + $0x8a0] sm:$0xff]
          %v3771 = vld [vmem:[#allocation14 + $0x8a8] sm:$0xff]
          %v3772 = vld [vmem:[#allocation14 + $0x8b0] sm:$0xff]
          %v3773 = vld [vmem:[#allocation14 + $0x8b8] sm:$0xff]
          %v3774 = vld [vmem:[#allocation14 + $0x8c0] sm:$0xff]
          %v3775 = vld [vmem:[#allocation14 + $0x8c8] sm:$0xff]
          %v3776 = vld [vmem:[#allocation14 + $0x8d0] sm:$0xff]
          %v3777 = vld [vmem:[#allocation14 + $0x8d8] sm:$0xff]
          %v3778 = vld [vmem:[#allocation14 + $0x8e0] sm:$0xff]
          %v3779 = vld [vmem:[#allocation14 + $0x8e8] sm:$0xff]
          %v3780 = vld [vmem:[#allocation14 + $0x8f0] sm:$0xff]
          %v3781 = vld [vmem:[#allocation14 + $0x8f8] sm:$0xff]
          %v3782 = vld [vmem:[#allocation14 + $0x900] sm:$0xff]
          %v3783 = vld [vmem:[#allocation14 + $0x908] sm:$0xff]
          %v3784 = vld [vmem:[#allocation14 + $0x910] sm:$0xff]
          %v3785 = vld [vmem:[#allocation14 + $0x918] sm:$0xff]
          %v3786 = vld [vmem:[#allocation14 + $0x920] sm:$0xff]
          %v3787 = vld [vmem:[#allocation14 + $0x928] sm:$0xff]
          %v3788 = vld [vmem:[#allocation14 + $0x930] sm:$0xff]
          %v3789 = vld [vmem:[#allocation14 + $0x938] sm:$0xff]
          %v3790 = vld [vmem:[#allocation14 + $0x940] sm:$0xff]
          %v3791 = vld [vmem:[#allocation14 + $0x948] sm:$0xff]
          %v3792 = vld [vmem:[#allocation14 + $0x950] sm:$0xff]
          %v3793 = vld [vmem:[#allocation14 + $0x958] sm:$0xff]
          %v3794 = vld [vmem:[#allocation14 + $0x960] sm:$0xff]
          %v3795 = vld [vmem:[#allocation14 + $0x968] sm:$0xff]
          %v3796 = vld [vmem:[#allocation14 + $0x970] sm:$0xff]
          %v3797 = vld [vmem:[#allocation14 + $0x978] sm:$0xff]
          %v3798 = vld [vmem:[#allocation14 + $0x980] sm:$0xff]
          %v3799 = vld [vmem:[#allocation14 + $0x988] sm:$0xff]
          %v3800 = vld [vmem:[#allocation14 + $0x990] sm:$0xff]
          %v3801 = vld [vmem:[#allocation14 + $0x998] sm:$0xff]
          %v3802 = vld [vmem:[#allocation14 + $0x9a0] sm:$0xff]
          %v3803 = vld [vmem:[#allocation14 + $0x9a8] sm:$0xff]
          %v3804 = vld [vmem:[#allocation14 + $0x9b0] sm:$0xff]
          %v3805 = vld [vmem:[#allocation14 + $0x9b8] sm:$0xff]
          %v3806 = vld [vmem:[#allocation14 + $0x9c0] sm:$0xff]
          %v3807 = vld [vmem:[#allocation14 + $0x9c8] sm:$0xff]
          %v3808 = vld [vmem:[#allocation14 + $0x9d0] sm:$0xff]
          %v3809 = vld [vmem:[#allocation14 + $0x9d8] sm:$0xff]
          %v3810 = vld [vmem:[#allocation14 + $0x9e0] sm:$0xff]
          %v3811 = vld [vmem:[#allocation14 + $0x9e8] sm:$0xff]
          %v3812 = vld [vmem:[#allocation14 + $0x9f0] sm:$0xff]
          %v3813 = vld [vmem:[#allocation14 + $0x9f8] sm:$0xff]
          %v3814 = vld [vmem:[#allocation14 + $0xa00] sm:$0xff]
          %v3815 = vld [vmem:[#allocation14 + $0xa08] sm:$0xff]
          %v3816 = vld [vmem:[#allocation14 + $0xa10] sm:$0xff]
          %v3817 = vld [vmem:[#allocation14 + $0xa18] sm:$0xff]
          %v3818 = vld [vmem:[#allocation14 + $0xa20] sm:$0xff]
          %v3819 = vld [vmem:[#allocation14 + $0xa28] sm:$0xff]
          %v3820 = vld [vmem:[#allocation14 + $0xa30] sm:$0xff]
          %v3821 = vld [vmem:[#allocation14 + $0xa38] sm:$0xff]
          %v3822 = vld [vmem:[#allocation14 + $0xa40] sm:$0xff]
          %v3823 = vld [vmem:[#allocation14 + $0xa48] sm:$0xff]
          %v3824 = vld [vmem:[#allocation14 + $0xa50] sm:$0xff]
          %v3825 = vld [vmem:[#allocation14 + $0xa58] sm:$0xff]
          %v3826 = vld [vmem:[#allocation14 + $0xa60] sm:$0xff]
          %v3827 = vld [vmem:[#allocation14 + $0xa68] sm:$0xff]
          %v3828 = vld [vmem:[#allocation14 + $0xa70] sm:$0xff]
          %v3829 = vld [vmem:[#allocation14 + $0xa78] sm:$0xff]
          %v3830 = vld [vmem:[#allocation14 + $0xa80] sm:$0xff]
          %v3831 = vld [vmem:[#allocation14 + $0xa88] sm:$0xff]
          %v3832 = vld [vmem:[#allocation14 + $0xa90] sm:$0xff]
          %v3833 = vld [vmem:[#allocation14 + $0xa98] sm:$0xff]
          %v3834 = vld [vmem:[#allocation14 + $0xaa0] sm:$0xff]
          %v3835 = vld [vmem:[#allocation14 + $0xaa8] sm:$0xff]
          %v3836 = vld [vmem:[#allocation14 + $0xab0] sm:$0xff]
          %v3837 = vld [vmem:[#allocation14 + $0xab8] sm:$0xff]
          %v3838 = vld [vmem:[#allocation14 + $0xac0] sm:$0xff]
          %v3839 = vld [vmem:[#allocation14 + $0xac8] sm:$0xff]
          %v3840 = vld [vmem:[#allocation14 + $0xad0] sm:$0xff]
          %v3841 = vld [vmem:[#allocation14 + $0xad8] sm:$0xff]
          %v3842 = vld [vmem:[#allocation14 + $0xae0] sm:$0xff]
          %v3843 = vld [vmem:[#allocation14 + $0xae8] sm:$0xff]
          %v3844 = vld [vmem:[#allocation14 + $0xaf0] sm:$0xff]
          %v3845 = vld [vmem:[#allocation14 + $0xaf8] sm:$0xff]
          %v3846 = vld [vmem:[#allocation14 + $0xb00] sm:$0xff]
          %v3847 = vld [vmem:[#allocation14 + $0xb08] sm:$0xff]
          %v3848 = vld [vmem:[#allocation14 + $0xb10] sm:$0xff]
          %v3849 = vld [vmem:[#allocation14 + $0xb18] sm:$0xff]
          %v3850 = vld [vmem:[#allocation14 + $0xb20] sm:$0xff]
          %v3851 = vld [vmem:[#allocation14 + $0xb28] sm:$0xff]
          %v3852 = vld [vmem:[#allocation14 + $0xb30] sm:$0xff]
          %v3853 = vld [vmem:[#allocation14 + $0xb38] sm:$0xff]
          %v3854 = vld [vmem:[#allocation14 + $0xb40] sm:$0xff]
          %v3855 = vld [vmem:[#allocation14 + $0xb48] sm:$0xff]
          %v3856 = vld [vmem:[#allocation14 + $0xb50] sm:$0xff]
          %v3857 = vld [vmem:[#allocation14 + $0xb58] sm:$0xff]
          %v3858 = vld [vmem:[#allocation14 + $0xb60] sm:$0xff]
          %v3859 = vld [vmem:[#allocation14 + $0xb68] sm:$0xff]
          %v3860 = vld [vmem:[#allocation14 + $0xb70] sm:$0xff]
          %v3861 = vld [vmem:[#allocation14 + $0xb78] sm:$0xff]
          %v3862 = vld [vmem:[#allocation14 + $0xb80] sm:$0xff]
          %v3863 = vld [vmem:[#allocation14 + $0xb88] sm:$0xff]
          %v3864 = vld [vmem:[#allocation14 + $0xb90] sm:$0xff]
          %v3865 = vld [vmem:[#allocation14 + $0xb98] sm:$0xff]
          %v3866 = vld [vmem:[#allocation14 + $0xba0] sm:$0xff]
          %v3867 = vld [vmem:[#allocation14 + $0xba8] sm:$0xff]
          %v3868 = vld [vmem:[#allocation14 + $0xbb0] sm:$0xff]
          %v3869 = vld [vmem:[#allocation14 + $0xbb8] sm:$0xff]
          %v3870 = vld [vmem:[#allocation14 + $0xbc0] sm:$0xff]
          %v3871 = vld [vmem:[#allocation14 + $0xbc8] sm:$0xff]
          %v3872 = vld [vmem:[#allocation14 + $0xbd0] sm:$0xff]
          %v3873 = vld [vmem:[#allocation14 + $0xbd8] sm:$0xff]
          %v3874 = vld [vmem:[#allocation14 + $0xbe0] sm:$0xff]
          %v3875 = vld [vmem:[#allocation14 + $0xbe8] sm:$0xff]
          %v3876 = vld [vmem:[#allocation14 + $0xbf0] sm:$0xff]
          %v3877 = vld [vmem:[#allocation14 + $0xbf8] sm:$0xff]
          %v3878 = vld [vmem:[#allocation14 + $0xc00] sm:$0xff]
          %v3879 = vld [vmem:[#allocation14 + $0xc08] sm:$0xff]
          %v3880 = vld [vmem:[#allocation14 + $0xc10] sm:$0xff]
          %v3881 = vld [vmem:[#allocation14 + $0xc18] sm:$0xff]
          %v3882 = vld [vmem:[#allocation14 + $0xc20] sm:$0xff]
          %v3883 = vld [vmem:[#allocation14 + $0xc28] sm:$0xff]
          %v3884 = vld [vmem:[#allocation14 + $0xc30] sm:$0xff]
          %v3885 = vld [vmem:[#allocation14 + $0xc38] sm:$0xff]
          %v3886 = vld [vmem:[#allocation14 + $0xc40] sm:$0xff]
          %v3887 = vld [vmem:[#allocation14 + $0xc48] sm:$0xff]
          %v3888 = vld [vmem:[#allocation14 + $0xc50] sm:$0xff]
          %v3889 = vld [vmem:[#allocation14 + $0xc58] sm:$0xff]
          %v3890 = vld [vmem:[#allocation14 + $0xc60] sm:$0xff]
          %v3891 = vld [vmem:[#allocation14 + $0xc68] sm:$0xff]
          %v3892 = vld [vmem:[#allocation14 + $0xc70] sm:$0xff]
          %v3893 = vld [vmem:[#allocation14 + $0xc78] sm:$0xff]
          %v3894 = vld [vmem:[#allocation14 + $0xc80] sm:$0xff]
          %v3895 = vld [vmem:[#allocation14 + $0xc88] sm:$0xff]
          %v3896 = vld [vmem:[#allocation14 + $0xc90] sm:$0xff]
          %v3897 = vld [vmem:[#allocation14 + $0xc98] sm:$0xff]
          %v3898 = vld [vmem:[#allocation14 + $0xca0] sm:$0xff]
          %v3899 = vld [vmem:[#allocation14 + $0xca8] sm:$0xff]
          %v3900 = vld [vmem:[#allocation14 + $0xcb0] sm:$0xff]
          %v3901 = vld [vmem:[#allocation14 + $0xcb8] sm:$0xff]
          %v3902 = vld [vmem:[#allocation14 + $0xcc0] sm:$0xff]
          %v3903 = vld [vmem:[#allocation14 + $0xcc8] sm:$0xff]
          %v3904 = vld [vmem:[#allocation14 + $0xcd0] sm:$0xff]
          %v3905 = vld [vmem:[#allocation14 + $0xcd8] sm:$0xff]
          %v3906 = vld [vmem:[#allocation14 + $0xce0] sm:$0xff]
          %v3907 = vld [vmem:[#allocation14 + $0xce8] sm:$0xff]
          %v3908 = vld [vmem:[#allocation14 + $0xcf0] sm:$0xff]
          %v3909 = vld [vmem:[#allocation14 + $0xcf8] sm:$0xff]
          %v3910 = vld [vmem:[#allocation14 + $0xd00] sm:$0xff]
          %v3911 = vld [vmem:[#allocation14 + $0xd08] sm:$0xff]
          %v3912 = vld [vmem:[#allocation14 + $0xd10] sm:$0xff]
          %v3913 = vld [vmem:[#allocation14 + $0xd18] sm:$0xff]
          %v3914 = vld [vmem:[#allocation14 + $0xd20] sm:$0xff]
          %v3915 = vld [vmem:[#allocation14 + $0xd28] sm:$0xff]
          %v3916 = vld [vmem:[#allocation14 + $0xd30] sm:$0xff]
          %v3917 = vld [vmem:[#allocation14 + $0xd38] sm:$0xff]
          %v3918 = vld [vmem:[#allocation14 + $0xd40] sm:$0xff]
          %v3919 = vld [vmem:[#allocation14 + $0xd48] sm:$0xff]
          %v3920 = vld [vmem:[#allocation14 + $0xd50] sm:$0xff]
          %v3921 = vld [vmem:[#allocation14 + $0xd58] sm:$0xff]
          %v3922 = vld [vmem:[#allocation14 + $0xd60] sm:$0xff]
          %v3923 = vld [vmem:[#allocation14 + $0xd68] sm:$0xff]
          %v3924 = vld [vmem:[#allocation14 + $0xd70] sm:$0xff]
          %v3925 = vld [vmem:[#allocation14 + $0xd78] sm:$0xff]
          %v3926 = vld [vmem:[#allocation14 + $0xd80] sm:$0xff]
          %v3927 = vld [vmem:[#allocation14 + $0xd88] sm:$0xff]
          %v3928 = vld [vmem:[#allocation14 + $0xd90] sm:$0xff]
          %v3929 = vld [vmem:[#allocation14 + $0xd98] sm:$0xff]
          %v3930 = vld [vmem:[#allocation14 + $0xda0] sm:$0xff]
          %v3931 = vld [vmem:[#allocation14 + $0xda8] sm:$0xff]
          %v3932 = vld [vmem:[#allocation14 + $0xdb0] sm:$0xff]
          %v3933 = vld [vmem:[#allocation14 + $0xdb8] sm:$0xff]
          %v3934 = vld [vmem:[#allocation14 + $0xdc0] sm:$0xff]
          %v3935 = vld [vmem:[#allocation14 + $0xdc8] sm:$0xff]
          %v3936 = vld [vmem:[#allocation14 + $0xdd0] sm:$0xff]
          %v3937 = vld [vmem:[#allocation14 + $0xdd8] sm:$0xff]
          %v3938 = vld [vmem:[#allocation14 + $0xde0] sm:$0xff]
          %v3939 = vld [vmem:[#allocation14 + $0xde8] sm:$0xff]
          %v3940 = vld [vmem:[#allocation14 + $0xdf0] sm:$0xff]
          %v3941 = vld [vmem:[#allocation14 + $0xdf8] sm:$0xff]
          %v3942 = vld [vmem:[#allocation14 + $0xe00] sm:$0xff]
          %v3943 = vld [vmem:[#allocation14 + $0xe08] sm:$0xff]
          %v3944 = vld [vmem:[#allocation14 + $0xe10] sm:$0xff]
          %v3945 = vld [vmem:[#allocation14 + $0xe18] sm:$0xff]
          %v3946 = vld [vmem:[#allocation14 + $0xe20] sm:$0xff]
          %v3947 = vld [vmem:[#allocation14 + $0xe28] sm:$0xff]
          %v3948 = vld [vmem:[#allocation14 + $0xe30] sm:$0xff]
          %v3949 = vld [vmem:[#allocation14 + $0xe38] sm:$0xff]
          %v3950 = vld [vmem:[#allocation14 + $0xe40] sm:$0xff]
          %v3951 = vld [vmem:[#allocation14 + $0xe48] sm:$0xff]
          %v3952 = vld [vmem:[#allocation14 + $0xe50] sm:$0xff]
          %v3953 = vld [vmem:[#allocation14 + $0xe58] sm:$0xff]
          %v3954 = vld [vmem:[#allocation14 + $0xe60] sm:$0xff]
          %v3955 = vld [vmem:[#allocation14 + $0xe68] sm:$0xff]
          %v3956 = vld [vmem:[#allocation14 + $0xe70] sm:$0xff]
          %v3957 = vld [vmem:[#allocation14 + $0xe78] sm:$0xff]
          %v3958 = vld [vmem:[#allocation14 + $0xe80] sm:$0xff]
          %v3959 = vld [vmem:[#allocation14 + $0xe88] sm:$0xff]
          %v3960 = vld [vmem:[#allocation14 + $0xe90] sm:$0xff]
          %v3961 = vld [vmem:[#allocation14 + $0xe98] sm:$0xff]
          %v3962 = vld [vmem:[#allocation14 + $0xea0] sm:$0xff]
          %v3963 = vld [vmem:[#allocation14 + $0xea8] sm:$0xff]
          %v3964 = vld [vmem:[#allocation14 + $0xeb0] sm:$0xff]
          %v3965 = vld [vmem:[#allocation14 + $0xeb8] sm:$0xff]
          %v3966 = vld [vmem:[#allocation14 + $0xec0] sm:$0xff]
          %v3967 = vld [vmem:[#allocation14 + $0xec8] sm:$0xff]
          %v3968 = vld [vmem:[#allocation14 + $0xed0] sm:$0xff]
          %v3969 = vld [vmem:[#allocation14 + $0xed8] sm:$0xff]
          %v3970 = vld [vmem:[#allocation14 + $0xee0] sm:$0xff]
          %v3971 = vld [vmem:[#allocation14 + $0xee8] sm:$0xff]
          %v3972 = vld [vmem:[#allocation14 + $0xef0] sm:$0xff]
          %v3973 = vld [vmem:[#allocation14 + $0xef8] sm:$0xff]
          %v3974 = vld [vmem:[#allocation14 + $0xf00] sm:$0xff]
          %v3975 = vld [vmem:[#allocation14 + $0xf08] sm:$0xff]
          %v3976 = vld [vmem:[#allocation14 + $0xf10] sm:$0xff]
          %v3977 = vld [vmem:[#allocation14 + $0xf18] sm:$0xff]
          %v3978 = vld [vmem:[#allocation14 + $0xf20] sm:$0xff]
          %v3979 = vld [vmem:[#allocation14 + $0xf28] sm:$0xff]
          %v3980 = vld [vmem:[#allocation14 + $0xf30] sm:$0xff]
          %v3981 = vld [vmem:[#allocation14 + $0xf38] sm:$0xff]
          %v3982 = vld [vmem:[#allocation14 + $0xf40] sm:$0xff]
          %v3983 = vld [vmem:[#allocation14 + $0xf48] sm:$0xff]
          %v3984 = vld [vmem:[#allocation14 + $0xf50] sm:$0xff]
          %v3985 = vld [vmem:[#allocation14 + $0xf58] sm:$0xff]
          %v3986 = vld [vmem:[#allocation14 + $0xf60] sm:$0xff]
          %v3987 = vld [vmem:[#allocation14 + $0xf68] sm:$0xff]
          %v3988 = vld [vmem:[#allocation14 + $0xf70] sm:$0xff]
          %v3989 = vld [vmem:[#allocation14 + $0xf78] sm:$0xff]
          %v3990 = vld [vmem:[#allocation14 + $0xf80] sm:$0xff]
          %v3991 = vld [vmem:[#allocation14 + $0xf88] sm:$0xff]
          %v3992 = vld [vmem:[#allocation14 + $0xf90] sm:$0xff]
          %v3993 = vld [vmem:[#allocation14 + $0xf98] sm:$0xff]
          %v3994 = vld [vmem:[#allocation14 + $0xfa0] sm:$0xff]
          %v3995 = vld [vmem:[#allocation14 + $0xfa8] sm:$0xff]
          %v3996 = vld [vmem:[#allocation14 + $0xfb0] sm:$0xff]
          %v3997 = vld [vmem:[#allocation14 + $0xfb8] sm:$0xff]
          %v3998 = vld [vmem:[#allocation14 + $0xfc0] sm:$0xff]
          %v3999 = vld [vmem:[#allocation14 + $0xfc8] sm:$0xff]
          %v4000 = vld [vmem:[#allocation14 + $0xfd0] sm:$0xff]
          %v4001 = vld [vmem:[#allocation14 + $0xfd8] sm:$0xff]
          %v4002 = vld [vmem:[#allocation14 + $0xfe0] sm:$0xff]
          %v4003 = vld [vmem:[#allocation14 + $0xfe8] sm:$0xff]
          %v4004 = vld [vmem:[#allocation14 + $0xff0] sm:$0xff]
          %v4005 = vld [vmem:[#allocation14 + $0xff8] sm:$0xff]
          %v4006 = vld [vmem:[#allocation15] sm:$0xf]
          %v4008 = vlaneseq
          %v4009 = vshrl.u32 %v4008, 7
          %v4010 = vsub.s32 0, %v4009
          %v4011 = vrot.slane %v3493, %v4010
          %v4012 = vlaneseq
          %v4013 = vshrl.u32 %v4012, 7
          %v4014 = vsub.s32 1, %v4013
          %v4015 = vrot.slane %v3493, %v4014
          %v4016 = vlaneseq
          %v4017 = vshrl.u32 %v4016, 7
          %v4018 = vsub.s32 2, %v4017
          %v4019 = vrot.slane %v3493, %v4018
          %v4020 = vlaneseq
          %v4021 = vshrl.u32 %v4020, 7
          %v4022 = vsub.s32 3, %v4021
          %v4023 = vrot.slane %v3493, %v4022
          %v4024 = vlaneseq
          %v4025 = vshrl.u32 %v4024, 7
          %v4026 = vsub.s32 4, %v4025
          %v4027 = vrot.slane %v3493, %v4026
          %v4028 = vlaneseq
          %v4029 = vshrl.u32 %v4028, 7
          %v4030 = vsub.s32 5, %v4029
          %v4031 = vrot.slane %v3493, %v4030
          %v4032 = vlaneseq
          %v4033 = vshrl.u32 %v4032, 7
          %v4034 = vsub.s32 6, %v4033
          %v4035 = vrot.slane %v3493, %v4034
          %v4036 = vlaneseq
          %v4037 = vshrl.u32 %v4036, 7
          %v4038 = vsub.s32 7, %v4037
          %v4039 = vrot.slane %v3493, %v4038
          %v4049 = vlaneseq
          %v4050 = vshrl.u32 %v4049, 7
          %v4051 = vsub.s32 0, %v4050
          %v4052 = vrot.slane %v4006, %v4051
          %v4053 = vlaneseq
          %v4054 = vshrl.u32 %v4053, 7
          %v4055 = vsub.s32 1, %v4054
          %v4056 = vrot.slane %v4006, %v4055
          %v4057 = vlaneseq
          %v4058 = vshrl.u32 %v4057, 7
          %v4059 = vsub.s32 2, %v4058
          %v4060 = vrot.slane %v4006, %v4059
          %v4061 = vlaneseq
          %v4062 = vshrl.u32 %v4061, 7
          %v4063 = vsub.s32 3, %v4062
          %v4064 = vrot.slane %v4006, %v4063
          %4069 = vmatprep.subr.mxu0 %v3555
          %4070 = vmatpush1.msra.mxu0 %v3554
          %4071 = vmatprep.subr.mxu0 %v3551
          %4072 = vmatpush1.msra.mxu0 %v3550
          %4073 = vmatprep.subr.mxu0 %v3547
          %4074 = vmatpush1.msra.mxu0 %v3546
          %4075 = vmatprep.subr.mxu0 %v3543
          %4076 = vmatpush1.msra.mxu0 %v3542
          %4077 = vmatprep.subr.mxu0 %v3539
          %4078 = vmatpush1.msra.mxu0 %v3538
          %4079 = vmatprep.subr.mxu0 %v3535
          %4080 = vmatpush1.msra.mxu0 %v3534
          %4081 = vmatprep.subr.mxu0 %v3531
          %4082 = vmatpush1.msra.mxu0 %v3530
          %4083 = vmatprep.subr.mxu0 %v3527
          %4084 = vmatpush1.msra.mxu0 %v3526
          %4085 = vmatprep.subr.mxu0 %v3523
          %4086 = vmatpush1.msra.mxu0 %v3522
          %4087 = vmatprep.subr.mxu0 %v3519
          %4088 = vmatpush1.msra.mxu0 %v3518
          %4089 = vmatprep.subr.mxu0 %v3515
          %4090 = vmatpush1.msra.mxu0 %v3514
          %4091 = vmatprep.subr.mxu0 %v3511
          %4092 = vmatpush1.msra.mxu0 %v3510
          %4093 = vmatprep.subr.mxu0 %v3507
          %4094 = vmatpush1.msra.mxu0 %v3506
          %4095 = vmatprep.subr.mxu0 %v3503
          %4096 = vmatpush1.msra.mxu0 %v3502
          %4097 = vmatprep.subr.mxu0 %v3499
          %4098 = vmatpush1.msra.mxu0 %v3498
          %4099 = vmatprep.subr.mxu0 %v3495
          %4100 = vmatpush1.msra.mxu0 %v3494
          %4101 = vmatprep.subr.mxu0 %v3619
          %4102 = vmatpush2.msra.mxu0 %v3618
          %4103 = vmatprep.subr.mxu0 %v3615
          %4104 = vmatpush2.msra.mxu0 %v3614
          %4105 = vmatprep.subr.mxu0 %v3611
          %4106 = vmatpush2.msra.mxu0 %v3610
          %4107 = vmatprep.subr.mxu0 %v3607
          %4108 = vmatpush2.msra.mxu0 %v3606
          %4109 = vmatprep.subr.mxu0 %v3603
          %4110 = vmatpush2.msra.mxu0 %v3602
          %4111 = vmatprep.subr.mxu0 %v3599
          %4112 = vmatpush2.msra.mxu0 %v3598
          %4113 = vmatprep.subr.mxu0 %v3595
          %4114 = vmatpush2.msra.mxu0 %v3594
          %4115 = vmatprep.subr.mxu0 %v3591
          %4116 = vmatpush2.msra.mxu0 %v3590
          %4117 = vmatprep.subr.mxu0 %v3587
          %4118 = vmatpush2.msra.mxu0 %v3586
          %4119 = vmatprep.subr.mxu0 %v3583
          %4120 = vmatpush2.msra.mxu0 %v3582
          %4121 = vmatprep.subr.mxu0 %v3579
          %4122 = vmatpush2.msra.mxu0 %v3578
          %4123 = vmatprep.subr.mxu0 %v3575
          %4124 = vmatpush2.msra.mxu0 %v3574
          %4125 = vmatprep.subr.mxu0 %v3571
          %4126 = vmatpush2.msra.mxu0 %v3570
          %4127 = vmatprep.subr.mxu0 %v3567
          %4128 = vmatpush2.msra.mxu0 %v3566
          %4129 = vmatprep.subr.mxu0 %v3563
          %4130 = vmatpush2.msra.mxu0 %v3562
          %4131 = vmatprep.subr.mxu0 %v3559
          %4132 = vmatpush2.msra.mxu0 %v3558
          %4133 = vmatprep.mubr.f32.mxu0 %v4015
          %4134 = vmatmul.mubr.f32.gmra.mxu0 %v4011
          %v4135 = vpop.f32.mrf.mxu0
          %v4136 = vadd.f32 %v4052, %v4135
          %v4137 = vpop.f32.mrf.mxu0
          %v4138 = vadd.f32 %v4056, %v4137
          %4139 = vdwg.mxu0
          %4140 = vmatprep.subr.mxu0 %v3683
          %4141 = vmatpush1.msra.mxu0 %v3682
          %4142 = vmatprep.subr.mxu0 %v3679
          %4143 = vmatpush1.msra.mxu0 %v3678
          %4144 = vmatprep.subr.mxu0 %v3675
          %4145 = vmatpush1.msra.mxu0 %v3674
          %4146 = vmatprep.subr.mxu0 %v3671
          %4147 = vmatpush1.msra.mxu0 %v3670
          %4148 = vmatprep.subr.mxu0 %v3667
          %4149 = vmatpush1.msra.mxu0 %v3666
          %4150 = vmatprep.subr.mxu0 %v3663
          %4151 = vmatpush1.msra.mxu0 %v3662
          %4152 = vmatprep.subr.mxu0 %v3659
          %4153 = vmatpush1.msra.mxu0 %v3658
          %4154 = vmatprep.subr.mxu0 %v3655
          %4155 = vmatpush1.msra.mxu0 %v3654
          %4156 = vmatprep.subr.mxu0 %v3651
          %4157 = vmatpush1.msra.mxu0 %v3650
          %4158 = vmatprep.subr.mxu0 %v3647
          %4159 = vmatpush1.msra.mxu0 %v3646
          %4160 = vmatprep.subr.mxu0 %v3643
          %4161 = vmatpush1.msra.mxu0 %v3642
          %4162 = vmatprep.subr.mxu0 %v3639
          %4163 = vmatpush1.msra.mxu0 %v3638
          %4164 = vmatprep.subr.mxu0 %v3635
          %4165 = vmatpush1.msra.mxu0 %v3634
          %4166 = vmatprep.subr.mxu0 %v3631
          %4167 = vmatpush1.msra.mxu0 %v3630
          %4168 = vmatprep.subr.mxu0 %v3627
          %4169 = vmatpush1.msra.mxu0 %v3626
          %4170 = vmatprep.subr.mxu0 %v3623
          %4171 = vmatpush1.msra.mxu0 %v3622
          %4172 = vmatprep.subr.mxu0 %v3747
          %4173 = vmatpush2.msra.mxu0 %v3746
          %4174 = vmatprep.subr.mxu0 %v3743
          %4175 = vmatpush2.msra.mxu0 %v3742
          %4176 = vmatprep.subr.mxu0 %v3739
          %4177 = vmatpush2.msra.mxu0 %v3738
          %4178 = vmatprep.subr.mxu0 %v3735
          %4179 = vmatpush2.msra.mxu0 %v3734
          %4180 = vmatprep.subr.mxu0 %v3731
          %4181 = vmatpush2.msra.mxu0 %v3730
          %4182 = vmatprep.subr.mxu0 %v3727
          %4183 = vmatpush2.msra.mxu0 %v3726
          %4184 = vmatprep.subr.mxu0 %v3723
          %4185 = vmatpush2.msra.mxu0 %v3722
          %4186 = vmatprep.subr.mxu0 %v3719
          %4187 = vmatpush2.msra.mxu0 %v3718
          %4188 = vmatprep.subr.mxu0 %v3715
          %4189 = vmatpush2.msra.mxu0 %v3714
          %4190 = vmatprep.subr.mxu0 %v3711
          %4191 = vmatpush2.msra.mxu0 %v3710
          %4192 = vmatprep.subr.mxu0 %v3707
          %4193 = vmatpush2.msra.mxu0 %v3706
          %4194 = vmatprep.subr.mxu0 %v3703
          %4195 = vmatpush2.msra.mxu0 %v3702
          %4196 = vmatprep.subr.mxu0 %v3699
          %4197 = vmatpush2.msra.mxu0 %v3698
          %4198 = vmatprep.subr.mxu0 %v3695
          %4199 = vmatpush2.msra.mxu0 %v3694
          %4200 = vmatprep.subr.mxu0 %v3691
          %4201 = vmatpush2.msra.mxu0 %v3690
          %4202 = vmatprep.subr.mxu0 %v3687
          %4203 = vmatpush2.msra.mxu0 %v3686
          %4204 = vmatprep.mubr.f32.mxu0 %v4023
          %4205 = vmatmul.mubr.f32.gmra.mxu0 %v4019
          %v4206 = vpop.f32.mrf.mxu0
          %v4207 = vadd.f32 %v4136, %v4206
          %v4208 = vpop.f32.mrf.mxu0
          %v4209 = vadd.f32 %v4138, %v4208
          %4210 = vdwg.mxu0
          %4211 = vmatprep.subr.mxu0 %v3811
          %4212 = vmatpush1.msra.mxu0 %v3810
          %4213 = vmatprep.subr.mxu0 %v3807
          %4214 = vmatpush1.msra.mxu0 %v3806
          %4215 = vmatprep.subr.mxu0 %v3803
          %4216 = vmatpush1.msra.mxu0 %v3802
          %4217 = vmatprep.subr.mxu0 %v3799
          %4218 = vmatpush1.msra.mxu0 %v3798
          %4219 = vmatprep.subr.mxu0 %v3795
          %4220 = vmatpush1.msra.mxu0 %v3794
          %4221 = vmatprep.subr.mxu0 %v3791
          %4222 = vmatpush1.msra.mxu0 %v3790
          %4223 = vmatprep.subr.mxu0 %v3787
          %4224 = vmatpush1.msra.mxu0 %v3786
          %4225 = vmatprep.subr.mxu0 %v3783
          %4226 = vmatpush1.msra.mxu0 %v3782
          %4227 = vmatprep.subr.mxu0 %v3779
          %4228 = vmatpush1.msra.mxu0 %v3778
          %4229 = vmatprep.subr.mxu0 %v3775
          %4230 = vmatpush1.msra.mxu0 %v3774
          %4231 = vmatprep.subr.mxu0 %v3771
          %4232 = vmatpush1.msra.mxu0 %v3770
          %4233 = vmatprep.subr.mxu0 %v3767
          %4234 = vmatpush1.msra.mxu0 %v3766
          %4235 = vmatprep.subr.mxu0 %v3763
          %4236 = vmatpush1.msra.mxu0 %v3762
          %4237 = vmatprep.subr.mxu0 %v3759
          %4238 = vmatpush1.msra.mxu0 %v3758
          %4239 = vmatprep.subr.mxu0 %v3755
          %4240 = vmatpush1.msra.mxu0 %v3754
          %4241 = vmatprep.subr.mxu0 %v3751
          %4242 = vmatpush1.msra.mxu0 %v3750
          %4243 = vmatprep.subr.mxu0 %v3875
          %4244 = vmatpush2.msra.mxu0 %v3874
          %4245 = vmatprep.subr.mxu0 %v3871
          %4246 = vmatpush2.msra.mxu0 %v3870
          %4247 = vmatprep.subr.mxu0 %v3867
          %4248 = vmatpush2.msra.mxu0 %v3866
          %4249 = vmatprep.subr.mxu0 %v3863
          %4250 = vmatpush2.msra.mxu0 %v3862
          %4251 = vmatprep.subr.mxu0 %v3859
          %4252 = vmatpush2.msra.mxu0 %v3858
          %4253 = vmatprep.subr.mxu0 %v3855
          %4254 = vmatpush2.msra.mxu0 %v3854
          %4255 = vmatprep.subr.mxu0 %v3851
          %4256 = vmatpush2.msra.mxu0 %v3850
          %4257 = vmatprep.subr.mxu0 %v3847
          %4258 = vmatpush2.msra.mxu0 %v3846
          %4259 = vmatprep.subr.mxu0 %v3843
          %4260 = vmatpush2.msra.mxu0 %v3842
          %4261 = vmatprep.subr.mxu0 %v3839
          %4262 = vmatpush2.msra.mxu0 %v3838
          %4263 = vmatprep.subr.mxu0 %v3835
          %4264 = vmatpush2.msra.mxu0 %v3834
          %4265 = vmatprep.subr.mxu0 %v3831
          %4266 = vmatpush2.msra.mxu0 %v3830
          %4267 = vmatprep.subr.mxu0 %v3827
          %4268 = vmatpush2.msra.mxu0 %v3826
          %4269 = vmatprep.subr.mxu0 %v3823
          %4270 = vmatpush2.msra.mxu0 %v3822
          %4271 = vmatprep.subr.mxu0 %v3819
          %4272 = vmatpush2.msra.mxu0 %v3818
          %4273 = vmatprep.subr.mxu0 %v3815
          %4274 = vmatpush2.msra.mxu0 %v3814
          %4275 = vmatprep.mubr.f32.mxu0 %v4031
          %4276 = vmatmul.mubr.f32.gmra.mxu0 %v4027
          %v4277 = vpop.f32.mrf.mxu0
          %v4278 = vadd.f32 %v4207, %v4277
          %v4279 = vpop.f32.mrf.mxu0
          %v4280 = vadd.f32 %v4209, %v4279
          %4281 = vdwg.mxu0
          %4282 = vmatprep.subr.mxu0 %v3939
          %4283 = vmatpush1.msra.mxu0 %v3938
          %4284 = vmatprep.subr.mxu0 %v3935
          %4285 = vmatpush1.msra.mxu0 %v3934
          %4286 = vmatprep.subr.mxu0 %v3931
          %4287 = vmatpush1.msra.mxu0 %v3930
          %4288 = vmatprep.subr.mxu0 %v3927
          %4289 = vmatpush1.msra.mxu0 %v3926
          %4290 = vmatprep.subr.mxu0 %v3923
          %4291 = vmatpush1.msra.mxu0 %v3922
          %4292 = vmatprep.subr.mxu0 %v3919
          %4293 = vmatpush1.msra.mxu0 %v3918
          %4294 = vmatprep.subr.mxu0 %v3915
          %4295 = vmatpush1.msra.mxu0 %v3914
          %4296 = vmatprep.subr.mxu0 %v3911
          %4297 = vmatpush1.msra.mxu0 %v3910
          %4298 = vmatprep.subr.mxu0 %v3907
          %4299 = vmatpush1.msra.mxu0 %v3906
          %4300 = vmatprep.subr.mxu0 %v3903
          %4301 = vmatpush1.msra.mxu0 %v3902
          %4302 = vmatprep.subr.mxu0 %v3899
          %4303 = vmatpush1.msra.mxu0 %v3898
          %4304 = vmatprep.subr.mxu0 %v3895
          %4305 = vmatpush1.msra.mxu0 %v3894
          %4306 = vmatprep.subr.mxu0 %v3891
          %4307 = vmatpush1.msra.mxu0 %v3890
          %4308 = vmatprep.subr.mxu0 %v3887
          %4309 = vmatpush1.msra.mxu0 %v3886
          %4310 = vmatprep.subr.mxu0 %v3883
          %4311 = vmatpush1.msra.mxu0 %v3882
          %4312 = vmatprep.subr.mxu0 %v3879
          %4313 = vmatpush1.msra.mxu0 %v3878
          %4314 = vmatprep.subr.mxu0 %v4003
          %4315 = vmatpush2.msra.mxu0 %v4002
          %4316 = vmatprep.subr.mxu0 %v3999
          %4317 = vmatpush2.msra.mxu0 %v3998
          %4318 = vmatprep.subr.mxu0 %v3995
          %4319 = vmatpush2.msra.mxu0 %v3994
          %4320 = vmatprep.subr.mxu0 %v3991
          %4321 = vmatpush2.msra.mxu0 %v3990
          %4322 = vmatprep.subr.mxu0 %v3987
          %4323 = vmatpush2.msra.mxu0 %v3986
          %4324 = vmatprep.subr.mxu0 %v3983
          %4325 = vmatpush2.msra.mxu0 %v3982
          %4326 = vmatprep.subr.mxu0 %v3979
          %4327 = vmatpush2.msra.mxu0 %v3978
          %4328 = vmatprep.subr.mxu0 %v3975
          %4329 = vmatpush2.msra.mxu0 %v3974
          %4330 = vmatprep.subr.mxu0 %v3971
          %4331 = vmatpush2.msra.mxu0 %v3970
          %4332 = vmatprep.subr.mxu0 %v3967
          %4333 = vmatpush2.msra.mxu0 %v3966
          %4334 = vmatprep.subr.mxu0 %v3963
          %4335 = vmatpush2.msra.mxu0 %v3962
          %4336 = vmatprep.subr.mxu0 %v3959
          %4337 = vmatpush2.msra.mxu0 %v3958
          %4338 = vmatprep.subr.mxu0 %v3955
          %4339 = vmatpush2.msra.mxu0 %v3954
          %4340 = vmatprep.subr.mxu0 %v3951
          %4341 = vmatpush2.msra.mxu0 %v3950
          %4342 = vmatprep.subr.mxu0 %v3947
          %4343 = vmatpush2.msra.mxu0 %v3946
          %4344 = vmatprep.subr.mxu0 %v3943
          %4345 = vmatpush2.msra.mxu0 %v3942
          %4346 = vmatprep.mubr.f32.mxu0 %v4039
          %4347 = vmatmul.mubr.f32.gmra.mxu0 %v4035
          %v4348 = vpop.f32.mrf.mxu0
          %v4349 = vadd.f32 %v4278, %v4348
          %v4350 = vpop.f32.mrf.mxu0
          %v4351 = vadd.f32 %v4280, %v4350
          %4352 = vdwg.mxu0
          %4353 = vmatprep.subr.mxu0 %v3557
          %4354 = vmatpush1.msra.mxu0 %v3556
          %4355 = vmatprep.subr.mxu0 %v3553
          %4356 = vmatpush1.msra.mxu0 %v3552
          %4357 = vmatprep.subr.mxu0 %v3549
          %4358 = vmatpush1.msra.mxu0 %v3548
          %4359 = vmatprep.subr.mxu0 %v3545
          %4360 = vmatpush1.msra.mxu0 %v3544
          %4361 = vmatprep.subr.mxu0 %v3541
          %4362 = vmatpush1.msra.mxu0 %v3540
          %4363 = vmatprep.subr.mxu0 %v3537
          %4364 = vmatpush1.msra.mxu0 %v3536
          %4365 = vmatprep.subr.mxu0 %v3533
          %4366 = vmatpush1.msra.mxu0 %v3532
          %4367 = vmatprep.subr.mxu0 %v3529
          %4368 = vmatpush1.msra.mxu0 %v3528
          %4369 = vmatprep.subr.mxu0 %v3525
          %4370 = vmatpush1.msra.mxu0 %v3524
          %4371 = vmatprep.subr.mxu0 %v3521
          %4372 = vmatpush1.msra.mxu0 %v3520
          %4373 = vmatprep.subr.mxu0 %v3517
          %4374 = vmatpush1.msra.mxu0 %v3516
          %4375 = vmatprep.subr.mxu0 %v3513
          %4376 = vmatpush1.msra.mxu0 %v3512
          %4377 = vmatprep.subr.mxu0 %v3509
          %4378 = vmatpush1.msra.mxu0 %v3508
          %4379 = vmatprep.subr.mxu0 %v3505
          %4380 = vmatpush1.msra.mxu0 %v3504
          %4381 = vmatprep.subr.mxu0 %v3501
          %4382 = vmatpush1.msra.mxu0 %v3500
          %4383 = vmatprep.subr.mxu0 %v3497
          %4384 = vmatpush1.msra.mxu0 %v3496
          %4385 = vmatprep.subr.mxu0 %v3621
          %4386 = vmatpush2.msra.mxu0 %v3620
          %4387 = vmatprep.subr.mxu0 %v3617
          %4388 = vmatpush2.msra.mxu0 %v3616
          %4389 = vmatprep.subr.mxu0 %v3613
          %4390 = vmatpush2.msra.mxu0 %v3612
          %4391 = vmatprep.subr.mxu0 %v3609
          %4392 = vmatpush2.msra.mxu0 %v3608
          %4393 = vmatprep.subr.mxu0 %v3605
          %4394 = vmatpush2.msra.mxu0 %v3604
          %4395 = vmatprep.subr.mxu0 %v3601
          %4396 = vmatpush2.msra.mxu0 %v3600
          %4397 = vmatprep.subr.mxu0 %v3597
          %4398 = vmatpush2.msra.mxu0 %v3596
          %4399 = vmatprep.subr.mxu0 %v3593
          %4400 = vmatpush2.msra.mxu0 %v3592
          %4401 = vmatprep.subr.mxu0 %v3589
          %4402 = vmatpush2.msra.mxu0 %v3588
          %4403 = vmatprep.subr.mxu0 %v3585
          %4404 = vmatpush2.msra.mxu0 %v3584
          %4405 = vmatprep.subr.mxu0 %v3581
          %4406 = vmatpush2.msra.mxu0 %v3580
          %4407 = vmatprep.subr.mxu0 %v3577
          %4408 = vmatpush2.msra.mxu0 %v3576
          %4409 = vmatprep.subr.mxu0 %v3573
          %4410 = vmatpush2.msra.mxu0 %v3572
          %4411 = vmatprep.subr.mxu0 %v3569
          %4412 = vmatpush2.msra.mxu0 %v3568
          %4413 = vmatprep.subr.mxu0 %v3565
          %4414 = vmatpush2.msra.mxu0 %v3564
          %4415 = vmatprep.subr.mxu0 %v3561
          %4416 = vmatpush2.msra.mxu0 %v3560
          %4417 = vmatprep.mubr.f32.mxu0 %v4015
          %4418 = vmatmul.mubr.f32.gmra.mxu0 %v4011
          %v4419 = vpop.f32.mrf.mxu0
          %v4420 = vadd.f32 %v4060, %v4419
          %v4421 = vpop.f32.mrf.mxu0
          %v4422 = vadd.f32 %v4064, %v4421
          %4423 = vdwg.mxu0
          %4424 = vmatprep.subr.mxu0 %v3685
          %4425 = vmatpush1.msra.mxu0 %v3684
          %4426 = vmatprep.subr.mxu0 %v3681
          %4427 = vmatpush1.msra.mxu0 %v3680
          %4428 = vmatprep.subr.mxu0 %v3677
          %4429 = vmatpush1.msra.mxu0 %v3676
          %4430 = vmatprep.subr.mxu0 %v3673
          %4431 = vmatpush1.msra.mxu0 %v3672
          %4432 = vmatprep.subr.mxu0 %v3669
          %4433 = vmatpush1.msra.mxu0 %v3668
          %4434 = vmatprep.subr.mxu0 %v3665
          %4435 = vmatpush1.msra.mxu0 %v3664
          %4436 = vmatprep.subr.mxu0 %v3661
          %4437 = vmatpush1.msra.mxu0 %v3660
          %4438 = vmatprep.subr.mxu0 %v3657
          %4439 = vmatpush1.msra.mxu0 %v3656
          %4440 = vmatprep.subr.mxu0 %v3653
          %4441 = vmatpush1.msra.mxu0 %v3652
          %4442 = vmatprep.subr.mxu0 %v3649
          %4443 = vmatpush1.msra.mxu0 %v3648
          %4444 = vmatprep.subr.mxu0 %v3645
          %4445 = vmatpush1.msra.mxu0 %v3644
          %4446 = vmatprep.subr.mxu0 %v3641
          %4447 = vmatpush1.msra.mxu0 %v3640
          %4448 = vmatprep.subr.mxu0 %v3637
          %4449 = vmatpush1.msra.mxu0 %v3636
          %4450 = vmatprep.subr.mxu0 %v3633
          %4451 = vmatpush1.msra.mxu0 %v3632
          %4452 = vmatprep.subr.mxu0 %v3629
          %4453 = vmatpush1.msra.mxu0 %v3628
          %4454 = vmatprep.subr.mxu0 %v3625
          %4455 = vmatpush1.msra.mxu0 %v3624
          %4456 = vmatprep.subr.mxu0 %v3749
          %4457 = vmatpush2.msra.mxu0 %v3748
          %4458 = vmatprep.subr.mxu0 %v3745
          %4459 = vmatpush2.msra.mxu0 %v3744
          %4460 = vmatprep.subr.mxu0 %v3741
          %4461 = vmatpush2.msra.mxu0 %v3740
          %4462 = vmatprep.subr.mxu0 %v3737
          %4463 = vmatpush2.msra.mxu0 %v3736
          %4464 = vmatprep.subr.mxu0 %v3733
          %4465 = vmatpush2.msra.mxu0 %v3732
          %4466 = vmatprep.subr.mxu0 %v3729
          %4467 = vmatpush2.msra.mxu0 %v3728
          %4468 = vmatprep.subr.mxu0 %v3725
          %4469 = vmatpush2.msra.mxu0 %v3724
          %4470 = vmatprep.subr.mxu0 %v3721
          %4471 = vmatpush2.msra.mxu0 %v3720
          %4472 = vmatprep.subr.mxu0 %v3717
          %4473 = vmatpush2.msra.mxu0 %v3716
          %4474 = vmatprep.subr.mxu0 %v3713
          %4475 = vmatpush2.msra.mxu0 %v3712
          %4476 = vmatprep.subr.mxu0 %v3709
          %4477 = vmatpush2.msra.mxu0 %v3708
          %4478 = vmatprep.subr.mxu0 %v3705
          %4479 = vmatpush2.msra.mxu0 %v3704
          %4480 = vmatprep.subr.mxu0 %v3701
          %4481 = vmatpush2.msra.mxu0 %v3700
          %4482 = vmatprep.subr.mxu0 %v3697
          %4483 = vmatpush2.msra.mxu0 %v3696
          %4484 = vmatprep.subr.mxu0 %v3693
          %4485 = vmatpush2.msra.mxu0 %v3692
          %4486 = vmatprep.subr.mxu0 %v3689
          %4487 = vmatpush2.msra.mxu0 %v3688
          %4488 = vmatprep.mubr.f32.mxu0 %v4023
          %4489 = vmatmul.mubr.f32.gmra.mxu0 %v4019
          %v4490 = vpop.f32.mrf.mxu0
          %v4491 = vadd.f32 %v4420, %v4490
          %v4492 = vpop.f32.mrf.mxu0
          %v4493 = vadd.f32 %v4422, %v4492
          %4494 = vdwg.mxu0
          %4495 = vmatprep.subr.mxu0 %v3813
          %4496 = vmatpush1.msra.mxu0 %v3812
          %4497 = vmatprep.subr.mxu0 %v3809
          %4498 = vmatpush1.msra.mxu0 %v3808
          %4499 = vmatprep.subr.mxu0 %v3805
          %4500 = vmatpush1.msra.mxu0 %v3804
          %4501 = vmatprep.subr.mxu0 %v3801
          %4502 = vmatpush1.msra.mxu0 %v3800
          %4503 = vmatprep.subr.mxu0 %v3797
          %4504 = vmatpush1.msra.mxu0 %v3796
          %4505 = vmatprep.subr.mxu0 %v3793
          %4506 = vmatpush1.msra.mxu0 %v3792
          %4507 = vmatprep.subr.mxu0 %v3789
          %4508 = vmatpush1.msra.mxu0 %v3788
          %4509 = vmatprep.subr.mxu0 %v3785
          %4510 = vmatpush1.msra.mxu0 %v3784
          %4511 = vmatprep.subr.mxu0 %v3781
          %4512 = vmatpush1.msra.mxu0 %v3780
          %4513 = vmatprep.subr.mxu0 %v3777
          %4514 = vmatpush1.msra.mxu0 %v3776
          %4515 = vmatprep.subr.mxu0 %v3773
          %4516 = vmatpush1.msra.mxu0 %v3772
          %4517 = vmatprep.subr.mxu0 %v3769
          %4518 = vmatpush1.msra.mxu0 %v3768
          %4519 = vmatprep.subr.mxu0 %v3765
          %4520 = vmatpush1.msra.mxu0 %v3764
          %4521 = vmatprep.subr.mxu0 %v3761
          %4522 = vmatpush1.msra.mxu0 %v3760
          %4523 = vmatprep.subr.mxu0 %v3757
          %4524 = vmatpush1.msra.mxu0 %v3756
          %4525 = vmatprep.subr.mxu0 %v3753
          %4526 = vmatpush1.msra.mxu0 %v3752
          %4527 = vmatprep.subr.mxu0 %v3877
          %4528 = vmatpush2.msra.mxu0 %v3876
          %4529 = vmatprep.subr.mxu0 %v3873
          %4530 = vmatpush2.msra.mxu0 %v3872
          %4531 = vmatprep.subr.mxu0 %v3869
          %4532 = vmatpush2.msra.mxu0 %v3868
          %4533 = vmatprep.subr.mxu0 %v3865
          %4534 = vmatpush2.msra.mxu0 %v3864
          %4535 = vmatprep.subr.mxu0 %v3861
          %4536 = vmatpush2.msra.mxu0 %v3860
          %4537 = vmatprep.subr.mxu0 %v3857
          %4538 = vmatpush2.msra.mxu0 %v3856
          %4539 = vmatprep.subr.mxu0 %v3853
          %4540 = vmatpush2.msra.mxu0 %v3852
          %4541 = vmatprep.subr.mxu0 %v3849
          %4542 = vmatpush2.msra.mxu0 %v3848
          %4543 = vmatprep.subr.mxu0 %v3845
          %4544 = vmatpush2.msra.mxu0 %v3844
          %4545 = vmatprep.subr.mxu0 %v3841
          %4546 = vmatpush2.msra.mxu0 %v3840
          %4547 = vmatprep.subr.mxu0 %v3837
          %4548 = vmatpush2.msra.mxu0 %v3836
          %4549 = vmatprep.subr.mxu0 %v3833
          %4550 = vmatpush2.msra.mxu0 %v3832
          %4551 = vmatprep.subr.mxu0 %v3829
          %4552 = vmatpush2.msra.mxu0 %v3828
          %4553 = vmatprep.subr.mxu0 %v3825
          %4554 = vmatpush2.msra.mxu0 %v3824
          %4555 = vmatprep.subr.mxu0 %v3821
          %4556 = vmatpush2.msra.mxu0 %v3820
          %4557 = vmatprep.subr.mxu0 %v3817
          %4558 = vmatpush2.msra.mxu0 %v3816
          %4559 = vmatprep.mubr.f32.mxu0 %v4031
          %4560 = vmatmul.mubr.f32.gmra.mxu0 %v4027
          %v4561 = vpop.f32.mrf.mxu0
          %v4562 = vadd.f32 %v4491, %v4561
          %v4563 = vpop.f32.mrf.mxu0
          %v4564 = vadd.f32 %v4493, %v4563
          %4565 = vdwg.mxu0
          %4566 = vmatprep.subr.mxu0 %v3941
          %4567 = vmatpush1.msra.mxu0 %v3940
          %4568 = vmatprep.subr.mxu0 %v3937
          %4569 = vmatpush1.msra.mxu0 %v3936
          %4570 = vmatprep.subr.mxu0 %v3933
          %4571 = vmatpush1.msra.mxu0 %v3932
          %4572 = vmatprep.subr.mxu0 %v3929
          %4573 = vmatpush1.msra.mxu0 %v3928
          %4574 = vmatprep.subr.mxu0 %v3925
          %4575 = vmatpush1.msra.mxu0 %v3924
          %4576 = vmatprep.subr.mxu0 %v3921
          %4577 = vmatpush1.msra.mxu0 %v3920
          %4578 = vmatprep.subr.mxu0 %v3917
          %4579 = vmatpush1.msra.mxu0 %v3916
          %4580 = vmatprep.subr.mxu0 %v3913
          %4581 = vmatpush1.msra.mxu0 %v3912
          %4582 = vmatprep.subr.mxu0 %v3909
          %4583 = vmatpush1.msra.mxu0 %v3908
          %4584 = vmatprep.subr.mxu0 %v3905
          %4585 = vmatpush1.msra.mxu0 %v3904
          %4586 = vmatprep.subr.mxu0 %v3901
          %4587 = vmatpush1.msra.mxu0 %v3900
          %4588 = vmatprep.subr.mxu0 %v3897
          %4589 = vmatpush1.msra.mxu0 %v3896
          %4590 = vmatprep.subr.mxu0 %v3893
          %4591 = vmatpush1.msra.mxu0 %v3892
          %4592 = vmatprep.subr.mxu0 %v3889
          %4593 = vmatpush1.msra.mxu0 %v3888
          %4594 = vmatprep.subr.mxu0 %v3885
          %4595 = vmatpush1.msra.mxu0 %v3884
          %4596 = vmatprep.subr.mxu0 %v3881
          %4597 = vmatpush1.msra.mxu0 %v3880
          %4598 = vmatprep.subr.mxu0 %v4005
          %4599 = vmatpush2.msra.mxu0 %v4004
          %4600 = vmatprep.subr.mxu0 %v4001
          %4601 = vmatpush2.msra.mxu0 %v4000
          %4602 = vmatprep.subr.mxu0 %v3997
          %4603 = vmatpush2.msra.mxu0 %v3996
          %4604 = vmatprep.subr.mxu0 %v3993
          %4605 = vmatpush2.msra.mxu0 %v3992
          %4606 = vmatprep.subr.mxu0 %v3989
          %4607 = vmatpush2.msra.mxu0 %v3988
          %4608 = vmatprep.subr.mxu0 %v3985
          %4609 = vmatpush2.msra.mxu0 %v3984
          %4610 = vmatprep.subr.mxu0 %v3981
          %4611 = vmatpush2.msra.mxu0 %v3980
          %4612 = vmatprep.subr.mxu0 %v3977
          %4613 = vmatpush2.msra.mxu0 %v3976
          %4614 = vmatprep.subr.mxu0 %v3973
          %4615 = vmatpush2.msra.mxu0 %v3972
          %4616 = vmatprep.subr.mxu0 %v3969
          %4617 = vmatpush2.msra.mxu0 %v3968
          %4618 = vmatprep.subr.mxu0 %v3965
          %4619 = vmatpush2.msra.mxu0 %v3964
          %4620 = vmatprep.subr.mxu0 %v3961
          %4621 = vmatpush2.msra.mxu0 %v3960
          %4622 = vmatprep.subr.mxu0 %v3957
          %4623 = vmatpush2.msra.mxu0 %v3956
          %4624 = vmatprep.subr.mxu0 %v3953
          %4625 = vmatpush2.msra.mxu0 %v3952
          %4626 = vmatprep.subr.mxu0 %v3949
          %4627 = vmatpush2.msra.mxu0 %v3948
          %4628 = vmatprep.subr.mxu0 %v3945
          %4629 = vmatpush2.msra.mxu0 %v3944
          %4630 = vmatprep.mubr.f32.mxu0 %v4039
          %4631 = vmatmul.mubr.f32.gmra.mxu0 %v4035
          %v4632 = vpop.f32.mrf.mxu0
          %v4633 = vadd.f32 %v4562, %v4632
          %v4634 = vpop.f32.mrf.mxu0
          %v4635 = vadd.f32 %v4564, %v4634
          %4636 = vdwg.mxu0
          %v4637 = vmax.f32 %v4349, 0.0
          %v4638 = vmax.f32 %v4351, 0.0
          %v4639 = vmax.f32 %v4633, 0.0
          %v4640 = vmax.f32 %v4635, 0.0
          %v4641 = vld [vmem:[#allocation17] sm:$0xff]
          %v4642 = vld [vmem:[#allocation17 + $0x8] sm:$0xff]
          %v4643 = vld [vmem:[#allocation17 + $0x10] sm:$0xff]
          %v4644 = vld [vmem:[#allocation17 + $0x18] sm:$0xff]
          %v4645 = vld [vmem:[#allocation17 + $0x20] sm:$0xff]
          %v4646 = vld [vmem:[#allocation17 + $0x28] sm:$0xff]
          %v4647 = vld [vmem:[#allocation17 + $0x30] sm:$0xff]
          %v4648 = vld [vmem:[#allocation17 + $0x38] sm:$0xff]
          %v4649 = vld [vmem:[#allocation17 + $0x40] sm:$0xff]
          %v4650 = vld [vmem:[#allocation17 + $0x48] sm:$0xff]
          %v4651 = vld [vmem:[#allocation17 + $0x50] sm:$0xff]
          %v4652 = vld [vmem:[#allocation17 + $0x58] sm:$0xff]
          %v4653 = vld [vmem:[#allocation17 + $0x60] sm:$0xff]
          %v4654 = vld [vmem:[#allocation17 + $0x68] sm:$0xff]
          %v4655 = vld [vmem:[#allocation17 + $0x70] sm:$0xff]
          %v4656 = vld [vmem:[#allocation17 + $0x78] sm:$0xff]
          %v4657 = vld [vmem:[#allocation17 + $0x80] sm:$0xff]
          %v4658 = vld [vmem:[#allocation17 + $0x88] sm:$0xff]
          %v4659 = vld [vmem:[#allocation17 + $0x90] sm:$0xff]
          %v4660 = vld [vmem:[#allocation17 + $0x98] sm:$0xff]
          %v4661 = vld [vmem:[#allocation17 + $0xa0] sm:$0xff]
          %v4662 = vld [vmem:[#allocation17 + $0xa8] sm:$0xff]
          %v4663 = vld [vmem:[#allocation17 + $0xb0] sm:$0xff]
          %v4664 = vld [vmem:[#allocation17 + $0xb8] sm:$0xff]
          %v4665 = vld [vmem:[#allocation17 + $0xc0] sm:$0xff]
          %v4666 = vld [vmem:[#allocation17 + $0xc8] sm:$0xff]
          %v4667 = vld [vmem:[#allocation17 + $0xd0] sm:$0xff]
          %v4668 = vld [vmem:[#allocation17 + $0xd8] sm:$0xff]
          %v4669 = vld [vmem:[#allocation17 + $0xe0] sm:$0xff]
          %v4670 = vld [vmem:[#allocation17 + $0xe8] sm:$0xff]
          %v4671 = vld [vmem:[#allocation17 + $0xf0] sm:$0xff]
          %v4672 = vld [vmem:[#allocation17 + $0xf8] sm:$0xff]
          %v4673 = vld [vmem:[#allocation17 + $0x100] sm:$0xff]
          %v4674 = vld [vmem:[#allocation17 + $0x108] sm:$0xff]
          %v4675 = vld [vmem:[#allocation17 + $0x110] sm:$0xff]
          %v4676 = vld [vmem:[#allocation17 + $0x118] sm:$0xff]
          %v4677 = vld [vmem:[#allocation17 + $0x120] sm:$0xff]
          %v4678 = vld [vmem:[#allocation17 + $0x128] sm:$0xff]
          %v4679 = vld [vmem:[#allocation17 + $0x130] sm:$0xff]
          %v4680 = vld [vmem:[#allocation17 + $0x138] sm:$0xff]
          %v4681 = vld [vmem:[#allocation17 + $0x140] sm:$0xff]
          %v4682 = vld [vmem:[#allocation17 + $0x148] sm:$0xff]
          %v4683 = vld [vmem:[#allocation17 + $0x150] sm:$0xff]
          %v4684 = vld [vmem:[#allocation17 + $0x158] sm:$0xff]
          %v4685 = vld [vmem:[#allocation17 + $0x160] sm:$0xff]
          %v4686 = vld [vmem:[#allocation17 + $0x168] sm:$0xff]
          %v4687 = vld [vmem:[#allocation17 + $0x170] sm:$0xff]
          %v4688 = vld [vmem:[#allocation17 + $0x178] sm:$0xff]
          %v4689 = vld [vmem:[#allocation17 + $0x180] sm:$0xff]
          %v4690 = vld [vmem:[#allocation17 + $0x188] sm:$0xff]
          %v4691 = vld [vmem:[#allocation17 + $0x190] sm:$0xff]
          %v4692 = vld [vmem:[#allocation17 + $0x198] sm:$0xff]
          %v4693 = vld [vmem:[#allocation17 + $0x1a0] sm:$0xff]
          %v4694 = vld [vmem:[#allocation17 + $0x1a8] sm:$0xff]
          %v4695 = vld [vmem:[#allocation17 + $0x1b0] sm:$0xff]
          %v4696 = vld [vmem:[#allocation17 + $0x1b8] sm:$0xff]
          %v4697 = vld [vmem:[#allocation17 + $0x1c0] sm:$0xff]
          %v4698 = vld [vmem:[#allocation17 + $0x1c8] sm:$0xff]
          %v4699 = vld [vmem:[#allocation17 + $0x1d0] sm:$0xff]
          %v4700 = vld [vmem:[#allocation17 + $0x1d8] sm:$0xff]
          %v4701 = vld [vmem:[#allocation17 + $0x1e0] sm:$0xff]
          %v4702 = vld [vmem:[#allocation17 + $0x1e8] sm:$0xff]
          %v4703 = vld [vmem:[#allocation17 + $0x1f0] sm:$0xff]
          %v4704 = vld [vmem:[#allocation17 + $0x1f8] sm:$0xff]
          %v4705 = vld [vmem:[#allocation17 + $0x200] sm:$0xff]
          %v4706 = vld [vmem:[#allocation17 + $0x208] sm:$0xff]
          %v4707 = vld [vmem:[#allocation17 + $0x210] sm:$0xff]
          %v4708 = vld [vmem:[#allocation17 + $0x218] sm:$0xff]
          %v4709 = vld [vmem:[#allocation17 + $0x220] sm:$0xff]
          %v4710 = vld [vmem:[#allocation17 + $0x228] sm:$0xff]
          %v4711 = vld [vmem:[#allocation17 + $0x230] sm:$0xff]
          %v4712 = vld [vmem:[#allocation17 + $0x238] sm:$0xff]
          %v4713 = vld [vmem:[#allocation17 + $0x240] sm:$0xff]
          %v4714 = vld [vmem:[#allocation17 + $0x248] sm:$0xff]
          %v4715 = vld [vmem:[#allocation17 + $0x250] sm:$0xff]
          %v4716 = vld [vmem:[#allocation17 + $0x258] sm:$0xff]
          %v4717 = vld [vmem:[#allocation17 + $0x260] sm:$0xff]
          %v4718 = vld [vmem:[#allocation17 + $0x268] sm:$0xff]
          %v4719 = vld [vmem:[#allocation17 + $0x270] sm:$0xff]
          %v4720 = vld [vmem:[#allocation17 + $0x278] sm:$0xff]
          %v4721 = vld [vmem:[#allocation17 + $0x280] sm:$0xff]
          %v4722 = vld [vmem:[#allocation17 + $0x288] sm:$0xff]
          %v4723 = vld [vmem:[#allocation17 + $0x290] sm:$0xff]
          %v4724 = vld [vmem:[#allocation17 + $0x298] sm:$0xff]
          %v4725 = vld [vmem:[#allocation17 + $0x2a0] sm:$0xff]
          %v4726 = vld [vmem:[#allocation17 + $0x2a8] sm:$0xff]
          %v4727 = vld [vmem:[#allocation17 + $0x2b0] sm:$0xff]
          %v4728 = vld [vmem:[#allocation17 + $0x2b8] sm:$0xff]
          %v4729 = vld [vmem:[#allocation17 + $0x2c0] sm:$0xff]
          %v4730 = vld [vmem:[#allocation17 + $0x2c8] sm:$0xff]
          %v4731 = vld [vmem:[#allocation17 + $0x2d0] sm:$0xff]
          %v4732 = vld [vmem:[#allocation17 + $0x2d8] sm:$0xff]
          %v4733 = vld [vmem:[#allocation17 + $0x2e0] sm:$0xff]
          %v4734 = vld [vmem:[#allocation17 + $0x2e8] sm:$0xff]
          %v4735 = vld [vmem:[#allocation17 + $0x2f0] sm:$0xff]
          %v4736 = vld [vmem:[#allocation17 + $0x2f8] sm:$0xff]
          %v4737 = vld [vmem:[#allocation17 + $0x300] sm:$0xff]
          %v4738 = vld [vmem:[#allocation17 + $0x308] sm:$0xff]
          %v4739 = vld [vmem:[#allocation17 + $0x310] sm:$0xff]
          %v4740 = vld [vmem:[#allocation17 + $0x318] sm:$0xff]
          %v4741 = vld [vmem:[#allocation17 + $0x320] sm:$0xff]
          %v4742 = vld [vmem:[#allocation17 + $0x328] sm:$0xff]
          %v4743 = vld [vmem:[#allocation17 + $0x330] sm:$0xff]
          %v4744 = vld [vmem:[#allocation17 + $0x338] sm:$0xff]
          %v4745 = vld [vmem:[#allocation17 + $0x340] sm:$0xff]
          %v4746 = vld [vmem:[#allocation17 + $0x348] sm:$0xff]
          %v4747 = vld [vmem:[#allocation17 + $0x350] sm:$0xff]
          %v4748 = vld [vmem:[#allocation17 + $0x358] sm:$0xff]
          %v4749 = vld [vmem:[#allocation17 + $0x360] sm:$0xff]
          %v4750 = vld [vmem:[#allocation17 + $0x368] sm:$0xff]
          %v4751 = vld [vmem:[#allocation17 + $0x370] sm:$0xff]
          %v4752 = vld [vmem:[#allocation17 + $0x378] sm:$0xff]
          %v4753 = vld [vmem:[#allocation17 + $0x380] sm:$0xff]
          %v4754 = vld [vmem:[#allocation17 + $0x388] sm:$0xff]
          %v4755 = vld [vmem:[#allocation17 + $0x390] sm:$0xff]
          %v4756 = vld [vmem:[#allocation17 + $0x398] sm:$0xff]
          %v4757 = vld [vmem:[#allocation17 + $0x3a0] sm:$0xff]
          %v4758 = vld [vmem:[#allocation17 + $0x3a8] sm:$0xff]
          %v4759 = vld [vmem:[#allocation17 + $0x3b0] sm:$0xff]
          %v4760 = vld [vmem:[#allocation17 + $0x3b8] sm:$0xff]
          %v4761 = vld [vmem:[#allocation17 + $0x3c0] sm:$0xff]
          %v4762 = vld [vmem:[#allocation17 + $0x3c8] sm:$0xff]
          %v4763 = vld [vmem:[#allocation17 + $0x3d0] sm:$0xff]
          %v4764 = vld [vmem:[#allocation17 + $0x3d8] sm:$0xff]
          %v4765 = vld [vmem:[#allocation17 + $0x3e0] sm:$0xff]
          %v4766 = vld [vmem:[#allocation17 + $0x3e8] sm:$0xff]
          %v4767 = vld [vmem:[#allocation17 + $0x3f0] sm:$0xff]
          %v4768 = vld [vmem:[#allocation17 + $0x3f8] sm:$0xff]
          %v4769 = vld [vmem:[#allocation18] sm:$0x3]
          %v4771 = vlaneseq
          %v4772 = vshrl.u32 %v4771, 7
          %v4773 = vsub.s32 0, %v4772
          %v4774 = vrot.slane %v4769, %v4773
          %v4775 = vlaneseq
          %v4776 = vshrl.u32 %v4775, 7
          %v4777 = vsub.s32 1, %v4776
          %v4778 = vrot.slane %v4769, %v4777
          %4781 = vmatprep.subr.mxu0 %v4672
          %4782 = vmatpush1.msra.mxu0 %v4671
          %4783 = vmatprep.subr.mxu0 %v4670
          %4784 = vmatpush1.msra.mxu0 %v4669
          %4785 = vmatprep.subr.mxu0 %v4668
          %4786 = vmatpush1.msra.mxu0 %v4667
          %4787 = vmatprep.subr.mxu0 %v4666
          %4788 = vmatpush1.msra.mxu0 %v4665
          %4789 = vmatprep.subr.mxu0 %v4664
          %4790 = vmatpush1.msra.mxu0 %v4663
          %4791 = vmatprep.subr.mxu0 %v4662
          %4792 = vmatpush1.msra.mxu0 %v4661
          %4793 = vmatprep.subr.mxu0 %v4660
          %4794 = vmatpush1.msra.mxu0 %v4659
          %4795 = vmatprep.subr.mxu0 %v4658
          %4796 = vmatpush1.msra.mxu0 %v4657
          %4797 = vmatprep.subr.mxu0 %v4656
          %4798 = vmatpush1.msra.mxu0 %v4655
          %4799 = vmatprep.subr.mxu0 %v4654
          %4800 = vmatpush1.msra.mxu0 %v4653
          %4801 = vmatprep.subr.mxu0 %v4652
          %4802 = vmatpush1.msra.mxu0 %v4651
          %4803 = vmatprep.subr.mxu0 %v4650
          %4804 = vmatpush1.msra.mxu0 %v4649
          %4805 = vmatprep.subr.mxu0 %v4648
          %4806 = vmatpush1.msra.mxu0 %v4647
          %4807 = vmatprep.subr.mxu0 %v4646
          %4808 = vmatpush1.msra.mxu0 %v4645
          %4809 = vmatprep.subr.mxu0 %v4644
          %4810 = vmatpush1.msra.mxu0 %v4643
          %4811 = vmatprep.subr.mxu0 %v4642
          %4812 = vmatpush1.msra.mxu0 %v4641
          %4813 = vmatprep.subr.mxu0 %v4704
          %4814 = vmatpush2.msra.mxu0 %v4703
          %4815 = vmatprep.subr.mxu0 %v4702
          %4816 = vmatpush2.msra.mxu0 %v4701
          %4817 = vmatprep.subr.mxu0 %v4700
          %4818 = vmatpush2.msra.mxu0 %v4699
          %4819 = vmatprep.subr.mxu0 %v4698
          %4820 = vmatpush2.msra.mxu0 %v4697
          %4821 = vmatprep.subr.mxu0 %v4696
          %4822 = vmatpush2.msra.mxu0 %v4695
          %4823 = vmatprep.subr.mxu0 %v4694
          %4824 = vmatpush2.msra.mxu0 %v4693
          %4825 = vmatprep.subr.mxu0 %v4692
          %4826 = vmatpush2.msra.mxu0 %v4691
          %4827 = vmatprep.subr.mxu0 %v4690
          %4828 = vmatpush2.msra.mxu0 %v4689
          %4829 = vmatprep.subr.mxu0 %v4688
          %4830 = vmatpush2.msra.mxu0 %v4687
          %4831 = vmatprep.subr.mxu0 %v4686
          %4832 = vmatpush2.msra.mxu0 %v4685
          %4833 = vmatprep.subr.mxu0 %v4684
          %4834 = vmatpush2.msra.mxu0 %v4683
          %4835 = vmatprep.subr.mxu0 %v4682
          %4836 = vmatpush2.msra.mxu0 %v4681
          %4837 = vmatprep.subr.mxu0 %v4680
          %4838 = vmatpush2.msra.mxu0 %v4679
          %4839 = vmatprep.subr.mxu0 %v4678
          %4840 = vmatpush2.msra.mxu0 %v4677
          %4841 = vmatprep.subr.mxu0 %v4676
          %4842 = vmatpush2.msra.mxu0 %v4675
          %4843 = vmatprep.subr.mxu0 %v4674
          %4844 = vmatpush2.msra.mxu0 %v4673
          %4845 = vmatprep.mubr.f32.mxu0 %v4638
          %4846 = vmatmul.mubr.f32.gmra.mxu0 %v4637
          %v4847 = vpop.f32.mrf.mxu0
          %v4848 = vadd.f32 %v4774, %v4847
          %v4849 = vpop.f32.mrf.mxu0
          %v4850 = vadd.f32 %v4778, %v4849
          %4851 = vdwg.mxu0
          %4852 = vmatprep.subr.mxu0 %v4736
          %4853 = vmatpush1.msra.mxu0 %v4735
          %4854 = vmatprep.subr.mxu0 %v4734
          %4855 = vmatpush1.msra.mxu0 %v4733
          %4856 = vmatprep.subr.mxu0 %v4732
          %4857 = vmatpush1.msra.mxu0 %v4731
          %4858 = vmatprep.subr.mxu0 %v4730
          %4859 = vmatpush1.msra.mxu0 %v4729
          %4860 = vmatprep.subr.mxu0 %v4728
          %4861 = vmatpush1.msra.mxu0 %v4727
          %4862 = vmatprep.subr.mxu0 %v4726
          %4863 = vmatpush1.msra.mxu0 %v4725
          %4864 = vmatprep.subr.mxu0 %v4724
          %4865 = vmatpush1.msra.mxu0 %v4723
          %4866 = vmatprep.subr.mxu0 %v4722
          %4867 = vmatpush1.msra.mxu0 %v4721
          %4868 = vmatprep.subr.mxu0 %v4720
          %4869 = vmatpush1.msra.mxu0 %v4719
          %4870 = vmatprep.subr.mxu0 %v4718
          %4871 = vmatpush1.msra.mxu0 %v4717
          %4872 = vmatprep.subr.mxu0 %v4716
          %4873 = vmatpush1.msra.mxu0 %v4715
          %4874 = vmatprep.subr.mxu0 %v4714
          %4875 = vmatpush1.msra.mxu0 %v4713
          %4876 = vmatprep.subr.mxu0 %v4712
          %4877 = vmatpush1.msra.mxu0 %v4711
          %4878 = vmatprep.subr.mxu0 %v4710
          %4879 = vmatpush1.msra.mxu0 %v4709
          %4880 = vmatprep.subr.mxu0 %v4708
          %4881 = vmatpush1.msra.mxu0 %v4707
          %4882 = vmatprep.subr.mxu0 %v4706
          %4883 = vmatpush1.msra.mxu0 %v4705
          %4884 = vmatprep.subr.mxu0 %v4768
          %4885 = vmatpush2.msra.mxu0 %v4767
          %4886 = vmatprep.subr.mxu0 %v4766
          %4887 = vmatpush2.msra.mxu0 %v4765
          %4888 = vmatprep.subr.mxu0 %v4764
          %4889 = vmatpush2.msra.mxu0 %v4763
          %4890 = vmatprep.subr.mxu0 %v4762
          %4891 = vmatpush2.msra.mxu0 %v4761
          %4892 = vmatprep.subr.mxu0 %v4760
          %4893 = vmatpush2.msra.mxu0 %v4759
          %4894 = vmatprep.subr.mxu0 %v4758
          %4895 = vmatpush2.msra.mxu0 %v4757
          %4896 = vmatprep.subr.mxu0 %v4756
          %4897 = vmatpush2.msra.mxu0 %v4755
          %4898 = vmatprep.subr.mxu0 %v4754
          %4899 = vmatpush2.msra.mxu0 %v4753
          %4900 = vmatprep.subr.mxu0 %v4752
          %4901 = vmatpush2.msra.mxu0 %v4751
          %4902 = vmatprep.subr.mxu0 %v4750
          %4903 = vmatpush2.msra.mxu0 %v4749
          %4904 = vmatprep.subr.mxu0 %v4748
          %4905 = vmatpush2.msra.mxu0 %v4747
          %4906 = vmatprep.subr.mxu0 %v4746
          %4907 = vmatpush2.msra.mxu0 %v4745
          %4908 = vmatprep.subr.mxu0 %v4744
          %4909 = vmatpush2.msra.mxu0 %v4743
          %4910 = vmatprep.subr.mxu0 %v4742
          %4911 = vmatpush2.msra.mxu0 %v4741
          %4912 = vmatprep.subr.mxu0 %v4740
          %4913 = vmatpush2.msra.mxu0 %v4739
          %4914 = vmatprep.subr.mxu0 %v4738
          %4915 = vmatpush2.msra.mxu0 %v4737
          %4916 = vmatprep.mubr.f32.mxu0 %v4640
          %4917 = vmatmul.mubr.f32.gmra.mxu0 %v4639
          %v4918 = vpop.f32.mrf.mxu0
          %v4919 = vadd.f32 %v4848, %v4918
          %v4920 = vpop.f32.mrf.mxu0
          %v4921 = vadd.f32 %v4850, %v4920
          %4922 = vdwg.mxu0
          %v4923 = vmax.f32 %v4919, 0.0
          %v4924 = vmax.f32 %v4921, 0.0
          %v4925 = vld [vmem:[%s11] sm:$0xff]
          %v4926 = vld [vmem:[%s11 + $0x8] sm:$0xff]
          %v4927 = vld [vmem:[%s11 + $0x10] sm:$0xff]
          %v4928 = vld [vmem:[%s11 + $0x18] sm:$0xff]
          %v4929 = vld [vmem:[%s11 + $0x20] sm:$0xff]
          %v4930 = vld [vmem:[%s11 + $0x28] sm:$0xff]
          %v4931 = vld [vmem:[%s11 + $0x30] sm:$0xff]
          %v4932 = vld [vmem:[%s11 + $0x38] sm:$0xff]
          %v4933 = vld [vmem:[%s11 + $0x40] sm:$0xff]
          %v4934 = vld [vmem:[%s11 + $0x48] sm:$0xff]
          %v4935 = vld [vmem:[%s11 + $0x50] sm:$0xff]
          %v4936 = vld [vmem:[%s11 + $0x58] sm:$0xff]
          %v4937 = vld [vmem:[%s11 + $0x60] sm:$0xff]
          %v4938 = vld [vmem:[%s11 + $0x68] sm:$0xff]
          %v4939 = vld [vmem:[%s11 + $0x70] sm:$0xff]
          %v4940 = vld [vmem:[%s11 + $0x78] sm:$0xff]
          %v4941 = vld [vmem:[%s11 + $0x80] sm:$0xff]
          %v4942 = vld [vmem:[%s11 + $0x88] sm:$0xff]
          %v4943 = vld [vmem:[%s11 + $0x90] sm:$0xff]
          %v4944 = vld [vmem:[%s11 + $0x98] sm:$0xff]
          %v4945 = vld [vmem:[%s11 + $0xa0] sm:$0xff]
          %v4946 = vld [vmem:[%s11 + $0xa8] sm:$0xff]
          %v4947 = vld [vmem:[%s11 + $0xb0] sm:$0xff]
          %v4948 = vld [vmem:[%s11 + $0xb8] sm:$0xff]
          %v4949 = vld [vmem:[%s11 + $0xc0] sm:$0xff]
          %v4950 = vld [vmem:[%s11 + $0xc8] sm:$0xff]
          %v4951 = vld [vmem:[%s11 + $0xd0] sm:$0xff]
          %v4952 = vld [vmem:[%s11 + $0xd8] sm:$0xff]
          %v4953 = vld [vmem:[%s11 + $0xe0] sm:$0xff]
          %v4954 = vld [vmem:[%s11 + $0xe8] sm:$0xff]
          %v4955 = vld [vmem:[%s11 + $0xf0] sm:$0xff]
          %v4956 = vld [vmem:[%s11 + $0xf8] sm:$0xff]
          %v4957 = vld [vmem:[#allocation20] sm:$0x1]
          %4958 = vmatprep.subr.mxu0 0.0
          %4959 = vmatpush1.msra.mxu0 %v4940
          %4960 = vmatprep.subr.mxu0 0.0
          %4961 = vmatpush1.msra.mxu0 %v4939
          %4962 = vmatprep.subr.mxu0 0.0
          %4963 = vmatpush1.msra.mxu0 %v4938
          %4964 = vmatprep.subr.mxu0 0.0
          %4965 = vmatpush1.msra.mxu0 %v4937
          %4966 = vmatprep.subr.mxu0 0.0
          %4967 = vmatpush1.msra.mxu0 %v4936
          %4968 = vmatprep.subr.mxu0 0.0
          %4969 = vmatpush1.msra.mxu0 %v4935
          %4970 = vmatprep.subr.mxu0 0.0
          %4971 = vmatpush1.msra.mxu0 %v4934
          %4972 = vmatprep.subr.mxu0 0.0
          %4973 = vmatpush1.msra.mxu0 %v4933
          %4974 = vmatprep.subr.mxu0 0.0
          %4975 = vmatpush1.msra.mxu0 %v4932
          %4976 = vmatprep.subr.mxu0 0.0
          %4977 = vmatpush1.msra.mxu0 %v4931
          %4978 = vmatprep.subr.mxu0 0.0
          %4979 = vmatpush1.msra.mxu0 %v4930
          %4980 = vmatprep.subr.mxu0 0.0
          %4981 = vmatpush1.msra.mxu0 %v4929
          %4982 = vmatprep.subr.mxu0 0.0
          %4983 = vmatpush1.msra.mxu0 %v4928
          %4984 = vmatprep.subr.mxu0 0.0
          %4985 = vmatpush1.msra.mxu0 %v4927
          %4986 = vmatprep.subr.mxu0 0.0
          %4987 = vmatpush1.msra.mxu0 %v4926
          %4988 = vmatprep.subr.mxu0 0.0
          %4989 = vmatpush1.msra.mxu0 %v4925
          %4990 = vmatprep.subr.mxu0 0.0
          %4991 = vmatpush2.msra.mxu0 %v4956
          %4992 = vmatprep.subr.mxu0 0.0
          %4993 = vmatpush2.msra.mxu0 %v4955
          %4994 = vmatprep.subr.mxu0 0.0
          %4995 = vmatpush2.msra.mxu0 %v4954
          %4996 = vmatprep.subr.mxu0 0.0
          %4997 = vmatpush2.msra.mxu0 %v4953
          %4998 = vmatprep.subr.mxu0 0.0
          %4999 = vmatpush2.msra.mxu0 %v4952
          %5000 = vmatprep.subr.mxu0 0.0
          %5001 = vmatpush2.msra.mxu0 %v4951
          %5002 = vmatprep.subr.mxu0 0.0
          %5003 = vmatpush2.msra.mxu0 %v4950
          %5004 = vmatprep.subr.mxu0 0.0
          %5005 = vmatpush2.msra.mxu0 %v4949
          %5006 = vmatprep.subr.mxu0 0.0
          %5007 = vmatpush2.msra.mxu0 %v4948
          %5008 = vmatprep.subr.mxu0 0.0
          %5009 = vmatpush2.msra.mxu0 %v4947
          %5010 = vmatprep.subr.mxu0 0.0
          %5011 = vmatpush2.msra.mxu0 %v4946
          %5012 = vmatprep.subr.mxu0 0.0
          %5013 = vmatpush2.msra.mxu0 %v4945
          %5014 = vmatprep.subr.mxu0 0.0
          %5015 = vmatpush2.msra.mxu0 %v4944
          %5016 = vmatprep.subr.mxu0 0.0
          %5017 = vmatpush2.msra.mxu0 %v4943
          %5018 = vmatprep.subr.mxu0 0.0
          %5019 = vmatpush2.msra.mxu0 %v4942
          %5020 = vmatprep.subr.mxu0 0.0
          %5021 = vmatpush2.msra.mxu0 %v4941
          %5022 = vmatprep.mubr.f32.mxu0 %v4924
          %5023 = vmatmul.mubr.f32.gmra.mxu0 %v4923
          %v5024 = vpop.f32.mrf.mxu0
          %v5025 = vadd.f32 %v4957, %v5024
          %v5026 = vpop.f32.mrf.mxu0
          %5027 = vdwg.mxu0
          %vm5028 = vcmask 24576
          %5029 = vst.msk [vmem:[%s601] sm:$0x1] %vm5028, %v5025
        $region124: #{tpu_custom_call.1} parent=71 // pred_fallthru
          _
        %s5030 = sand.u32 %s333, 1
        %s5031 = scalar_lea.sflag [#allocation5], %s5030
        %s5032 = sand.u32 %s333, 1
        %s5033 = scalar_lea.vmem [#allocation21], %s5032
        // Predicated region
        $region125: #{tpu_custom_call.1} parent=71 // pred_check
          %p5034 = pneg %p343
        $region126: #{tpu_custom_call.1} parent=71 // pred_check_branch
          %5036 = sbr.rel (%p5034) target = $region128
        $region127: #{tpu_custom_call.1} parent=71 // pred_region
          %s5038 = ssub.s32 16, 16
          %5039 = vsyncadd %s5031, %s5038
          %s5040 = smul.addr %s37, 16
          %s5041 = scalar_lea.hbm %s13, %s5040
          %s5043 = sshll.u32 %s5033, 4
          %s5044 = int_to_ptr.vmem [resolvable:$true] %s5043
          %5046 = dma.vmem_to_hbm [thread:$0]  %s5044, 16, %s5041, %s5031
        $region128: #{tpu_custom_call.1} parent=71 // pred_fallthru
          _
      $region72: #{tpu_custom_call.1} parent=5 // pred_fallthru
        _
      %p5047 = scmp.le.s32.totalorder 2, %s28
      // Predicated region
      $region129: #{tpu_custom_call.1} parent=5 // pred_check
        %p5048 = pneg %p5047
      $region130: #{tpu_custom_call.1} parent=5 // pred_check_branch
        %5050 = sbr.rel (%p5048) target = $region132
      $region131: #{tpu_custom_call.1} parent=5 // pred_region
        %s5051 = ssub.s32 %s28, 2
        // Predicated region
        $region133: #{tpu_custom_call.1} parent=131 // pred_check
          %p5052 = pneg %p349
        $region134: #{tpu_custom_call.1} parent=131 // pred_check_branch
          %5054 = sbr.rel (%p5052) target = $region136
        $region135: #{tpu_custom_call.1} parent=131 // pred_region
          %s5055 = sand.u32 %s334, 1
          %s5056 = scalar_lea.sflag [#allocation5], %s5055
          %s5057 = sand.u32 %s334, 1
          %s5058 = scalar_lea.vmem [#allocation21], %s5057
          %5059 = dma.done %s5056, 16
        $region136: #{tpu_custom_call.1} parent=131 // pred_fallthru
          _
      $region132: #{tpu_custom_call.1} parent=5 // pred_fallthru
        _
    $region6: #{tpu_custom_call.1} parent=1 // loop_footer
      %s32 = sadd.s32 1, %s28
    $region7: #{tpu_custom_call.1} parent=1 // loop_footer_branch
      %27 = sbr.rel target = $region3
    $region8: #{tpu_custom_call.1} parent=1 // loop_exit
      _
    %5060 = vsyncpa [#allocation4], 1
    %s5061 = scalar_lea.sflag [#allocation4], 1
    %5062 = vsyncpa %s5061, 1
    %5063 = vsyncpa [#allocation7], 1
    %5064 = vsyncpa [#allocation10], 1
    %5065 = vsyncpa [#allocation13], 1
    %5066 = vsyncpa [#allocation16], 1
    %5067 = vsyncpa [#allocation19], 1
    %5068 = vsyncpa [#allocation5], 1
    %s5069 = scalar_lea.sflag [#allocation5], 1
    %5070 = vsyncpa %s5069, 1

</llo_original>
